<compile_context>
chip_gen: v5e
topology: v5e:2x2
jax: 0.10.0
libtpu: 0.0.40
codegen_flags: <defaults>
</compile_context>

<pallas_src>
import numpy as np
import jax
import jax.numpy as jnp
from jax import lax
from jax.experimental import pallas as pl
from jax.experimental.pallas import tpu as pltpu


# ---------------------------------------------------------------------------
# Pallas kernel: whole network for one batch tile.
# Activation row layout (after conv1): row = spatial_row * tb + batch_in_tile.
# Lane layout: lane = spatial_col * C + channel (W-major, C-minor).
# ---------------------------------------------------------------------------
def _net_kernel(x_ref, cb1_ref, b1_ref, cb2_ref, pc2_ref, b2_ref,
                f1_ref, fb1_ref, f2_ref, fb2_ref, o_ref):
    f32 = jnp.float32
    tb = x_ref.shape[0]                      # batch tile size (multiple of 8)

    # ---- conv1 (5x5, 1->10, VALID) + bias + 2x2 maxpool + relu, fully fused ----
    # For pooled row i we need image rows 2i..2i+5 = lanes 56i..56i+167 of the (tb,784) input.
    # yy quadrants (128-lane aligned): q0 even-row/even-col, q1 even/odd, q2 odd/even, q3 odd/odd.
    band1 = cb1_ref[...]                                                     # (168, 512)
    rows = []
    for i in range(12):
        xs = x_ref[:, 56 * i: 56 * i + 168]                                  # (tb, 168)
        yy = jnp.dot(xs, band1, preferred_element_type=f32)                  # (tb, 512)
        m = jnp.maximum(jnp.maximum(yy[:, 0:120], yy[:, 128:248]),
                        jnp.maximum(yy[:, 256:376], yy[:, 384:504]))         # (tb, 120)
        rows.append(m)
    # bias added once AFTER the max (max(a+b, c+b) == max(a,c)+b)
    a1 = jnp.maximum(jnp.concatenate(rows, axis=0) + b1_ref[...], 0.0)       # (12*tb, 120)

    # ---- conv2 (5x5, 10->20).  Dropout2d is identity in eval mode. ----
    y2 = jnp.dot(a1[0:8 * tb, :], cb2_ref[0], preferred_element_type=f32)
    for ky in range(1, 5):
        y2 = y2 + jnp.dot(a1[ky * tb:(ky + 8) * tb, :], cb2_ref[ky],
                          preferred_element_type=f32)                        # (8*tb, 160)
    # 2x2 maxpool: rows via max-then-concat of aligned sublane slabs,
    # cols via ONE fused even/odd 0/1 selection matmul + max of 128-aligned halves.
    p2 = jnp.concatenate(
        [jnp.maximum(y2[(2 * q) * tb:(2 * q + 1) * tb, :],
                     y2[(2 * q + 1) * tb:(2 * q + 2) * tb, :]) for q in range(4)],
        axis=0)                                                              # (4*tb, 160)
    pp = jnp.dot(p2, pc2_ref[...], preferred_element_type=f32)               # (4*tb, 256)
    a2 = jnp.maximum(jnp.maximum(pp[:, 0:80], pp[:, 128:208]) + b2_ref[...], 0.0)  # (4*tb, 80)

    # ---- fc1 (320->50): torch NCHW flatten permutation folded into f1_ref ----
    h = jnp.dot(a2[0:tb, :], f1_ref[0], preferred_element_type=f32)
    for r in range(1, 4):
        h = h + jnp.dot(a2[r * tb:(r + 1) * tb, :], f1_ref[r], preferred_element_type=f32)
    h = jnp.maximum(h + fb1_ref[...], 0.0)                                   # (tb, 50)
    # TODO(synk): F.dropout / Dropout2d are identity in eval mode; training-mode RNG dropout omitted.

    # ---- fc2 + log_softmax on a lane-dense 128-wide block (pad lanes biased to -1e30) ----
    logits = jnp.dot(h, f2_ref[...], preferred_element_type=f32) + fb2_ref[...]   # (tb, 128)
    m = jnp.max(logits, axis=-1, keepdims=True)
    z = logits - m
    o_ref[...] = z - jnp.log(jnp.sum(jnp.exp(z), axis=-1, keepdims=True))


# ---------------------------------------------------------------------------
# Host-side (one-time) structured-weight construction
# ---------------------------------------------------------------------------
def _conv1_pool_band(w1):
    """Fused conv1 + 2x2 max-pool band matrix, shape (168, 512).
    Input lane  l = hr*28 + wi   (hr = row offset 0..5 inside a 6-row slab, wi = col 0..27)
    Output lane q*128 + j*10 + co with quadrant q = 2*(conv-row parity) + (conv-col parity),
    j = pooled col 0..11, co = out channel 0..9.  Max over the 4 quadrants == 2x2 pool."""
    w = np.asarray(w1, np.float32)                       # (10, 1, 5, 5)
    cout = w.shape[0]
    B = np.zeros((6 * 28, 4 * 128), np.float32)
    for q in range(4):
        dr, dc = q // 2, q % 2
        for j in range(12):
            for ky in range(5):
                for kx in range(5):
                    hr = dr + ky
                    wi = 2 * j + dc + kx
                    for co in range(cout):
                        B[hr * 28 + wi, q * 128 + j * 10 + co] = w[co, 0, ky, kx]
    return B


def _conv_band(w, win):
    """w: (Cout, Cin, 5, 5).  Returns (5, win*Cin, wout*Cout) per-kernel-row band matrices
    B with B[ky][wi*Cin+ci, c*Cout+co] = w[co, ci, ky, wi-c] for 0 <= wi-c < 5."""
    w = np.asarray(w, np.float32)
    cout, cin, kh, kw = w.shape
    wout = win - kw + 1
    B = np.zeros((kh, win * cin, wout * cout), np.float32)
    for ky in range(kh):
        for c in range(wout):
            for kx in range(kw):
                wi = c + kx
                B[ky, wi * cin:(wi + 1) * cin, c * cout:(c + 1) * cout] = w[:, :, ky, kx].T
    return B


def _pool2_cols():
    """Fused even/odd column-pool selection for conv2: (160, 256) with even-col picks in
    lanes 0..79 and odd-col picks in lanes 128..207 (128-aligned halves)."""
    P = np.zeros((160, 256), np.float32)
    for t in range(4):
        for co in range(20):
            P[(2 * t) * 20 + co, t * 20 + co] = 1.0
            P[(2 * t + 1) * 20 + co, 128 + t * 20 + co] = 1.0
    return P


def _fc1_split(fw1, c=20, hh=4, ww=4):
    """fc1 weight (50, 320) regrouped per pooled row so the torch NCHW flatten
    (index = ci*16 + h*4 + w) is absorbed: W[h][w*c+ci, o] = fw1[o, ci*hh*ww + h*ww + w]."""
    fw1 = np.asarray(fw1, np.float32)
    nout = fw1.shape[0]
    W = np.zeros((hh, ww * c, nout), np.float32)
    for h in range(hh):
        for w_ in range(ww):
            for ci in range(c):
                W[h, w_ * c + ci, :] = fw1[:, ci * hh * ww + h * ww + w_]
    return W


# ---------------------------------------------------------------------------
# Wrapper: single fused pallas_call, grid over batch tiles
# ---------------------------------------------------------------------------
def make_net_forward(params, batch_tile=128):
    assert batch_tile % 8 == 0 and batch_tile > 0, "batch_tile must be a positive multiple of 8"
    w1, b1, w2, b2, fw1, fb1, fw2, fb2 = [np.asarray(p, np.float32) for p in params]

    f2pad = np.zeros((50, 128), np.float32)
    f2pad[:, :10] = fw2.T
    fb2pad = np.full((1, 128), -1e30, np.float32)   # pad lanes -> exp underflows to exactly 0
    fb2pad[0, :10] = fb2

    consts = (
        jnp.asarray(_conv1_pool_band(w1)),               # (168, 512) conv1+pool band
        jnp.asarray(np.tile(b1, 12)[None, :]),           # (1, 120)
        jnp.asarray(_conv_band(w2, 12)),                 # (5, 120, 160) conv2 bands
        jnp.asarray(_pool2_cols()),                      # (160, 256) fused col-pool
        jnp.asarray(np.tile(b2, 4)[None, :]),            # (1, 80)
        jnp.asarray(_fc1_split(fw1)),                    # (4, 80, 50)
        jnp.asarray(fb1[None, :]),                       # (1, 50)
        jnp.asarray(f2pad),                              # (50, 128)
        jnp.asarray(fb2pad),                             # (1, 128)
    )

    def _resident(c):                                    # VMEM-resident across all grid steps
        n = c.ndim
        return pl.BlockSpec(c.shape, lambda t, n=n: (0,) * n)

    base_tb = int(batch_tile)

    @jax.jit
    def forward(x):
        N = x.shape[0]
        # Adaptive tile: multiple of 8, no larger than needed; for large batches this keeps
        # grid length T >= 2 so both v7x TensorCores are used (v5e/v6e have 1 TC).
        tb = min(base_tb, max(8, ((-(-N // 2)) + 7) // 8 * 8))
        assert tb % 8 == 0
        T = -(-N // tb)
        npad = T * tb

        xf = x.reshape(N, 784)                           # pure reshape, no HBM transpose
        if npad != N:
            xf = jnp.pad(xf, ((0, npad - N), (0, 0)))
        xg = xf.reshape(T, tb, 784)                      # lane-dense 3136-byte rows per image

        out = pl.pallas_call(
            _net_kernel,
            out_shape=jax.ShapeDtypeStruct((T, tb, 128), jnp.float32),
            grid=(T,),
            in_specs=[pl.BlockSpec((None, tb, 784), lambda t: (t, 0, 0))]
                     + [_resident(c) for c in consts],
            out_specs=pl.BlockSpec((None, tb, 128), lambda t: (t, 0, 0)),
            compiler_params=pltpu.CompilerParams(
                dimension_semantics=("parallel",),
                vmem_limit_bytes=32 * 1024 * 1024),      # ~10 MB actually used; safe on v7x 64 MiB
        )(xg, *consts)
        return out.reshape(npad, 128)[:N, :10]

    return forward


# ---------------------------------------------------------------------------
# Pure-JAX reference (for correctness check)
# ---------------------------------------------------------------------------
def net_forward_ref(x, params):
    w1, b1, w2, b2, fw1, fb1, fw2, fb2 = params

    def conv(x, w, b):
        y = lax.conv_general_dilated(x, w, (1, 1), 'VALID',
                                     dimension_numbers=('NCHW', 'OIHW', 'NCHW'))
        return y + b[None, :, None, None]

    def pool(y):
        N, C, H, W = y.shape
        return y.reshape(N, C, H // 2, 2, W // 2, 2).max(axis=(3, 5))

    h = jax.nn.relu(pool(conv(x, w1, b1)))
    h = jax.nn.relu(pool(conv(h, w2, b2)))
    flat = h.reshape(x.shape[0], 320)
    h = jax.nn.relu(flat @ fw1.T + fb1)
    logits = h @ fw2.T + fb2
    return jax.nn.log_softmax(logits, axis=1)


# ---------------------------------------------------------------------------
# Deterministic parameter init (PyTorch-default-style uniform, synthetic)
# ---------------------------------------------------------------------------
def init_params(key):
    ks = jax.random.split(key, 8)

    def u(k, shape, fan_in):
        bound = 1.0 / jnp.sqrt(jnp.float32(fan_in))
        return jax.random.uniform(k, shape, jnp.float32, -bound, bound)

    w1 = u(ks[0], (10, 1, 5, 5), 25)
    b1 = u(ks[1], (10,), 25)
    w2 = u(ks[2], (20, 10, 5, 5), 250)
    b2 = u(ks[3], (20,), 250)
    fw1 = u(ks[4], (50, 320), 320)
    fb1 = u(ks[5], (50,), 320)
    fw2 = u(ks[6], (10, 50), 50)
    fb2 = u(ks[7], (10,), 50)
    return (w1, b1, w2, b2, fw1, fb1, fw2, fb2)


if __name__ == "__main__":
    key = jax.random.PRNGKey(0)
    kx, kp = jax.random.split(key)
    # 28x28 spatial is required by the module's hard-coded 320 = 20*4*4 flatten.
    x = jax.random.normal(kx, (2, 1, 28, 28), jnp.float32)
    params = init_params(kp)

    forward = make_net_forward(params, batch_tile=128)
    out = jax.block_until_ready(forward(x))
    ref = net_forward_ref(x, params)

    assert out.shape == (2, 10), out.shape
    err = float(jnp.max(jnp.abs(out - ref)))
    assert jnp.allclose(out, ref, atol=1e-3, rtol=1e-3), err
    print("KERNEL_OK")
</pallas_src>

<mosaic_0001>
module attributes {stable_mosaic.version = 11 : i64} {
  func.func @_net_kernel(%arg0: i32, %arg1: memref<1x8x784xf32, #tpu.memory_space<vmem>>, %arg2: memref<168x512xf32, #tpu.memory_space<vmem>>, %arg3: memref<1x120xf32, #tpu.memory_space<vmem>>, %arg4: memref<5x120x160xf32, #tpu.memory_space<vmem>>, %arg5: memref<160x256xf32, #tpu.memory_space<vmem>>, %arg6: memref<1x80xf32, #tpu.memory_space<vmem>>, %arg7: memref<4x80x50xf32, #tpu.memory_space<vmem>>, %arg8: memref<1x50xf32, #tpu.memory_space<vmem>>, %arg9: memref<50x128xf32, #tpu.memory_space<vmem>>, %arg10: memref<1x128xf32, #tpu.memory_space<vmem>>, %arg11: memref<1x8x128xf32, #tpu.memory_space<vmem>>) attributes {dimension_semantics = [#tpu.dimension_semantics<parallel>], iteration_bounds = array<i64: 1>, scalar_prefetch = 0 : i64, scratch_operands = 0 : i64, tpu.core_type = #tpu.core_type<tc>, window_params = [{transform_indices = @transform_0, window_bounds = array<i64: 1, 8, 784>}, {pipeline_mode = #tpu.pipeline_mode<synchronous>, transform_indices = @transform_1, window_bounds = array<i64: 168, 512>}, {pipeline_mode = #tpu.pipeline_mode<synchronous>, transform_indices = @transform_2, window_bounds = array<i64: 1, 120>}, {pipeline_mode = #tpu.pipeline_mode<synchronous>, transform_indices = @transform_3, window_bounds = array<i64: 5, 120, 160>}, {pipeline_mode = #tpu.pipeline_mode<synchronous>, transform_indices = @transform_4, window_bounds = array<i64: 160, 256>}, {pipeline_mode = #tpu.pipeline_mode<synchronous>, transform_indices = @transform_5, window_bounds = array<i64: 1, 80>}, {pipeline_mode = #tpu.pipeline_mode<synchronous>, transform_indices = @transform_6, window_bounds = array<i64: 4, 80, 50>}, {pipeline_mode = #tpu.pipeline_mode<synchronous>, transform_indices = @transform_7, window_bounds = array<i64: 1, 50>}, {pipeline_mode = #tpu.pipeline_mode<synchronous>, transform_indices = @transform_8, window_bounds = array<i64: 50, 128>}, {pipeline_mode = #tpu.pipeline_mode<synchronous>, transform_indices = @transform_9, window_bounds = array<i64: 1, 128>}, {transform_indices = @transform_10, window_bounds = array<i64: 1, 8, 128>}]} {
    %c0 = arith.constant 0 : index
    %c0_0 = arith.constant 0 : index
    %0 = vector.load %arg2[%c0, %c0_0] : memref<168x512xf32, #tpu.memory_space<vmem>>, vector<168x512xf32>
    %c0_1 = arith.constant 0 : index
    %c0_2 = arith.constant 0 : index
    %c0_3 = arith.constant 0 : index
    %1 = vector.load %arg1[%c0_1, %c0_2, %c0_3] : memref<1x8x784xf32, #tpu.memory_space<vmem>>, vector<1x8x168xf32>
    %2 = vector.shape_cast %1 : vector<1x8x168xf32> to vector<8x168xf32>
    %cst = arith.constant dense<0.000000e+00> : vector<8x512xf32>
    %3 = tpu.matmul %2, %0, %cst {dimension_numbers = #tpu.dot_dimension_numbers<[1], [0], [0], [1], [0, 0, 1, 1], [], []>} : vector<8x168xf32>, vector<168x512xf32>, vector<8x512xf32> -> vector<8x512xf32>
    %4 = vector.extract_strided_slice %3 {offsets = [0, 0], sizes = [8, 120], strides = [1, 1]} : vector<8x512xf32> to vector<8x120xf32>
    %5 = vector.extract_strided_slice %3 {offsets = [0, 128], sizes = [8, 120], strides = [1, 1]} : vector<8x512xf32> to vector<8x120xf32>
    %6 = arith.maximumf %4, %5 : vector<8x120xf32>
    %7 = vector.extract_strided_slice %3 {offsets = [0, 256], sizes = [8, 120], strides = [1, 1]} : vector<8x512xf32> to vector<8x120xf32>
    %8 = vector.extract_strided_slice %3 {offsets = [0, 384], sizes = [8, 120], strides = [1, 1]} : vector<8x512xf32> to vector<8x120xf32>
    %9 = arith.maximumf %7, %8 : vector<8x120xf32>
    %10 = arith.maximumf %6, %9 : vector<8x120xf32>
    %c0_4 = arith.constant 0 : index
    %c0_5 = arith.constant 0 : index
    %c56 = arith.constant 56 : index
    %11 = vector.load %arg1[%c0_4, %c0_5, %c56] : memref<1x8x784xf32, #tpu.memory_space<vmem>>, vector<1x8x168xf32>
    %12 = vector.shape_cast %11 : vector<1x8x168xf32> to vector<8x168xf32>
    %cst_6 = arith.constant dense<0.000000e+00> : vector<8x512xf32>
    %13 = tpu.matmul %12, %0, %cst_6 {dimension_numbers = #tpu.dot_dimension_numbers<[1], [0], [0], [1], [0, 0, 1, 1], [], []>} : vector<8x168xf32>, vector<168x512xf32>, vector<8x512xf32> -> vector<8x512xf32>
    %14 = vector.extract_strided_slice %13 {offsets = [0, 0], sizes = [8, 120], strides = [1, 1]} : vector<8x512xf32> to vector<8x120xf32>
    %15 = vector.extract_strided_slice %13 {offsets = [0, 128], sizes = [8, 120], strides = [1, 1]} : vector<8x512xf32> to vector<8x120xf32>
    %16 = arith.maximumf %14, %15 : vector<8x120xf32>
    %17 = vector.extract_strided_slice %13 {offsets = [0, 256], sizes = [8, 120], strides = [1, 1]} : vector<8x512xf32> to vector<8x120xf32>
    %18 = vector.extract_strided_slice %13 {offsets = [0, 384], sizes = [8, 120], strides = [1, 1]} : vector<8x512xf32> to vector<8x120xf32>
    %19 = arith.maximumf %17, %18 : vector<8x120xf32>
    %20 = arith.maximumf %16, %19 : vector<8x120xf32>
    %c0_7 = arith.constant 0 : index
    %c0_8 = arith.constant 0 : index
    %c112 = arith.constant 112 : index
    %21 = vector.load %arg1[%c0_7, %c0_8, %c112] : memref<1x8x784xf32, #tpu.memory_space<vmem>>, vector<1x8x168xf32>
    %22 = vector.shape_cast %21 : vector<1x8x168xf32> to vector<8x168xf32>
    %cst_9 = arith.constant dense<0.000000e+00> : vector<8x512xf32>
    %23 = tpu.matmul %22, %0, %cst_9 {dimension_numbers = #tpu.dot_dimension_numbers<[1], [0], [0], [1], [0, 0, 1, 1], [], []>} : vector<8x168xf32>, vector<168x512xf32>, vector<8x512xf32> -> vector<8x512xf32>
    %24 = vector.extract_strided_slice %23 {offsets = [0, 0], sizes = [8, 120], strides = [1, 1]} : vector<8x512xf32> to vector<8x120xf32>
    %25 = vector.extract_strided_slice %23 {offsets = [0, 128], sizes = [8, 120], strides = [1, 1]} : vector<8x512xf32> to vector<8x120xf32>
    %26 = arith.maximumf %24, %25 : vector<8x120xf32>
    %27 = vector.extract_strided_slice %23 {offsets = [0, 256], sizes = [8, 120], strides = [1, 1]} : vector<8x512xf32> to vector<8x120xf32>
    %28 = vector.extract_strided_slice %23 {offsets = [0, 384], sizes = [8, 120], strides = [1, 1]} : vector<8x512xf32> to vector<8x120xf32>
    %29 = arith.maximumf %27, %28 : vector<8x120xf32>
    %30 = arith.maximumf %26, %29 : vector<8x120xf32>
    %c0_10 = arith.constant 0 : index
    %c0_11 = arith.constant 0 : index
    %c168 = arith.constant 168 : index
    %31 = vector.load %arg1[%c0_10, %c0_11, %c168] : memref<1x8x784xf32, #tpu.memory_space<vmem>>, vector<1x8x168xf32>
    %32 = vector.shape_cast %31 : vector<1x8x168xf32> to vector<8x168xf32>
    %cst_12 = arith.constant dense<0.000000e+00> : vector<8x512xf32>
    %33 = tpu.matmul %32, %0, %cst_12 {dimension_numbers = #tpu.dot_dimension_numbers<[1], [0], [0], [1], [0, 0, 1, 1], [], []>} : vector<8x168xf32>, vector<168x512xf32>, vector<8x512xf32> -> vector<8x512xf32>
    %34 = vector.extract_strided_slice %33 {offsets = [0, 0], sizes = [8, 120], strides = [1, 1]} : vector<8x512xf32> to vector<8x120xf32>
    %35 = vector.extract_strided_slice %33 {offsets = [0, 128], sizes = [8, 120], strides = [1, 1]} : vector<8x512xf32> to vector<8x120xf32>
    %36 = arith.maximumf %34, %35 : vector<8x120xf32>
    %37 = vector.extract_strided_slice %33 {offsets = [0, 256], sizes = [8, 120], strides = [1, 1]} : vector<8x512xf32> to vector<8x120xf32>
    %38 = vector.extract_strided_slice %33 {offsets = [0, 384], sizes = [8, 120], strides = [1, 1]} : vector<8x512xf32> to vector<8x120xf32>
    %39 = arith.maximumf %37, %38 : vector<8x120xf32>
    %40 = arith.maximumf %36, %39 : vector<8x120xf32>
    %c0_13 = arith.constant 0 : index
    %c0_14 = arith.constant 0 : index
    %c224 = arith.constant 224 : index
    %41 = vector.load %arg1[%c0_13, %c0_14, %c224] : memref<1x8x784xf32, #tpu.memory_space<vmem>>, vector<1x8x168xf32>
    %42 = vector.shape_cast %41 : vector<1x8x168xf32> to vector<8x168xf32>
    %cst_15 = arith.constant dense<0.000000e+00> : vector<8x512xf32>
    %43 = tpu.matmul %42, %0, %cst_15 {dimension_numbers = #tpu.dot_dimension_numbers<[1], [0], [0], [1], [0, 0, 1, 1], [], []>} : vector<8x168xf32>, vector<168x512xf32>, vector<8x512xf32> -> vector<8x512xf32>
    %44 = vector.extract_strided_slice %43 {offsets = [0, 0], sizes = [8, 120], strides = [1, 1]} : vector<8x512xf32> to vector<8x120xf32>
    %45 = vector.extract_strided_slice %43 {offsets = [0, 128], sizes = [8, 120], strides = [1, 1]} : vector<8x512xf32> to vector<8x120xf32>
    %46 = arith.maximumf %44, %45 : vector<8x120xf32>
    %47 = vector.extract_strided_slice %43 {offsets = [0, 256], sizes = [8, 120], strides = [1, 1]} : vector<8x512xf32> to vector<8x120xf32>
    %48 = vector.extract_strided_slice %43 {offsets = [0, 384], sizes = [8, 120], strides = [1, 1]} : vector<8x512xf32> to vector<8x120xf32>
    %49 = arith.maximumf %47, %48 : vector<8x120xf32>
    %50 = arith.maximumf %46, %49 : vector<8x120xf32>
    %c0_16 = arith.constant 0 : index
    %c0_17 = arith.constant 0 : index
    %c280 = arith.constant 280 : index
    %51 = vector.load %arg1[%c0_16, %c0_17, %c280] : memref<1x8x784xf32, #tpu.memory_space<vmem>>, vector<1x8x168xf32>
    %52 = vector.shape_cast %51 : vector<1x8x168xf32> to vector<8x168xf32>
    %cst_18 = arith.constant dense<0.000000e+00> : vector<8x512xf32>
    %53 = tpu.matmul %52, %0, %cst_18 {dimension_numbers = #tpu.dot_dimension_numbers<[1], [0], [0], [1], [0, 0, 1, 1], [], []>} : vector<8x168xf32>, vector<168x512xf32>, vector<8x512xf32> -> vector<8x512xf32>
    %54 = vector.extract_strided_slice %53 {offsets = [0, 0], sizes = [8, 120], strides = [1, 1]} : vector<8x512xf32> to vector<8x120xf32>
    %55 = vector.extract_strided_slice %53 {offsets = [0, 128], sizes = [8, 120], strides = [1, 1]} : vector<8x512xf32> to vector<8x120xf32>
    %56 = arith.maximumf %54, %55 : vector<8x120xf32>
    %57 = vector.extract_strided_slice %53 {offsets = [0, 256], sizes = [8, 120], strides = [1, 1]} : vector<8x512xf32> to vector<8x120xf32>
    %58 = vector.extract_strided_slice %53 {offsets = [0, 384], sizes = [8, 120], strides = [1, 1]} : vector<8x512xf32> to vector<8x120xf32>
    %59 = arith.maximumf %57, %58 : vector<8x120xf32>
    %60 = arith.maximumf %56, %59 : vector<8x120xf32>
    %c0_19 = arith.constant 0 : index
    %c0_20 = arith.constant 0 : index
    %c336 = arith.constant 336 : index
    %61 = vector.load %arg1[%c0_19, %c0_20, %c336] : memref<1x8x784xf32, #tpu.memory_space<vmem>>, vector<1x8x168xf32>
    %62 = vector.shape_cast %61 : vector<1x8x168xf32> to vector<8x168xf32>
    %cst_21 = arith.constant dense<0.000000e+00> : vector<8x512xf32>
    %63 = tpu.matmul %62, %0, %cst_21 {dimension_numbers = #tpu.dot_dimension_numbers<[1], [0], [0], [1], [0, 0, 1, 1], [], []>} : vector<8x168xf32>, vector<168x512xf32>, vector<8x512xf32> -> vector<8x512xf32>
    %64 = vector.extract_strided_slice %63 {offsets = [0, 0], sizes = [8, 120], strides = [1, 1]} : vector<8x512xf32> to vector<8x120xf32>
    %65 = vector.extract_strided_slice %63 {offsets = [0, 128], sizes = [8, 120], strides = [1, 1]} : vector<8x512xf32> to vector<8x120xf32>
    %66 = arith.maximumf %64, %65 : vector<8x120xf32>
    %67 = vector.extract_strided_slice %63 {offsets = [0, 256], sizes = [8, 120], strides = [1, 1]} : vector<8x512xf32> to vector<8x120xf32>
    %68 = vector.extract_strided_slice %63 {offsets = [0, 384], sizes = [8, 120], strides = [1, 1]} : vector<8x512xf32> to vector<8x120xf32>
    %69 = arith.maximumf %67, %68 : vector<8x120xf32>
    %70 = arith.maximumf %66, %69 : vector<8x120xf32>
    %c0_22 = arith.constant 0 : index
    %c0_23 = arith.constant 0 : index
    %c392 = arith.constant 392 : index
    %71 = vector.load %arg1[%c0_22, %c0_23, %c392] : memref<1x8x784xf32, #tpu.memory_space<vmem>>, vector<1x8x168xf32>
    %72 = vector.shape_cast %71 : vector<1x8x168xf32> to vector<8x168xf32>
    %cst_24 = arith.constant dense<0.000000e+00> : vector<8x512xf32>
    %73 = tpu.matmul %72, %0, %cst_24 {dimension_numbers = #tpu.dot_dimension_numbers<[1], [0], [0], [1], [0, 0, 1, 1], [], []>} : vector<8x168xf32>, vector<168x512xf32>, vector<8x512xf32> -> vector<8x512xf32>
    %74 = vector.extract_strided_slice %73 {offsets = [0, 0], sizes = [8, 120], strides = [1, 1]} : vector<8x512xf32> to vector<8x120xf32>
    %75 = vector.extract_strided_slice %73 {offsets = [0, 128], sizes = [8, 120], strides = [1, 1]} : vector<8x512xf32> to vector<8x120xf32>
    %76 = arith.maximumf %74, %75 : vector<8x120xf32>
    %77 = vector.extract_strided_slice %73 {offsets = [0, 256], sizes = [8, 120], strides = [1, 1]} : vector<8x512xf32> to vector<8x120xf32>
    %78 = vector.extract_strided_slice %73 {offsets = [0, 384], sizes = [8, 120], strides = [1, 1]} : vector<8x512xf32> to vector<8x120xf32>
    %79 = arith.maximumf %77, %78 : vector<8x120xf32>
    %80 = arith.maximumf %76, %79 : vector<8x120xf32>
    %c0_25 = arith.constant 0 : index
    %c0_26 = arith.constant 0 : index
    %c448 = arith.constant 448 : index
    %81 = vector.load %arg1[%c0_25, %c0_26, %c448] : memref<1x8x784xf32, #tpu.memory_space<vmem>>, vector<1x8x168xf32>
    %82 = vector.shape_cast %81 : vector<1x8x168xf32> to vector<8x168xf32>
    %cst_27 = arith.constant dense<0.000000e+00> : vector<8x512xf32>
    %83 = tpu.matmul %82, %0, %cst_27 {dimension_numbers = #tpu.dot_dimension_numbers<[1], [0], [0], [1], [0, 0, 1, 1], [], []>} : vector<8x168xf32>, vector<168x512xf32>, vector<8x512xf32> -> vector<8x512xf32>
    %84 = vector.extract_strided_slice %83 {offsets = [0, 0], sizes = [8, 120], strides = [1, 1]} : vector<8x512xf32> to vector<8x120xf32>
    %85 = vector.extract_strided_slice %83 {offsets = [0, 128], sizes = [8, 120], strides = [1, 1]} : vector<8x512xf32> to vector<8x120xf32>
    %86 = arith.maximumf %84, %85 : vector<8x120xf32>
    %87 = vector.extract_strided_slice %83 {offsets = [0, 256], sizes = [8, 120], strides = [1, 1]} : vector<8x512xf32> to vector<8x120xf32>
    %88 = vector.extract_strided_slice %83 {offsets = [0, 384], sizes = [8, 120], strides = [1, 1]} : vector<8x512xf32> to vector<8x120xf32>
    %89 = arith.maximumf %87, %88 : vector<8x120xf32>
    %90 = arith.maximumf %86, %89 : vector<8x120xf32>
    %c0_28 = arith.constant 0 : index
    %c0_29 = arith.constant 0 : index
    %c504 = arith.constant 504 : index
    %91 = vector.load %arg1[%c0_28, %c0_29, %c504] : memref<1x8x784xf32, #tpu.memory_space<vmem>>, vector<1x8x168xf32>
    %92 = vector.shape_cast %91 : vector<1x8x168xf32> to vector<8x168xf32>
    %cst_30 = arith.constant dense<0.000000e+00> : vector<8x512xf32>
    %93 = tpu.matmul %92, %0, %cst_30 {dimension_numbers = #tpu.dot_dimension_numbers<[1], [0], [0], [1], [0, 0, 1, 1], [], []>} : vector<8x168xf32>, vector<168x512xf32>, vector<8x512xf32> -> vector<8x512xf32>
    %94 = vector.extract_strided_slice %93 {offsets = [0, 0], sizes = [8, 120], strides = [1, 1]} : vector<8x512xf32> to vector<8x120xf32>
    %95 = vector.extract_strided_slice %93 {offsets = [0, 128], sizes = [8, 120], strides = [1, 1]} : vector<8x512xf32> to vector<8x120xf32>
    %96 = arith.maximumf %94, %95 : vector<8x120xf32>
    %97 = vector.extract_strided_slice %93 {offsets = [0, 256], sizes = [8, 120], strides = [1, 1]} : vector<8x512xf32> to vector<8x120xf32>
    %98 = vector.extract_strided_slice %93 {offsets = [0, 384], sizes = [8, 120], strides = [1, 1]} : vector<8x512xf32> to vector<8x120xf32>
    %99 = arith.maximumf %97, %98 : vector<8x120xf32>
    %100 = arith.maximumf %96, %99 : vector<8x120xf32>
    %c0_31 = arith.constant 0 : index
    %c0_32 = arith.constant 0 : index
    %c560 = arith.constant 560 : index
    %101 = vector.load %arg1[%c0_31, %c0_32, %c560] : memref<1x8x784xf32, #tpu.memory_space<vmem>>, vector<1x8x168xf32>
    %102 = vector.shape_cast %101 : vector<1x8x168xf32> to vector<8x168xf32>
    %cst_33 = arith.constant dense<0.000000e+00> : vector<8x512xf32>
    %103 = tpu.matmul %102, %0, %cst_33 {dimension_numbers = #tpu.dot_dimension_numbers<[1], [0], [0], [1], [0, 0, 1, 1], [], []>} : vector<8x168xf32>, vector<168x512xf32>, vector<8x512xf32> -> vector<8x512xf32>
    %104 = vector.extract_strided_slice %103 {offsets = [0, 0], sizes = [8, 120], strides = [1, 1]} : vector<8x512xf32> to vector<8x120xf32>
    %105 = vector.extract_strided_slice %103 {offsets = [0, 128], sizes = [8, 120], strides = [1, 1]} : vector<8x512xf32> to vector<8x120xf32>
    %106 = arith.maximumf %104, %105 : vector<8x120xf32>
    %107 = vector.extract_strided_slice %103 {offsets = [0, 256], sizes = [8, 120], strides = [1, 1]} : vector<8x512xf32> to vector<8x120xf32>
    %108 = vector.extract_strided_slice %103 {offsets = [0, 384], sizes = [8, 120], strides = [1, 1]} : vector<8x512xf32> to vector<8x120xf32>
    %109 = arith.maximumf %107, %108 : vector<8x120xf32>
    %110 = arith.maximumf %106, %109 : vector<8x120xf32>
    %c0_34 = arith.constant 0 : index
    %c0_35 = arith.constant 0 : index
    %c616 = arith.constant 616 : index
    %111 = vector.load %arg1[%c0_34, %c0_35, %c616] : memref<1x8x784xf32, #tpu.memory_space<vmem>>, vector<1x8x168xf32>
    %112 = vector.shape_cast %111 : vector<1x8x168xf32> to vector<8x168xf32>
    %cst_36 = arith.constant dense<0.000000e+00> : vector<8x512xf32>
    %113 = tpu.matmul %112, %0, %cst_36 {dimension_numbers = #tpu.dot_dimension_numbers<[1], [0], [0], [1], [0, 0, 1, 1], [], []>} : vector<8x168xf32>, vector<168x512xf32>, vector<8x512xf32> -> vector<8x512xf32>
    %114 = vector.extract_strided_slice %113 {offsets = [0, 0], sizes = [8, 120], strides = [1, 1]} : vector<8x512xf32> to vector<8x120xf32>
    %115 = vector.extract_strided_slice %113 {offsets = [0, 128], sizes = [8, 120], strides = [1, 1]} : vector<8x512xf32> to vector<8x120xf32>
    %116 = arith.maximumf %114, %115 : vector<8x120xf32>
    %117 = vector.extract_strided_slice %113 {offsets = [0, 256], sizes = [8, 120], strides = [1, 1]} : vector<8x512xf32> to vector<8x120xf32>
    %118 = vector.extract_strided_slice %113 {offsets = [0, 384], sizes = [8, 120], strides = [1, 1]} : vector<8x512xf32> to vector<8x120xf32>
    %119 = arith.maximumf %117, %118 : vector<8x120xf32>
    %120 = arith.maximumf %116, %119 : vector<8x120xf32>
    %121 = tpu.concatenate %10, %20, %30, %40, %50, %60, %70, %80, %90, %100, %110, %120 in 0 : vector<8x120xf32>, vector<8x120xf32>, vector<8x120xf32>, vector<8x120xf32>, vector<8x120xf32>, vector<8x120xf32>, vector<8x120xf32>, vector<8x120xf32>, vector<8x120xf32>, vector<8x120xf32>, vector<8x120xf32>, vector<8x120xf32> -> vector<96x120xf32>
    %c0_37 = arith.constant 0 : index
    %c0_38 = arith.constant 0 : index
    %122 = vector.load %arg3[%c0_37, %c0_38] : memref<1x120xf32, #tpu.memory_space<vmem>>, vector<1x120xf32>
    %123 = vector.broadcast %122 : vector<1x120xf32> to vector<96x120xf32>
    %124 = arith.addf %121, %123 : vector<96x120xf32>
    %cst_39 = arith.constant 0.000000e+00 : f32
    %125 = vector.broadcast %cst_39 : f32 to vector<96x120xf32>
    %126 = arith.maximumf %124, %125 : vector<96x120xf32>
    %127 = vector.extract_strided_slice %126 {offsets = [0, 0], sizes = [64, 120], strides = [1, 1]} : vector<96x120xf32> to vector<64x120xf32>
    %c0_40 = arith.constant 0 : index
    %c0_41 = arith.constant 0 : index
    %c0_42 = arith.constant 0 : index
    %128 = vector.load %arg4[%c0_40, %c0_41, %c0_42] : memref<5x120x160xf32, #tpu.memory_space<vmem>>, vector<1x120x160xf32>
    %129 = vector.shape_cast %128 : vector<1x120x160xf32> to vector<120x160xf32>
    %cst_43 = arith.constant dense<0.000000e+00> : vector<64x160xf32>
    %130 = tpu.matmul %127, %129, %cst_43 {dimension_numbers = #tpu.dot_dimension_numbers<[1], [0], [0], [1], [0, 0, 1, 1], [], []>} : vector<64x120xf32>, vector<120x160xf32>, vector<64x160xf32> -> vector<64x160xf32>
    %131 = vector.extract_strided_slice %126 {offsets = [8, 0], sizes = [64, 120], strides = [1, 1]} : vector<96x120xf32> to vector<64x120xf32>
    %c1 = arith.constant 1 : index
    %c0_44 = arith.constant 0 : index
    %c0_45 = arith.constant 0 : index
    %132 = vector.load %arg4[%c1, %c0_44, %c0_45] : memref<5x120x160xf32, #tpu.memory_space<vmem>>, vector<1x120x160xf32>
    %133 = vector.shape_cast %132 : vector<1x120x160xf32> to vector<120x160xf32>
    %cst_46 = arith.constant dense<0.000000e+00> : vector<64x160xf32>
    %134 = tpu.matmul %131, %133, %cst_46 {dimension_numbers = #tpu.dot_dimension_numbers<[1], [0], [0], [1], [0, 0, 1, 1], [], []>} : vector<64x120xf32>, vector<120x160xf32>, vector<64x160xf32> -> vector<64x160xf32>
    %135 = arith.addf %130, %134 : vector<64x160xf32>
    %136 = vector.extract_strided_slice %126 {offsets = [16, 0], sizes = [64, 120], strides = [1, 1]} : vector<96x120xf32> to vector<64x120xf32>
    %c2 = arith.constant 2 : index
    %c0_47 = arith.constant 0 : index
    %c0_48 = arith.constant 0 : index
    %137 = vector.load %arg4[%c2, %c0_47, %c0_48] : memref<5x120x160xf32, #tpu.memory_space<vmem>>, vector<1x120x160xf32>
    %138 = vector.shape_cast %137 : vector<1x120x160xf32> to vector<120x160xf32>
    %cst_49 = arith.constant dense<0.000000e+00> : vector<64x160xf32>
    %139 = tpu.matmul %136, %138, %cst_49 {dimension_numbers = #tpu.dot_dimension_numbers<[1], [0], [0], [1], [0, 0, 1, 1], [], []>} : vector<64x120xf32>, vector<120x160xf32>, vector<64x160xf32> -> vector<64x160xf32>
    %140 = arith.addf %135, %139 : vector<64x160xf32>
    %141 = vector.extract_strided_slice %126 {offsets = [24, 0], sizes = [64, 120], strides = [1, 1]} : vector<96x120xf32> to vector<64x120xf32>
    %c3 = arith.constant 3 : index
    %c0_50 = arith.constant 0 : index
    %c0_51 = arith.constant 0 : index
    %142 = vector.load %arg4[%c3, %c0_50, %c0_51] : memref<5x120x160xf32, #tpu.memory_space<vmem>>, vector<1x120x160xf32>
    %143 = vector.shape_cast %142 : vector<1x120x160xf32> to vector<120x160xf32>
    %cst_52 = arith.constant dense<0.000000e+00> : vector<64x160xf32>
    %144 = tpu.matmul %141, %143, %cst_52 {dimension_numbers = #tpu.dot_dimension_numbers<[1], [0], [0], [1], [0, 0, 1, 1], [], []>} : vector<64x120xf32>, vector<120x160xf32>, vector<64x160xf32> -> vector<64x160xf32>
    %145 = arith.addf %140, %144 : vector<64x160xf32>
    %146 = vector.extract_strided_slice %126 {offsets = [32, 0], sizes = [64, 120], strides = [1, 1]} : vector<96x120xf32> to vector<64x120xf32>
    %c4 = arith.constant 4 : index
    %c0_53 = arith.constant 0 : index
    %c0_54 = arith.constant 0 : index
    %147 = vector.load %arg4[%c4, %c0_53, %c0_54] : memref<5x120x160xf32, #tpu.memory_space<vmem>>, vector<1x120x160xf32>
    %148 = vector.shape_cast %147 : vector<1x120x160xf32> to vector<120x160xf32>
    %cst_55 = arith.constant dense<0.000000e+00> : vector<64x160xf32>
    %149 = tpu.matmul %146, %148, %cst_55 {dimension_numbers = #tpu.dot_dimension_numbers<[1], [0], [0], [1], [0, 0, 1, 1], [], []>} : vector<64x120xf32>, vector<120x160xf32>, vector<64x160xf32> -> vector<64x160xf32>
    %150 = arith.addf %145, %149 : vector<64x160xf32>
    %151 = vector.extract_strided_slice %150 {offsets = [0, 0], sizes = [8, 160], strides = [1, 1]} : vector<64x160xf32> to vector<8x160xf32>
    %152 = vector.extract_strided_slice %150 {offsets = [8, 0], sizes = [8, 160], strides = [1, 1]} : vector<64x160xf32> to vector<8x160xf32>
    %153 = arith.maximumf %151, %152 : vector<8x160xf32>
    %154 = vector.extract_strided_slice %150 {offsets = [16, 0], sizes = [8, 160], strides = [1, 1]} : vector<64x160xf32> to vector<8x160xf32>
    %155 = vector.extract_strided_slice %150 {offsets = [24, 0], sizes = [8, 160], strides = [1, 1]} : vector<64x160xf32> to vector<8x160xf32>
    %156 = arith.maximumf %154, %155 : vector<8x160xf32>
    %157 = vector.extract_strided_slice %150 {offsets = [32, 0], sizes = [8, 160], strides = [1, 1]} : vector<64x160xf32> to vector<8x160xf32>
    %158 = vector.extract_strided_slice %150 {offsets = [40, 0], sizes = [8, 160], strides = [1, 1]} : vector<64x160xf32> to vector<8x160xf32>
    %159 = arith.maximumf %157, %158 : vector<8x160xf32>
    %160 = vector.extract_strided_slice %150 {offsets = [48, 0], sizes = [8, 160], strides = [1, 1]} : vector<64x160xf32> to vector<8x160xf32>
    %161 = vector.extract_strided_slice %150 {offsets = [56, 0], sizes = [8, 160], strides = [1, 1]} : vector<64x160xf32> to vector<8x160xf32>
    %162 = arith.maximumf %160, %161 : vector<8x160xf32>
    %163 = tpu.concatenate %153, %156, %159, %162 in 0 : vector<8x160xf32>, vector<8x160xf32>, vector<8x160xf32>, vector<8x160xf32> -> vector<32x160xf32>
    %c0_56 = arith.constant 0 : index
    %c0_57 = arith.constant 0 : index
    %164 = vector.load %arg5[%c0_56, %c0_57] : memref<160x256xf32, #tpu.memory_space<vmem>>, vector<160x256xf32>
    %cst_58 = arith.constant dense<0.000000e+00> : vector<32x256xf32>
    %165 = tpu.matmul %163, %164, %cst_58 {dimension_numbers = #tpu.dot_dimension_numbers<[1], [0], [0], [1], [0, 0, 1, 1], [], []>} : vector<32x160xf32>, vector<160x256xf32>, vector<32x256xf32> -> vector<32x256xf32>
    %166 = vector.extract_strided_slice %165 {offsets = [0, 0], sizes = [32, 80], strides = [1, 1]} : vector<32x256xf32> to vector<32x80xf32>
    %167 = vector.extract_strided_slice %165 {offsets = [0, 128], sizes = [32, 80], strides = [1, 1]} : vector<32x256xf32> to vector<32x80xf32>
    %168 = arith.maximumf %166, %167 : vector<32x80xf32>
    %c0_59 = arith.constant 0 : index
    %c0_60 = arith.constant 0 : index
    %169 = vector.load %arg6[%c0_59, %c0_60] : memref<1x80xf32, #tpu.memory_space<vmem>>, vector<1x80xf32>
    %170 = vector.broadcast %169 : vector<1x80xf32> to vector<32x80xf32>
    %171 = arith.addf %168, %170 : vector<32x80xf32>
    %cst_61 = arith.constant 0.000000e+00 : f32
    %172 = vector.broadcast %cst_61 : f32 to vector<32x80xf32>
    %173 = arith.maximumf %171, %172 : vector<32x80xf32>
    %174 = vector.extract_strided_slice %173 {offsets = [0, 0], sizes = [8, 80], strides = [1, 1]} : vector<32x80xf32> to vector<8x80xf32>
    %c0_62 = arith.constant 0 : index
    %c0_63 = arith.constant 0 : index
    %c0_64 = arith.constant 0 : index
    %175 = vector.load %arg7[%c0_62, %c0_63, %c0_64] : memref<4x80x50xf32, #tpu.memory_space<vmem>>, vector<1x80x50xf32>
    %176 = vector.shape_cast %175 : vector<1x80x50xf32> to vector<80x50xf32>
    %cst_65 = arith.constant dense<0.000000e+00> : vector<8x50xf32>
    %177 = tpu.matmul %174, %176, %cst_65 {dimension_numbers = #tpu.dot_dimension_numbers<[1], [0], [0], [1], [0, 0, 1, 1], [], []>} : vector<8x80xf32>, vector<80x50xf32>, vector<8x50xf32> -> vector<8x50xf32>
    %178 = vector.extract_strided_slice %173 {offsets = [8, 0], sizes = [8, 80], strides = [1, 1]} : vector<32x80xf32> to vector<8x80xf32>
    %c1_66 = arith.constant 1 : index
    %c0_67 = arith.constant 0 : index
    %c0_68 = arith.constant 0 : index
    %179 = vector.load %arg7[%c1_66, %c0_67, %c0_68] : memref<4x80x50xf32, #tpu.memory_space<vmem>>, vector<1x80x50xf32>
    %180 = vector.shape_cast %179 : vector<1x80x50xf32> to vector<80x50xf32>
    %cst_69 = arith.constant dense<0.000000e+00> : vector<8x50xf32>
    %181 = tpu.matmul %178, %180, %cst_69 {dimension_numbers = #tpu.dot_dimension_numbers<[1], [0], [0], [1], [0, 0, 1, 1], [], []>} : vector<8x80xf32>, vector<80x50xf32>, vector<8x50xf32> -> vector<8x50xf32>
    %182 = arith.addf %177, %181 : vector<8x50xf32>
    %183 = vector.extract_strided_slice %173 {offsets = [16, 0], sizes = [8, 80], strides = [1, 1]} : vector<32x80xf32> to vector<8x80xf32>
    %c2_70 = arith.constant 2 : index
    %c0_71 = arith.constant 0 : index
    %c0_72 = arith.constant 0 : index
    %184 = vector.load %arg7[%c2_70, %c0_71, %c0_72] : memref<4x80x50xf32, #tpu.memory_space<vmem>>, vector<1x80x50xf32>
    %185 = vector.shape_cast %184 : vector<1x80x50xf32> to vector<80x50xf32>
    %cst_73 = arith.constant dense<0.000000e+00> : vector<8x50xf32>
    %186 = tpu.matmul %183, %185, %cst_73 {dimension_numbers = #tpu.dot_dimension_numbers<[1], [0], [0], [1], [0, 0, 1, 1], [], []>} : vector<8x80xf32>, vector<80x50xf32>, vector<8x50xf32> -> vector<8x50xf32>
    %187 = arith.addf %182, %186 : vector<8x50xf32>
    %188 = vector.extract_strided_slice %173 {offsets = [24, 0], sizes = [8, 80], strides = [1, 1]} : vector<32x80xf32> to vector<8x80xf32>
    %c3_74 = arith.constant 3 : index
    %c0_75 = arith.constant 0 : index
    %c0_76 = arith.constant 0 : index
    %189 = vector.load %arg7[%c3_74, %c0_75, %c0_76] : memref<4x80x50xf32, #tpu.memory_space<vmem>>, vector<1x80x50xf32>
    %190 = vector.shape_cast %189 : vector<1x80x50xf32> to vector<80x50xf32>
    %cst_77 = arith.constant dense<0.000000e+00> : vector<8x50xf32>
    %191 = tpu.matmul %188, %190, %cst_77 {dimension_numbers = #tpu.dot_dimension_numbers<[1], [0], [0], [1], [0, 0, 1, 1], [], []>} : vector<8x80xf32>, vector<80x50xf32>, vector<8x50xf32> -> vector<8x50xf32>
    %192 = arith.addf %187, %191 : vector<8x50xf32>
    %c0_78 = arith.constant 0 : index
    %c0_79 = arith.constant 0 : index
    %193 = vector.load %arg8[%c0_78, %c0_79] : memref<1x50xf32, #tpu.memory_space<vmem>>, vector<1x50xf32>
    %194 = vector.broadcast %193 : vector<1x50xf32> to vector<8x50xf32>
    %195 = arith.addf %192, %194 : vector<8x50xf32>
    %cst_80 = arith.constant 0.000000e+00 : f32
    %196 = vector.broadcast %cst_80 : f32 to vector<8x50xf32>
    %197 = arith.maximumf %195, %196 : vector<8x50xf32>
    %c0_81 = arith.constant 0 : index
    %c0_82 = arith.constant 0 : index
    %198 = vector.load %arg9[%c0_81, %c0_82] : memref<50x128xf32, #tpu.memory_space<vmem>>, vector<50x128xf32>
    %cst_83 = arith.constant dense<0.000000e+00> : vector<8x128xf32>
    %199 = tpu.matmul %197, %198, %cst_83 {dimension_numbers = #tpu.dot_dimension_numbers<[1], [0], [0], [1], [0, 0, 1, 1], [], []>} : vector<8x50xf32>, vector<50x128xf32>, vector<8x128xf32> -> vector<8x128xf32>
    %c0_84 = arith.constant 0 : index
    %c0_85 = arith.constant 0 : index
    %200 = vector.load %arg10[%c0_84, %c0_85] : memref<1x128xf32, #tpu.memory_space<vmem>>, vector<1x128xf32>
    %201 = vector.broadcast %200 : vector<1x128xf32> to vector<8x128xf32>
    %202 = arith.addf %199, %201 : vector<8x128xf32>
    %cst_86 = arith.constant dense<0xFF800000> : vector<8xf32>
    %203 = vector.multi_reduction <maximumf>, %202, %cst_86 [1] : vector<8x128xf32> to vector<8xf32>
    %204 = vector.shape_cast %203 : vector<8xf32> to vector<8x1xf32>
    %205 = vector.broadcast %204 : vector<8x1xf32> to vector<8x128xf32>
    %206 = arith.subf %202, %205 : vector<8x128xf32>
    %207 = math.exp %206 : vector<8x128xf32>
    %cst_87 = arith.constant dense<0.000000e+00> : vector<8xf32>
    %208 = vector.multi_reduction <add>, %207, %cst_87 [1] : vector<8x128xf32> to vector<8xf32>
    %209 = vector.shape_cast %208 : vector<8xf32> to vector<8x1xf32>
    %210 = math.log %209 : vector<8x1xf32>
    %211 = vector.broadcast %210 : vector<8x1xf32> to vector<8x128xf32>
    %212 = arith.subf %206, %211 : vector<8x128xf32>
    %c0_88 = arith.constant 0 : index
    %c0_89 = arith.constant 0 : index
    %c0_90 = arith.constant 0 : index
    %213 = vector.load %arg11[%c0_88, %c0_89, %c0_90] : memref<1x8x128xf32, #tpu.memory_space<vmem>>, vector<1x8x128xf32>
    %214 = vector.shape_cast %213 : vector<1x8x128xf32> to vector<8x128xf32>
    %215 = vector.shape_cast %212 : vector<8x128xf32> to vector<1x8x128xf32>
    tpu.vector_store %arg11[%c0_88, %c0_89, %c0_90], %215 {strides = array<i32>} : memref<1x8x128xf32, #tpu.memory_space<vmem>>, vector<1x8x128xf32>,
    return
  }
  func.func @transform_0(%arg0: i32) -> (i32, i32, i32) {
    %c0_i32 = arith.constant 0 : i32
    %c0_i32_0 = arith.constant 0 : i32
    %c0_i32_1 = arith.constant 0 : i32
    return %arg0, %c0_i32, %c0_i32_0 : i32, i32, i32
  }
  func.func @transform_1(%arg0: i32) -> (i32, i32) {
    %c0_i32 = arith.constant 0 : i32
    %c0_i32_0 = arith.constant 0 : i32
    %c0_i32_1 = arith.constant 0 : i32
    return %c0_i32, %c0_i32_0 : i32, i32
  }
  func.func @transform_2(%arg0: i32) -> (i32, i32) {
    %c0_i32 = arith.constant 0 : i32
    %c0_i32_0 = arith.constant 0 : i32
    %c0_i32_1 = arith.constant 0 : i32
    return %c0_i32, %c0_i32_0 : i32, i32
  }
  func.func @transform_3(%arg0: i32) -> (i32, i32, i32) {
    %c0_i32 = arith.constant 0 : i32
    %c0_i32_0 = arith.constant 0 : i32
    %c0_i32_1 = arith.constant 0 : i32
    %c0_i32_2 = arith.constant 0 : i32
    return %c0_i32, %c0_i32_0, %c0_i32_1 : i32, i32, i32
  }
  func.func @transform_4(%arg0: i32) -> (i32, i32) {
    %c0_i32 = arith.constant 0 : i32
    %c0_i32_0 = arith.constant 0 : i32
    %c0_i32_1 = arith.constant 0 : i32
    return %c0_i32, %c0_i32_0 : i32, i32
  }
  func.func @transform_5(%arg0: i32) -> (i32, i32) {
    %c0_i32 = arith.constant 0 : i32
    %c0_i32_0 = arith.constant 0 : i32
    %c0_i32_1 = arith.constant 0 : i32
    return %c0_i32, %c0_i32_0 : i32, i32
  }
  func.func @transform_6(%arg0: i32) -> (i32, i32, i32) {
    %c0_i32 = arith.constant 0 : i32
    %c0_i32_0 = arith.constant 0 : i32
    %c0_i32_1 = arith.constant 0 : i32
    %c0_i32_2 = arith.constant 0 : i32
    return %c0_i32, %c0_i32_0, %c0_i32_1 : i32, i32, i32
  }
  func.func @transform_7(%arg0: i32) -> (i32, i32) {
    %c0_i32 = arith.constant 0 : i32
    %c0_i32_0 = arith.constant 0 : i32
    %c0_i32_1 = arith.constant 0 : i32
    return %c0_i32, %c0_i32_0 : i32, i32
  }
  func.func @transform_8(%arg0: i32) -> (i32, i32) {
    %c0_i32 = arith.constant 0 : i32
    %c0_i32_0 = arith.constant 0 : i32
    %c0_i32_1 = arith.constant 0 : i32
    return %c0_i32, %c0_i32_0 : i32, i32
  }
  func.func @transform_9(%arg0: i32) -> (i32, i32) {
    %c0_i32 = arith.constant 0 : i32
    %c0_i32_0 = arith.constant 0 : i32
    %c0_i32_1 = arith.constant 0 : i32
    return %c0_i32, %c0_i32_0 : i32, i32
  }
  func.func @transform_10(%arg0: i32) -> (i32, i32, i32) {
    %c0_i32 = arith.constant 0 : i32
    %c0_i32_0 = arith.constant 0 : i32
    %c0_i32_1 = arith.constant 0 : i32
    return %arg0, %c0_i32, %c0_i32_0 : i32, i32, i32
  }
}

</mosaic_0001>

<llo_original>
// kernel: forward.1
$region0: #{forward.1}
  #allocation0 [shape = 'u32[]', space=smem, size = 0x4, offset = 0x4, fixed_abs, tag = 'smem constant byte address 0x4 - core index']
  #allocation1 [shape = 'u32[72,128]{1,0:T(1,128)}', space=vmem, size = 0x9000, scoped, tag = 'internal scratch']
  %s0 = inlined_call_operand.vmem [shape: f32[1,8,784], index: 0, kind: input, shape index: {}]
  %s1 = inlined_call_operand.hbm [shape: f32[168,512], index: 1, kind: input, shape index: {}]
  %s2 = inlined_call_operand.vmem [shape: f32[1,120], index: 2, kind: input, shape index: {}]
  %s3 = inlined_call_operand.hbm [shape: f32[5,120,160], index: 3, kind: input, shape index: {}]
  %s4 = inlined_call_operand.hbm [shape: f32[160,256], index: 4, kind: input, shape index: {}]
  %s5 = inlined_call_operand.vmem [shape: f32[1,80], index: 5, kind: input, shape index: {}]
  %s6 = inlined_call_operand.hbm [shape: f32[4,80,50], index: 6, kind: input, shape index: {}]
  %s7 = inlined_call_operand.vmem [shape: f32[1,50], index: 7, kind: input, shape index: {}]
  %s8 = inlined_call_operand.vmem [shape: f32[50,128], index: 8, kind: input, shape index: {}]
  %s9 = inlined_call_operand.vmem [shape: f32[1,128], index: 9, kind: input, shape index: {}]
  %s10 = inlined_call_operand.vmem [shape: f32[1,8,128], index: 10, kind: output, shape index: {}]
  %s11 = sld [smem:[#allocation0]]
  $region66: #{forward.1} parent=0
    _
  %s13 = ssub.s32 1, %s11
  %s14 = scalar_select 0, %s13, %s11
  $region1: #{forward.1} parent=0
    #allocation2 [shape = 'u8[344064]{0}', space=vmem, size = 0x54000, scoped, tag = 'input window, operand 1, single buffered']
    #allocation3 [shape = 's32[1]{0}', space=sflag, size = 0x4, scoped, tag = 'scoped memory for forward.1']
    #allocation4 [shape = 'u8[614400]{0}', space=vmem, size = 0x96000, scoped, tag = 'input window, operand 3, single buffered']
    #allocation5 [shape = 's32[1]{0}', space=sflag, size = 0x4, scoped, tag = 'scoped memory for forward.1']
    #allocation6 [shape = 'u8[163840]{0}', space=vmem, size = 0x28000, scoped, tag = 'input window, operand 4, single buffered']
    #allocation7 [shape = 'u8[163840]{0}', space=vmem, size = 0x28000, scoped, tag = 'input window, operand 6, single buffered']
    #allocation8 [shape = 's32[1]{0}', space=sflag, size = 0x4, scoped, tag = 'scoped memory for forward.1']
    %15 = vsyncpa [#allocation3], 0
    %16 = vsyncpa [#allocation5], 0
    %17 = vsyncpa [#allocation8], 0
    // Predicated region
    $region2: #{forward.1} parent=1 // pred_check
      _
    $region3: #{forward.1} parent=1 // pred_check_branch
      %19 = sbr.rel (0) target = $region5
    $region4: #{forward.1} parent=1 // pred_region
      _
    $region5: #{forward.1} parent=1 // pred_fallthru
      _
    // Predicated region
    $region6: #{forward.1} parent=1 // pred_check
      _
    $region7: #{forward.1} parent=1 // pred_check_branch
      %21 = sbr.rel (0) target = $region9
    $region8: #{forward.1} parent=1 // pred_region
      %23 = vsyncadd [#allocation3], 0
      %s24 = sshll.u32 %s1, 4
      %s25 = int_to_ptr.hbm [resolvable:$true] %s24
      %s26 = sshll.u32 [#allocation2], 4
      %s27 = int_to_ptr.vmem [resolvable:$true] %s26
      %32 = dma.hbm_to_vmem [thread:$0]  %s25, 10752, %s27, [#allocation3], 512, 512, 32
    $region9: #{forward.1} parent=1 // pred_fallthru
      _
    // Predicated region
    $region10: #{forward.1} parent=1 // pred_check
      _
    $region11: #{forward.1} parent=1 // pred_check_branch
      %34 = sbr.rel (0) target = $region13
    $region12: #{forward.1} parent=1 // pred_region
      _
    $region13: #{forward.1} parent=1 // pred_fallthru
      _
    // Predicated region
    $region14: #{forward.1} parent=1 // pred_check
      _
    $region15: #{forward.1} parent=1 // pred_check_branch
      %36 = sbr.rel (0) target = $region17
    $region16: #{forward.1} parent=1 // pred_region
      %38 = vsyncadd [#allocation5], 0
      %s39 = sshll.u32 %s3, 4
      %s40 = int_to_ptr.hbm [resolvable:$true] %s39
      %s41 = sshll.u32 [#allocation4], 4
      %s42 = int_to_ptr.vmem [resolvable:$true] %s41
      %47 = dma.hbm_to_vmem [thread:$0]  %s40, 19200, %s42, [#allocation5], 256, 256, 16
    $region17: #{forward.1} parent=1 // pred_fallthru
      _
    // Predicated region
    $region18: #{forward.1} parent=1 // pred_check
      _
    $region19: #{forward.1} parent=1 // pred_check_branch
      %49 = sbr.rel (0) target = $region21
    $region20: #{forward.1} parent=1 // pred_region
      %51 = vsyncadd [#allocation5], 0
      %s52 = sshll.u32 %s4, 4
      %s53 = int_to_ptr.hbm [resolvable:$true] %s52
      %s54 = sshll.u32 [#allocation6], 4
      %s55 = int_to_ptr.vmem [resolvable:$true] %s54
      %60 = dma.hbm_to_vmem [thread:$0]  %s53, 5120, %s55, [#allocation5], 256, 256, 16
    $region21: #{forward.1} parent=1 // pred_fallthru
      _
    // Predicated region
    $region22: #{forward.1} parent=1 // pred_check
      _
    $region23: #{forward.1} parent=1 // pred_check_branch
      %62 = sbr.rel (0) target = $region25
    $region24: #{forward.1} parent=1 // pred_region
      _
    $region25: #{forward.1} parent=1 // pred_fallthru
      _
    // Predicated region
    $region26: #{forward.1} parent=1 // pred_check
      _
    $region27: #{forward.1} parent=1 // pred_check_branch
      %64 = sbr.rel (0) target = $region29
    $region28: #{forward.1} parent=1 // pred_region
      %66 = vsyncadd [#allocation8], 0
      %s67 = sshll.u32 %s6, 4
      %s68 = int_to_ptr.hbm [resolvable:$true] %s67
      %s69 = sshll.u32 [#allocation7], 4
      %s70 = int_to_ptr.vmem [resolvable:$true] %s69
      %75 = dma.hbm_to_vmem [thread:$0]  %s68, 5120, %s70, [#allocation8], 128, 128, 8
    $region29: #{forward.1} parent=1 // pred_fallthru
      _
    // Predicated region
    $region30: #{forward.1} parent=1 // pred_check
      _
    $region31: #{forward.1} parent=1 // pred_check_branch
      %77 = sbr.rel (0) target = $region33
    $region32: #{forward.1} parent=1 // pred_region
      _
    $region33: #{forward.1} parent=1 // pred_fallthru
      _
    // Predicated region
    $region34: #{forward.1} parent=1 // pred_check
      _
    $region35: #{forward.1} parent=1 // pred_check_branch
      %79 = sbr.rel (0) target = $region37
    $region36: #{forward.1} parent=1 // pred_region
      _
    $region37: #{forward.1} parent=1 // pred_fallthru
      _
    // Predicated region
    $region38: #{forward.1} parent=1 // pred_check
      _
    $region39: #{forward.1} parent=1 // pred_check_branch
      %81 = sbr.rel (0) target = $region41
    $region40: #{forward.1} parent=1 // pred_region
      _
    $region41: #{forward.1} parent=1 // pred_fallthru
      _
    // Predicated region
    $region42: #{forward.1} parent=1 // pred_check
      _
    $region43: #{forward.1} parent=1 // pred_check_branch
      %83 = sbr.rel (0) target = $region45
    $region44: #{forward.1} parent=1 // pred_region
      %85 = dma.done [#allocation3], 10752
    $region45: #{forward.1} parent=1 // pred_fallthru
      _
    // Predicated region
    $region46: #{forward.1} parent=1 // pred_check
      _
    $region47: #{forward.1} parent=1 // pred_check_branch
      %87 = sbr.rel (0) target = $region49
    $region48: #{forward.1} parent=1 // pred_region
      %89 = dma.done [#allocation5], 19200
    $region49: #{forward.1} parent=1 // pred_fallthru
      _
    // Predicated region
    $region50: #{forward.1} parent=1 // pred_check
      _
    $region51: #{forward.1} parent=1 // pred_check_branch
      %91 = sbr.rel (0) target = $region53
    $region52: #{forward.1} parent=1 // pred_region
      %93 = dma.done [#allocation5], 5120
    $region53: #{forward.1} parent=1 // pred_fallthru
      _
    // Predicated region
    $region54: #{forward.1} parent=1 // pred_check
      _
    $region55: #{forward.1} parent=1 // pred_check_branch
      %95 = sbr.rel (0) target = $region57
    $region56: #{forward.1} parent=1 // pred_region
      %97 = dma.done [#allocation8], 5120
    $region57: #{forward.1} parent=1 // pred_fallthru
      _
    %v98 = vld [vmem:[#allocation2] sm:$0xff]
    %v99 = vld [vmem:[#allocation2 + $0x8] sm:$0xff]
    %v100 = vld [vmem:[#allocation2 + $0x10] sm:$0xff]
    %v101 = vld [vmem:[#allocation2 + $0x18] sm:$0xff]
    %v102 = vld [vmem:[#allocation2 + $0x20] sm:$0xff]
    %v103 = vld [vmem:[#allocation2 + $0x28] sm:$0xff]
    %v104 = vld [vmem:[#allocation2 + $0x30] sm:$0xff]
    %v105 = vld [vmem:[#allocation2 + $0x38] sm:$0xff]
    %v106 = vld [vmem:[#allocation2 + $0x40] sm:$0xff]
    %v107 = vld [vmem:[#allocation2 + $0x48] sm:$0xff]
    %v108 = vld [vmem:[#allocation2 + $0x50] sm:$0xff]
    %v109 = vld [vmem:[#allocation2 + $0x58] sm:$0xff]
    %v110 = vld [vmem:[#allocation2 + $0x60] sm:$0xff]
    %v111 = vld [vmem:[#allocation2 + $0x68] sm:$0xff]
    %v112 = vld [vmem:[#allocation2 + $0x70] sm:$0xff]
    %v113 = vld [vmem:[#allocation2 + $0x78] sm:$0xff]
    %v114 = vld [vmem:[#allocation2 + $0x80] sm:$0xff]
    %v115 = vld [vmem:[#allocation2 + $0x88] sm:$0xff]
    %v116 = vld [vmem:[#allocation2 + $0x90] sm:$0xff]
    %v117 = vld [vmem:[#allocation2 + $0x98] sm:$0xff]
    %v118 = vld [vmem:[#allocation2 + $0xa0] sm:$0xff]
    %v119 = vld [vmem:[#allocation2 + $0xa8] sm:$0xff]
    %v120 = vld [vmem:[#allocation2 + $0xb0] sm:$0xff]
    %v121 = vld [vmem:[#allocation2 + $0xb8] sm:$0xff]
    %v122 = vld [vmem:[#allocation2 + $0xc0] sm:$0xff]
    %v123 = vld [vmem:[#allocation2 + $0xc8] sm:$0xff]
    %v124 = vld [vmem:[#allocation2 + $0xd0] sm:$0xff]
    %v125 = vld [vmem:[#allocation2 + $0xd8] sm:$0xff]
    %v126 = vld [vmem:[#allocation2 + $0xe0] sm:$0xff]
    %v127 = vld [vmem:[#allocation2 + $0xe8] sm:$0xff]
    %v128 = vld [vmem:[#allocation2 + $0xf0] sm:$0xff]
    %v129 = vld [vmem:[#allocation2 + $0xf8] sm:$0xff]
    %v130 = vld [vmem:[#allocation2 + $0x100] sm:$0xff]
    %v131 = vld [vmem:[#allocation2 + $0x108] sm:$0xff]
    %v132 = vld [vmem:[#allocation2 + $0x110] sm:$0xff]
    %v133 = vld [vmem:[#allocation2 + $0x118] sm:$0xff]
    %v134 = vld [vmem:[#allocation2 + $0x120] sm:$0xff]
    %v135 = vld [vmem:[#allocation2 + $0x128] sm:$0xff]
    %v136 = vld [vmem:[#allocation2 + $0x130] sm:$0xff]
    %v137 = vld [vmem:[#allocation2 + $0x138] sm:$0xff]
    %v138 = vld [vmem:[#allocation2 + $0x140] sm:$0xff]
    %v139 = vld [vmem:[#allocation2 + $0x148] sm:$0xff]
    %v140 = vld [vmem:[#allocation2 + $0x150] sm:$0xff]
    %v141 = vld [vmem:[#allocation2 + $0x158] sm:$0xff]
    %v142 = vld [vmem:[#allocation2 + $0x160] sm:$0xff]
    %v143 = vld [vmem:[#allocation2 + $0x168] sm:$0xff]
    %v144 = vld [vmem:[#allocation2 + $0x170] sm:$0xff]
    %v145 = vld [vmem:[#allocation2 + $0x178] sm:$0xff]
    %v146 = vld [vmem:[#allocation2 + $0x180] sm:$0xff]
    %v147 = vld [vmem:[#allocation2 + $0x188] sm:$0xff]
    %v148 = vld [vmem:[#allocation2 + $0x190] sm:$0xff]
    %v149 = vld [vmem:[#allocation2 + $0x198] sm:$0xff]
    %v150 = vld [vmem:[#allocation2 + $0x1a0] sm:$0xff]
    %v151 = vld [vmem:[#allocation2 + $0x1a8] sm:$0xff]
    %v152 = vld [vmem:[#allocation2 + $0x1b0] sm:$0xff]
    %v153 = vld [vmem:[#allocation2 + $0x1b8] sm:$0xff]
    %v154 = vld [vmem:[#allocation2 + $0x1c0] sm:$0xff]
    %v155 = vld [vmem:[#allocation2 + $0x1c8] sm:$0xff]
    %v156 = vld [vmem:[#allocation2 + $0x1d0] sm:$0xff]
    %v157 = vld [vmem:[#allocation2 + $0x1d8] sm:$0xff]
    %v158 = vld [vmem:[#allocation2 + $0x1e0] sm:$0xff]
    %v159 = vld [vmem:[#allocation2 + $0x1e8] sm:$0xff]
    %v160 = vld [vmem:[#allocation2 + $0x1f0] sm:$0xff]
    %v161 = vld [vmem:[#allocation2 + $0x1f8] sm:$0xff]
    %v162 = vld [vmem:[#allocation2 + $0x200] sm:$0xff]
    %v163 = vld [vmem:[#allocation2 + $0x208] sm:$0xff]
    %v164 = vld [vmem:[#allocation2 + $0x210] sm:$0xff]
    %v165 = vld [vmem:[#allocation2 + $0x218] sm:$0xff]
    %v166 = vld [vmem:[#allocation2 + $0x220] sm:$0xff]
    %v167 = vld [vmem:[#allocation2 + $0x228] sm:$0xff]
    %v168 = vld [vmem:[#allocation2 + $0x230] sm:$0xff]
    %v169 = vld [vmem:[#allocation2 + $0x238] sm:$0xff]
    %v170 = vld [vmem:[#allocation2 + $0x240] sm:$0xff]
    %v171 = vld [vmem:[#allocation2 + $0x248] sm:$0xff]
    %v172 = vld [vmem:[#allocation2 + $0x250] sm:$0xff]
    %v173 = vld [vmem:[#allocation2 + $0x258] sm:$0xff]
    %v174 = vld [vmem:[#allocation2 + $0x260] sm:$0xff]
    %v175 = vld [vmem:[#allocation2 + $0x268] sm:$0xff]
    %v176 = vld [vmem:[#allocation2 + $0x270] sm:$0xff]
    %v177 = vld [vmem:[#allocation2 + $0x278] sm:$0xff]
    %v178 = vld [vmem:[#allocation2 + $0x280] sm:$0xff]
    %v179 = vld [vmem:[#allocation2 + $0x288] sm:$0xff]
    %v180 = vld [vmem:[#allocation2 + $0x290] sm:$0xff]
    %v181 = vld [vmem:[#allocation2 + $0x298] sm:$0xff]
    %v182 = vld [vmem:[%s0] sm:$0xff]
    %v183 = vld [vmem:[%s0 + $0x8] sm:$0xff]
    %vm184 = vcmask 326656
    %v186 = vsel %vm184, %v183, 0
    %188 = vmatpush.msra.mxu0 %v158
    %189 = vmatpush.msra.mxu0 %v154
    %190 = vmatpush.msra.mxu0 %v150
    %191 = vmatpush.msra.mxu0 %v146
    %192 = vmatpush.msra.mxu0 %v142
    %193 = vmatpush.msra.mxu0 %v138
    %194 = vmatpush.msra.mxu0 %v134
    %195 = vmatpush.msra.mxu0 %v130
    %196 = vmatpush.msra.mxu0 %v126
    %197 = vmatpush.msra.mxu0 %v122
    %198 = vmatpush.msra.mxu0 %v118
    %199 = vmatpush.msra.mxu0 %v114
    %200 = vmatpush.msra.mxu0 %v110
    %201 = vmatpush.msra.mxu0 %v106
    %202 = vmatpush.msra.mxu0 %v102
    %203 = vmatpush.msra.mxu0 %v98
    %204 = vmatmul.f32.gmra.mxu0 %v182
    %v205 = vpop.f32.mrf.mxu0
    %v206 = vadd.f32 0.0, %v205
    %207 = vdwg.mxu0
    %208 = vmatpush.msra.mxu0 0.0
    %209 = vmatpush.msra.mxu0 0.0
    %210 = vmatpush.msra.mxu0 0.0
    %211 = vmatpush.msra.mxu0 0.0
    %212 = vmatpush.msra.mxu0 0.0
    %213 = vmatpush.msra.mxu0 0.0
    %214 = vmatpush.msra.mxu0 0.0
    %215 = vmatpush.msra.mxu0 0.0
    %216 = vmatpush.msra.mxu0 0.0
    %217 = vmatpush.msra.mxu0 0.0
    %218 = vmatpush.msra.mxu0 0.0
    %219 = vmatpush.msra.mxu0 %v178
    %220 = vmatpush.msra.mxu0 %v174
    %221 = vmatpush.msra.mxu0 %v170
    %222 = vmatpush.msra.mxu0 %v166
    %223 = vmatpush.msra.mxu0 %v162
    %224 = vmatmul.f32.gmra.mxu0 %v186
    %v225 = vpop.f32.mrf.mxu0
    %v226 = vadd.f32 %v206, %v225
    %227 = vdwg.mxu0
    %228 = vmatpush.msra.mxu0 %v159
    %229 = vmatpush.msra.mxu0 %v155
    %230 = vmatpush.msra.mxu0 %v151
    %231 = vmatpush.msra.mxu0 %v147
    %232 = vmatpush.msra.mxu0 %v143
    %233 = vmatpush.msra.mxu0 %v139
    %234 = vmatpush.msra.mxu0 %v135
    %235 = vmatpush.msra.mxu0 %v131
    %236 = vmatpush.msra.mxu0 %v127
    %237 = vmatpush.msra.mxu0 %v123
    %238 = vmatpush.msra.mxu0 %v119
    %239 = vmatpush.msra.mxu0 %v115
    %240 = vmatpush.msra.mxu0 %v111
    %241 = vmatpush.msra.mxu0 %v107
    %242 = vmatpush.msra.mxu0 %v103
    %243 = vmatpush.msra.mxu0 %v99
    %244 = vmatmul.f32.gmra.mxu0 %v182
    %v245 = vpop.f32.mrf.mxu0
    %v246 = vadd.f32 0.0, %v245
    %247 = vdwg.mxu0
    %248 = vmatpush.msra.mxu0 0.0
    %249 = vmatpush.msra.mxu0 0.0
    %250 = vmatpush.msra.mxu0 0.0
    %251 = vmatpush.msra.mxu0 0.0
    %252 = vmatpush.msra.mxu0 0.0
    %253 = vmatpush.msra.mxu0 0.0
    %254 = vmatpush.msra.mxu0 0.0
    %255 = vmatpush.msra.mxu0 0.0
    %256 = vmatpush.msra.mxu0 0.0
    %257 = vmatpush.msra.mxu0 0.0
    %258 = vmatpush.msra.mxu0 0.0
    %259 = vmatpush.msra.mxu0 %v179
    %260 = vmatpush.msra.mxu0 %v175
    %261 = vmatpush.msra.mxu0 %v171
    %262 = vmatpush.msra.mxu0 %v167
    %263 = vmatpush.msra.mxu0 %v163
    %264 = vmatmul.f32.gmra.mxu0 %v186
    %v265 = vpop.f32.mrf.mxu0
    %v266 = vadd.f32 %v246, %v265
    %267 = vdwg.mxu0
    %268 = vmatpush.msra.mxu0 %v160
    %269 = vmatpush.msra.mxu0 %v156
    %270 = vmatpush.msra.mxu0 %v152
    %271 = vmatpush.msra.mxu0 %v148
    %272 = vmatpush.msra.mxu0 %v144
    %273 = vmatpush.msra.mxu0 %v140
    %274 = vmatpush.msra.mxu0 %v136
    %275 = vmatpush.msra.mxu0 %v132
    %276 = vmatpush.msra.mxu0 %v128
    %277 = vmatpush.msra.mxu0 %v124
    %278 = vmatpush.msra.mxu0 %v120
    %279 = vmatpush.msra.mxu0 %v116
    %280 = vmatpush.msra.mxu0 %v112
    %281 = vmatpush.msra.mxu0 %v108
    %282 = vmatpush.msra.mxu0 %v104
    %283 = vmatpush.msra.mxu0 %v100
    %284 = vmatmul.f32.gmra.mxu0 %v182
    %v285 = vpop.f32.mrf.mxu0
    %v286 = vadd.f32 0.0, %v285
    %287 = vdwg.mxu0
    %288 = vmatpush.msra.mxu0 0.0
    %289 = vmatpush.msra.mxu0 0.0
    %290 = vmatpush.msra.mxu0 0.0
    %291 = vmatpush.msra.mxu0 0.0
    %292 = vmatpush.msra.mxu0 0.0
    %293 = vmatpush.msra.mxu0 0.0
    %294 = vmatpush.msra.mxu0 0.0
    %295 = vmatpush.msra.mxu0 0.0
    %296 = vmatpush.msra.mxu0 0.0
    %297 = vmatpush.msra.mxu0 0.0
    %298 = vmatpush.msra.mxu0 0.0
    %299 = vmatpush.msra.mxu0 %v180
    %300 = vmatpush.msra.mxu0 %v176
    %301 = vmatpush.msra.mxu0 %v172
    %302 = vmatpush.msra.mxu0 %v168
    %303 = vmatpush.msra.mxu0 %v164
    %304 = vmatmul.f32.gmra.mxu0 %v186
    %v305 = vpop.f32.mrf.mxu0
    %v306 = vadd.f32 %v286, %v305
    %307 = vdwg.mxu0
    %308 = vmatpush.msra.mxu0 %v161
    %309 = vmatpush.msra.mxu0 %v157
    %310 = vmatpush.msra.mxu0 %v153
    %311 = vmatpush.msra.mxu0 %v149
    %312 = vmatpush.msra.mxu0 %v145
    %313 = vmatpush.msra.mxu0 %v141
    %314 = vmatpush.msra.mxu0 %v137
    %315 = vmatpush.msra.mxu0 %v133
    %316 = vmatpush.msra.mxu0 %v129
    %317 = vmatpush.msra.mxu0 %v125
    %318 = vmatpush.msra.mxu0 %v121
    %319 = vmatpush.msra.mxu0 %v117
    %320 = vmatpush.msra.mxu0 %v113
    %321 = vmatpush.msra.mxu0 %v109
    %322 = vmatpush.msra.mxu0 %v105
    %323 = vmatpush.msra.mxu0 %v101
    %324 = vmatmul.f32.gmra.mxu0 %v182
    %v325 = vpop.f32.mrf.mxu0
    %v326 = vadd.f32 0.0, %v325
    %327 = vdwg.mxu0
    %328 = vmatpush.msra.mxu0 0.0
    %329 = vmatpush.msra.mxu0 0.0
    %330 = vmatpush.msra.mxu0 0.0
    %331 = vmatpush.msra.mxu0 0.0
    %332 = vmatpush.msra.mxu0 0.0
    %333 = vmatpush.msra.mxu0 0.0
    %334 = vmatpush.msra.mxu0 0.0
    %335 = vmatpush.msra.mxu0 0.0
    %336 = vmatpush.msra.mxu0 0.0
    %337 = vmatpush.msra.mxu0 0.0
    %338 = vmatpush.msra.mxu0 0.0
    %339 = vmatpush.msra.mxu0 %v181
    %340 = vmatpush.msra.mxu0 %v177
    %341 = vmatpush.msra.mxu0 %v173
    %342 = vmatpush.msra.mxu0 %v169
    %343 = vmatpush.msra.mxu0 %v165
    %344 = vmatmul.f32.gmra.mxu0 %v186
    %v345 = vpop.f32.mrf.mxu0
    %v346 = vadd.f32 %v326, %v345
    %347 = vdwg.mxu0
    %v348 = vmax.f32 %v226, %v266
    %v349 = vmax.f32 %v306, %v346
    %v350 = vmax.f32 %v348, %v349
    %352 = vrot.lane.b32.xlu0 %v182, 72
    %v353 = vpop.permute.xlu0 %352
    %354 = vrot.lane.b32.xlu0 %v183, 72
    %v355 = vpop.permute.xlu0 %354
    %vm356 = vcmask 588800
    %v357 = vsel %vm356, %v353, %v355
    %v359 = vsel %vm184, %v355, 0
    %361 = vmatpush.msra.mxu0 %v158
    %362 = vmatpush.msra.mxu0 %v154
    %363 = vmatpush.msra.mxu0 %v150
    %364 = vmatpush.msra.mxu0 %v146
    %365 = vmatpush.msra.mxu0 %v142
    %366 = vmatpush.msra.mxu0 %v138
    %367 = vmatpush.msra.mxu0 %v134
    %368 = vmatpush.msra.mxu0 %v130
    %369 = vmatpush.msra.mxu0 %v126
    %370 = vmatpush.msra.mxu0 %v122
    %371 = vmatpush.msra.mxu0 %v118
    %372 = vmatpush.msra.mxu0 %v114
    %373 = vmatpush.msra.mxu0 %v110
    %374 = vmatpush.msra.mxu0 %v106
    %375 = vmatpush.msra.mxu0 %v102
    %376 = vmatpush.msra.mxu0 %v98
    %377 = vmatmul.f32.gmra.mxu0 %v357
    %v378 = vpop.f32.mrf.mxu0
    %v379 = vadd.f32 0.0, %v378
    %380 = vdwg.mxu0
    %381 = vmatpush.msra.mxu0 0.0
    %382 = vmatpush.msra.mxu0 0.0
    %383 = vmatpush.msra.mxu0 0.0
    %384 = vmatpush.msra.mxu0 0.0
    %385 = vmatpush.msra.mxu0 0.0
    %386 = vmatpush.msra.mxu0 0.0
    %387 = vmatpush.msra.mxu0 0.0
    %388 = vmatpush.msra.mxu0 0.0
    %389 = vmatpush.msra.mxu0 0.0
    %390 = vmatpush.msra.mxu0 0.0
    %391 = vmatpush.msra.mxu0 0.0
    %392 = vmatpush.msra.mxu0 %v178
    %393 = vmatpush.msra.mxu0 %v174
    %394 = vmatpush.msra.mxu0 %v170
    %395 = vmatpush.msra.mxu0 %v166
    %396 = vmatpush.msra.mxu0 %v162
    %397 = vmatmul.f32.gmra.mxu0 %v359
    %v398 = vpop.f32.mrf.mxu0
    %v399 = vadd.f32 %v379, %v398
    %400 = vdwg.mxu0
    %401 = vmatpush.msra.mxu0 %v159
    %402 = vmatpush.msra.mxu0 %v155
    %403 = vmatpush.msra.mxu0 %v151
    %404 = vmatpush.msra.mxu0 %v147
    %405 = vmatpush.msra.mxu0 %v143
    %406 = vmatpush.msra.mxu0 %v139
    %407 = vmatpush.msra.mxu0 %v135
    %408 = vmatpush.msra.mxu0 %v131
    %409 = vmatpush.msra.mxu0 %v127
    %410 = vmatpush.msra.mxu0 %v123
    %411 = vmatpush.msra.mxu0 %v119
    %412 = vmatpush.msra.mxu0 %v115
    %413 = vmatpush.msra.mxu0 %v111
    %414 = vmatpush.msra.mxu0 %v107
    %415 = vmatpush.msra.mxu0 %v103
    %416 = vmatpush.msra.mxu0 %v99
    %417 = vmatmul.f32.gmra.mxu0 %v357
    %v418 = vpop.f32.mrf.mxu0
    %v419 = vadd.f32 0.0, %v418
    %420 = vdwg.mxu0
    %421 = vmatpush.msra.mxu0 0.0
    %422 = vmatpush.msra.mxu0 0.0
    %423 = vmatpush.msra.mxu0 0.0
    %424 = vmatpush.msra.mxu0 0.0
    %425 = vmatpush.msra.mxu0 0.0
    %426 = vmatpush.msra.mxu0 0.0
    %427 = vmatpush.msra.mxu0 0.0
    %428 = vmatpush.msra.mxu0 0.0
    %429 = vmatpush.msra.mxu0 0.0
    %430 = vmatpush.msra.mxu0 0.0
    %431 = vmatpush.msra.mxu0 0.0
    %432 = vmatpush.msra.mxu0 %v179
    %433 = vmatpush.msra.mxu0 %v175
    %434 = vmatpush.msra.mxu0 %v171
    %435 = vmatpush.msra.mxu0 %v167
    %436 = vmatpush.msra.mxu0 %v163
    %437 = vmatmul.f32.gmra.mxu0 %v359
    %v438 = vpop.f32.mrf.mxu0
    %v439 = vadd.f32 %v419, %v438
    %440 = vdwg.mxu0
    %441 = vmatpush.msra.mxu0 %v160
    %442 = vmatpush.msra.mxu0 %v156
    %443 = vmatpush.msra.mxu0 %v152
    %444 = vmatpush.msra.mxu0 %v148
    %445 = vmatpush.msra.mxu0 %v144
    %446 = vmatpush.msra.mxu0 %v140
    %447 = vmatpush.msra.mxu0 %v136
    %448 = vmatpush.msra.mxu0 %v132
    %449 = vmatpush.msra.mxu0 %v128
    %450 = vmatpush.msra.mxu0 %v124
    %451 = vmatpush.msra.mxu0 %v120
    %452 = vmatpush.msra.mxu0 %v116
    %453 = vmatpush.msra.mxu0 %v112
    %454 = vmatpush.msra.mxu0 %v108
    %455 = vmatpush.msra.mxu0 %v104
    %456 = vmatpush.msra.mxu0 %v100
    %457 = vmatmul.f32.gmra.mxu0 %v357
    %v458 = vpop.f32.mrf.mxu0
    %v459 = vadd.f32 0.0, %v458
    %460 = vdwg.mxu0
    %461 = vmatpush.msra.mxu0 0.0
    %462 = vmatpush.msra.mxu0 0.0
    %463 = vmatpush.msra.mxu0 0.0
    %464 = vmatpush.msra.mxu0 0.0
    %465 = vmatpush.msra.mxu0 0.0
    %466 = vmatpush.msra.mxu0 0.0
    %467 = vmatpush.msra.mxu0 0.0
    %468 = vmatpush.msra.mxu0 0.0
    %469 = vmatpush.msra.mxu0 0.0
    %470 = vmatpush.msra.mxu0 0.0
    %471 = vmatpush.msra.mxu0 0.0
    %472 = vmatpush.msra.mxu0 %v180
    %473 = vmatpush.msra.mxu0 %v176
    %474 = vmatpush.msra.mxu0 %v172
    %475 = vmatpush.msra.mxu0 %v168
    %476 = vmatpush.msra.mxu0 %v164
    %477 = vmatmul.f32.gmra.mxu0 %v359
    %v478 = vpop.f32.mrf.mxu0
    %v479 = vadd.f32 %v459, %v478
    %480 = vdwg.mxu0
    %481 = vmatpush.msra.mxu0 %v161
    %482 = vmatpush.msra.mxu0 %v157
    %483 = vmatpush.msra.mxu0 %v153
    %484 = vmatpush.msra.mxu0 %v149
    %485 = vmatpush.msra.mxu0 %v145
    %486 = vmatpush.msra.mxu0 %v141
    %487 = vmatpush.msra.mxu0 %v137
    %488 = vmatpush.msra.mxu0 %v133
    %489 = vmatpush.msra.mxu0 %v129
    %490 = vmatpush.msra.mxu0 %v125
    %491 = vmatpush.msra.mxu0 %v121
    %492 = vmatpush.msra.mxu0 %v117
    %493 = vmatpush.msra.mxu0 %v113
    %494 = vmatpush.msra.mxu0 %v109
    %495 = vmatpush.msra.mxu0 %v105
    %496 = vmatpush.msra.mxu0 %v101
    %497 = vmatmul.f32.gmra.mxu0 %v357
    %v498 = vpop.f32.mrf.mxu0
    %v499 = vadd.f32 0.0, %v498
    %500 = vdwg.mxu0
    %501 = vmatpush.msra.mxu0 0.0
    %502 = vmatpush.msra.mxu0 0.0
    %503 = vmatpush.msra.mxu0 0.0
    %504 = vmatpush.msra.mxu0 0.0
    %505 = vmatpush.msra.mxu0 0.0
    %506 = vmatpush.msra.mxu0 0.0
    %507 = vmatpush.msra.mxu0 0.0
    %508 = vmatpush.msra.mxu0 0.0
    %509 = vmatpush.msra.mxu0 0.0
    %510 = vmatpush.msra.mxu0 0.0
    %511 = vmatpush.msra.mxu0 0.0
    %512 = vmatpush.msra.mxu0 %v181
    %513 = vmatpush.msra.mxu0 %v177
    %514 = vmatpush.msra.mxu0 %v173
    %515 = vmatpush.msra.mxu0 %v169
    %516 = vmatpush.msra.mxu0 %v165
    %517 = vmatmul.f32.gmra.mxu0 %v359
    %v518 = vpop.f32.mrf.mxu0
    %v519 = vadd.f32 %v499, %v518
    %520 = vdwg.mxu0
    %v521 = vmax.f32 %v399, %v439
    %v522 = vmax.f32 %v479, %v519
    %v523 = vmax.f32 %v521, %v522
    %v524 = vld [vmem:[%s0] sm:$0xff]
    %v525 = vld [vmem:[%s0 + $0x8] sm:$0xff]
    %v526 = vld [vmem:[%s0 + $0x10] sm:$0xff]
    %530 = vrot.lane.b32.xlu0 %v524, 16
    %v531 = vpop.permute.xlu0 %530
    %532 = vrot.lane.b32.xlu0 %v525, 16
    %v533 = vpop.permute.xlu0 %532
    %534 = vrot.lane.b32.xlu0 %v526, 16
    %v535 = vpop.permute.xlu0 %534
    %vm536 = vcmask 130048
    %v537 = vsel %vm536, %v531, %v533
    %v538 = vsel %vm536, %v533, %v535
    %v540 = vsel %vm184, %v538, 0
    %542 = vmatpush.msra.mxu0 %v158
    %543 = vmatpush.msra.mxu0 %v154
    %544 = vmatpush.msra.mxu0 %v150
    %545 = vmatpush.msra.mxu0 %v146
    %546 = vmatpush.msra.mxu0 %v142
    %547 = vmatpush.msra.mxu0 %v138
    %548 = vmatpush.msra.mxu0 %v134
    %549 = vmatpush.msra.mxu0 %v130
    %550 = vmatpush.msra.mxu0 %v126
    %551 = vmatpush.msra.mxu0 %v122
    %552 = vmatpush.msra.mxu0 %v118
    %553 = vmatpush.msra.mxu0 %v114
    %554 = vmatpush.msra.mxu0 %v110
    %555 = vmatpush.msra.mxu0 %v106
    %556 = vmatpush.msra.mxu0 %v102
    %557 = vmatpush.msra.mxu0 %v98
    %558 = vmatmul.f32.gmra.mxu0 %v537
    %v559 = vpop.f32.mrf.mxu0
    %v560 = vadd.f32 0.0, %v559
    %561 = vdwg.mxu0
    %562 = vmatpush.msra.mxu0 0.0
    %563 = vmatpush.msra.mxu0 0.0
    %564 = vmatpush.msra.mxu0 0.0
    %565 = vmatpush.msra.mxu0 0.0
    %566 = vmatpush.msra.mxu0 0.0
    %567 = vmatpush.msra.mxu0 0.0
    %568 = vmatpush.msra.mxu0 0.0
    %569 = vmatpush.msra.mxu0 0.0
    %570 = vmatpush.msra.mxu0 0.0
    %571 = vmatpush.msra.mxu0 0.0
    %572 = vmatpush.msra.mxu0 0.0
    %573 = vmatpush.msra.mxu0 %v178
    %574 = vmatpush.msra.mxu0 %v174
    %575 = vmatpush.msra.mxu0 %v170
    %576 = vmatpush.msra.mxu0 %v166
    %577 = vmatpush.msra.mxu0 %v162
    %578 = vmatmul.f32.gmra.mxu0 %v540
    %v579 = vpop.f32.mrf.mxu0
    %v580 = vadd.f32 %v560, %v579
    %581 = vdwg.mxu0
    %582 = vmatpush.msra.mxu0 %v159
    %583 = vmatpush.msra.mxu0 %v155
    %584 = vmatpush.msra.mxu0 %v151
    %585 = vmatpush.msra.mxu0 %v147
    %586 = vmatpush.msra.mxu0 %v143
    %587 = vmatpush.msra.mxu0 %v139
    %588 = vmatpush.msra.mxu0 %v135
    %589 = vmatpush.msra.mxu0 %v131
    %590 = vmatpush.msra.mxu0 %v127
    %591 = vmatpush.msra.mxu0 %v123
    %592 = vmatpush.msra.mxu0 %v119
    %593 = vmatpush.msra.mxu0 %v115
    %594 = vmatpush.msra.mxu0 %v111
    %595 = vmatpush.msra.mxu0 %v107
    %596 = vmatpush.msra.mxu0 %v103
    %597 = vmatpush.msra.mxu0 %v99
    %598 = vmatmul.f32.gmra.mxu0 %v537
    %v599 = vpop.f32.mrf.mxu0
    %v600 = vadd.f32 0.0, %v599
    %601 = vdwg.mxu0
    %602 = vmatpush.msra.mxu0 0.0
    %603 = vmatpush.msra.mxu0 0.0
    %604 = vmatpush.msra.mxu0 0.0
    %605 = vmatpush.msra.mxu0 0.0
    %606 = vmatpush.msra.mxu0 0.0
    %607 = vmatpush.msra.mxu0 0.0
    %608 = vmatpush.msra.mxu0 0.0
    %609 = vmatpush.msra.mxu0 0.0
    %610 = vmatpush.msra.mxu0 0.0
    %611 = vmatpush.msra.mxu0 0.0
    %612 = vmatpush.msra.mxu0 0.0
    %613 = vmatpush.msra.mxu0 %v179
    %614 = vmatpush.msra.mxu0 %v175
    %615 = vmatpush.msra.mxu0 %v171
    %616 = vmatpush.msra.mxu0 %v167
    %617 = vmatpush.msra.mxu0 %v163
    %618 = vmatmul.f32.gmra.mxu0 %v540
    %v619 = vpop.f32.mrf.mxu0
    %v620 = vadd.f32 %v600, %v619
    %621 = vdwg.mxu0
    %622 = vmatpush.msra.mxu0 %v160
    %623 = vmatpush.msra.mxu0 %v156
    %624 = vmatpush.msra.mxu0 %v152
    %625 = vmatpush.msra.mxu0 %v148
    %626 = vmatpush.msra.mxu0 %v144
    %627 = vmatpush.msra.mxu0 %v140
    %628 = vmatpush.msra.mxu0 %v136
    %629 = vmatpush.msra.mxu0 %v132
    %630 = vmatpush.msra.mxu0 %v128
    %631 = vmatpush.msra.mxu0 %v124
    %632 = vmatpush.msra.mxu0 %v120
    %633 = vmatpush.msra.mxu0 %v116
    %634 = vmatpush.msra.mxu0 %v112
    %635 = vmatpush.msra.mxu0 %v108
    %636 = vmatpush.msra.mxu0 %v104
    %637 = vmatpush.msra.mxu0 %v100
    %638 = vmatmul.f32.gmra.mxu0 %v537
    %v639 = vpop.f32.mrf.mxu0
    %v640 = vadd.f32 0.0, %v639
    %641 = vdwg.mxu0
    %642 = vmatpush.msra.mxu0 0.0
    %643 = vmatpush.msra.mxu0 0.0
    %644 = vmatpush.msra.mxu0 0.0
    %645 = vmatpush.msra.mxu0 0.0
    %646 = vmatpush.msra.mxu0 0.0
    %647 = vmatpush.msra.mxu0 0.0
    %648 = vmatpush.msra.mxu0 0.0
    %649 = vmatpush.msra.mxu0 0.0
    %650 = vmatpush.msra.mxu0 0.0
    %651 = vmatpush.msra.mxu0 0.0
    %652 = vmatpush.msra.mxu0 0.0
    %653 = vmatpush.msra.mxu0 %v180
    %654 = vmatpush.msra.mxu0 %v176
    %655 = vmatpush.msra.mxu0 %v172
    %656 = vmatpush.msra.mxu0 %v168
    %657 = vmatpush.msra.mxu0 %v164
    %658 = vmatmul.f32.gmra.mxu0 %v540
    %v659 = vpop.f32.mrf.mxu0
    %v660 = vadd.f32 %v640, %v659
    %661 = vdwg.mxu0
    %662 = vmatpush.msra.mxu0 %v161
    %663 = vmatpush.msra.mxu0 %v157
    %664 = vmatpush.msra.mxu0 %v153
    %665 = vmatpush.msra.mxu0 %v149
    %666 = vmatpush.msra.mxu0 %v145
    %667 = vmatpush.msra.mxu0 %v141
    %668 = vmatpush.msra.mxu0 %v137
    %669 = vmatpush.msra.mxu0 %v133
    %670 = vmatpush.msra.mxu0 %v129
    %671 = vmatpush.msra.mxu0 %v125
    %672 = vmatpush.msra.mxu0 %v121
    %673 = vmatpush.msra.mxu0 %v117
    %674 = vmatpush.msra.mxu0 %v113
    %675 = vmatpush.msra.mxu0 %v109
    %676 = vmatpush.msra.mxu0 %v105
    %677 = vmatpush.msra.mxu0 %v101
    %678 = vmatmul.f32.gmra.mxu0 %v537
    %v679 = vpop.f32.mrf.mxu0
    %v680 = vadd.f32 0.0, %v679
    %681 = vdwg.mxu0
    %682 = vmatpush.msra.mxu0 0.0
    %683 = vmatpush.msra.mxu0 0.0
    %684 = vmatpush.msra.mxu0 0.0
    %685 = vmatpush.msra.mxu0 0.0
    %686 = vmatpush.msra.mxu0 0.0
    %687 = vmatpush.msra.mxu0 0.0
    %688 = vmatpush.msra.mxu0 0.0
    %689 = vmatpush.msra.mxu0 0.0
    %690 = vmatpush.msra.mxu0 0.0
    %691 = vmatpush.msra.mxu0 0.0
    %692 = vmatpush.msra.mxu0 0.0
    %693 = vmatpush.msra.mxu0 %v181
    %694 = vmatpush.msra.mxu0 %v177
    %695 = vmatpush.msra.mxu0 %v173
    %696 = vmatpush.msra.mxu0 %v169
    %697 = vmatpush.msra.mxu0 %v165
    %698 = vmatmul.f32.gmra.mxu0 %v540
    %v699 = vpop.f32.mrf.mxu0
    %v700 = vadd.f32 %v680, %v699
    %701 = vdwg.mxu0
    %v702 = vmax.f32 %v580, %v620
    %v703 = vmax.f32 %v660, %v700
    %v704 = vmax.f32 %v702, %v703
    %705 = vrot.lane.b32.xlu0 %v525, 88
    %v706 = vpop.permute.xlu0 %705
    %707 = vrot.lane.b32.xlu0 %v526, 88
    %v708 = vpop.permute.xlu0 %707
    %vm709 = vcmask 719872
    %v710 = vsel %vm709, %v706, %v708
    %v712 = vsel %vm184, %v708, 0
    %714 = vmatpush.msra.mxu0 %v158
    %715 = vmatpush.msra.mxu0 %v154
    %716 = vmatpush.msra.mxu0 %v150
    %717 = vmatpush.msra.mxu0 %v146
    %718 = vmatpush.msra.mxu0 %v142
    %719 = vmatpush.msra.mxu0 %v138
    %720 = vmatpush.msra.mxu0 %v134
    %721 = vmatpush.msra.mxu0 %v130
    %722 = vmatpush.msra.mxu0 %v126
    %723 = vmatpush.msra.mxu0 %v122
    %724 = vmatpush.msra.mxu0 %v118
    %725 = vmatpush.msra.mxu0 %v114
    %726 = vmatpush.msra.mxu0 %v110
    %727 = vmatpush.msra.mxu0 %v106
    %728 = vmatpush.msra.mxu0 %v102
    %729 = vmatpush.msra.mxu0 %v98
    %730 = vmatmul.f32.gmra.mxu0 %v710
    %v731 = vpop.f32.mrf.mxu0
    %v732 = vadd.f32 0.0, %v731
    %733 = vdwg.mxu0
    %734 = vmatpush.msra.mxu0 0.0
    %735 = vmatpush.msra.mxu0 0.0
    %736 = vmatpush.msra.mxu0 0.0
    %737 = vmatpush.msra.mxu0 0.0
    %738 = vmatpush.msra.mxu0 0.0
    %739 = vmatpush.msra.mxu0 0.0
    %740 = vmatpush.msra.mxu0 0.0
    %741 = vmatpush.msra.mxu0 0.0
    %742 = vmatpush.msra.mxu0 0.0
    %743 = vmatpush.msra.mxu0 0.0
    %744 = vmatpush.msra.mxu0 0.0
    %745 = vmatpush.msra.mxu0 %v178
    %746 = vmatpush.msra.mxu0 %v174
    %747 = vmatpush.msra.mxu0 %v170
    %748 = vmatpush.msra.mxu0 %v166
    %749 = vmatpush.msra.mxu0 %v162
    %750 = vmatmul.f32.gmra.mxu0 %v712
    %v751 = vpop.f32.mrf.mxu0
    %v752 = vadd.f32 %v732, %v751
    %753 = vdwg.mxu0
    %754 = vmatpush.msra.mxu0 %v159
    %755 = vmatpush.msra.mxu0 %v155
    %756 = vmatpush.msra.mxu0 %v151
    %757 = vmatpush.msra.mxu0 %v147
    %758 = vmatpush.msra.mxu0 %v143
    %759 = vmatpush.msra.mxu0 %v139
    %760 = vmatpush.msra.mxu0 %v135
    %761 = vmatpush.msra.mxu0 %v131
    %762 = vmatpush.msra.mxu0 %v127
    %763 = vmatpush.msra.mxu0 %v123
    %764 = vmatpush.msra.mxu0 %v119
    %765 = vmatpush.msra.mxu0 %v115
    %766 = vmatpush.msra.mxu0 %v111
    %767 = vmatpush.msra.mxu0 %v107
    %768 = vmatpush.msra.mxu0 %v103
    %769 = vmatpush.msra.mxu0 %v99
    %770 = vmatmul.f32.gmra.mxu0 %v710
    %v771 = vpop.f32.mrf.mxu0
    %v772 = vadd.f32 0.0, %v771
    %773 = vdwg.mxu0
    %774 = vmatpush.msra.mxu0 0.0
    %775 = vmatpush.msra.mxu0 0.0
    %776 = vmatpush.msra.mxu0 0.0
    %777 = vmatpush.msra.mxu0 0.0
    %778 = vmatpush.msra.mxu0 0.0
    %779 = vmatpush.msra.mxu0 0.0
    %780 = vmatpush.msra.mxu0 0.0
    %781 = vmatpush.msra.mxu0 0.0
    %782 = vmatpush.msra.mxu0 0.0
    %783 = vmatpush.msra.mxu0 0.0
    %784 = vmatpush.msra.mxu0 0.0
    %785 = vmatpush.msra.mxu0 %v179
    %786 = vmatpush.msra.mxu0 %v175
    %787 = vmatpush.msra.mxu0 %v171
    %788 = vmatpush.msra.mxu0 %v167
    %789 = vmatpush.msra.mxu0 %v163
    %790 = vmatmul.f32.gmra.mxu0 %v712
    %v791 = vpop.f32.mrf.mxu0
    %v792 = vadd.f32 %v772, %v791
    %793 = vdwg.mxu0
    %794 = vmatpush.msra.mxu0 %v160
    %795 = vmatpush.msra.mxu0 %v156
    %796 = vmatpush.msra.mxu0 %v152
    %797 = vmatpush.msra.mxu0 %v148
    %798 = vmatpush.msra.mxu0 %v144
    %799 = vmatpush.msra.mxu0 %v140
    %800 = vmatpush.msra.mxu0 %v136
    %801 = vmatpush.msra.mxu0 %v132
    %802 = vmatpush.msra.mxu0 %v128
    %803 = vmatpush.msra.mxu0 %v124
    %804 = vmatpush.msra.mxu0 %v120
    %805 = vmatpush.msra.mxu0 %v116
    %806 = vmatpush.msra.mxu0 %v112
    %807 = vmatpush.msra.mxu0 %v108
    %808 = vmatpush.msra.mxu0 %v104
    %809 = vmatpush.msra.mxu0 %v100
    %810 = vmatmul.f32.gmra.mxu0 %v710
    %v811 = vpop.f32.mrf.mxu0
    %v812 = vadd.f32 0.0, %v811
    %813 = vdwg.mxu0
    %814 = vmatpush.msra.mxu0 0.0
    %815 = vmatpush.msra.mxu0 0.0
    %816 = vmatpush.msra.mxu0 0.0
    %817 = vmatpush.msra.mxu0 0.0
    %818 = vmatpush.msra.mxu0 0.0
    %819 = vmatpush.msra.mxu0 0.0
    %820 = vmatpush.msra.mxu0 0.0
    %821 = vmatpush.msra.mxu0 0.0
    %822 = vmatpush.msra.mxu0 0.0
    %823 = vmatpush.msra.mxu0 0.0
    %824 = vmatpush.msra.mxu0 0.0
    %825 = vmatpush.msra.mxu0 %v180
    %826 = vmatpush.msra.mxu0 %v176
    %827 = vmatpush.msra.mxu0 %v172
    %828 = vmatpush.msra.mxu0 %v168
    %829 = vmatpush.msra.mxu0 %v164
    %830 = vmatmul.f32.gmra.mxu0 %v712
    %v831 = vpop.f32.mrf.mxu0
    %v832 = vadd.f32 %v812, %v831
    %833 = vdwg.mxu0
    %834 = vmatpush.msra.mxu0 %v161
    %835 = vmatpush.msra.mxu0 %v157
    %836 = vmatpush.msra.mxu0 %v153
    %837 = vmatpush.msra.mxu0 %v149
    %838 = vmatpush.msra.mxu0 %v145
    %839 = vmatpush.msra.mxu0 %v141
    %840 = vmatpush.msra.mxu0 %v137
    %841 = vmatpush.msra.mxu0 %v133
    %842 = vmatpush.msra.mxu0 %v129
    %843 = vmatpush.msra.mxu0 %v125
    %844 = vmatpush.msra.mxu0 %v121
    %845 = vmatpush.msra.mxu0 %v117
    %846 = vmatpush.msra.mxu0 %v113
    %847 = vmatpush.msra.mxu0 %v109
    %848 = vmatpush.msra.mxu0 %v105
    %849 = vmatpush.msra.mxu0 %v101
    %850 = vmatmul.f32.gmra.mxu0 %v710
    %v851 = vpop.f32.mrf.mxu0
    %v852 = vadd.f32 0.0, %v851
    %853 = vdwg.mxu0
    %854 = vmatpush.msra.mxu0 0.0
    %855 = vmatpush.msra.mxu0 0.0
    %856 = vmatpush.msra.mxu0 0.0
    %857 = vmatpush.msra.mxu0 0.0
    %858 = vmatpush.msra.mxu0 0.0
    %859 = vmatpush.msra.mxu0 0.0
    %860 = vmatpush.msra.mxu0 0.0
    %861 = vmatpush.msra.mxu0 0.0
    %862 = vmatpush.msra.mxu0 0.0
    %863 = vmatpush.msra.mxu0 0.0
    %864 = vmatpush.msra.mxu0 0.0
    %865 = vmatpush.msra.mxu0 %v181
    %866 = vmatpush.msra.mxu0 %v177
    %867 = vmatpush.msra.mxu0 %v173
    %868 = vmatpush.msra.mxu0 %v169
    %869 = vmatpush.msra.mxu0 %v165
    %870 = vmatmul.f32.gmra.mxu0 %v712
    %v871 = vpop.f32.mrf.mxu0
    %v872 = vadd.f32 %v852, %v871
    %873 = vdwg.mxu0
    %v874 = vmax.f32 %v752, %v792
    %v875 = vmax.f32 %v832, %v872
    %v876 = vmax.f32 %v874, %v875
    %v877 = vld [vmem:[%s0 + $0x8] sm:$0xff]
    %v878 = vld [vmem:[%s0 + $0x10] sm:$0xff]
    %v879 = vld [vmem:[%s0 + $0x18] sm:$0xff]
    %883 = vrot.lane.b32.xlu0 %v877, 32
    %v884 = vpop.permute.xlu0 %883
    %885 = vrot.lane.b32.xlu0 %v878, 32
    %v886 = vpop.permute.xlu0 %885
    %887 = vrot.lane.b32.xlu0 %v879, 32
    %v888 = vpop.permute.xlu0 %887
    %vm889 = vcmask 261120
    %v890 = vsel %vm889, %v884, %v886
    %v891 = vsel %vm889, %v886, %v888
    %v893 = vsel %vm184, %v891, 0
    %895 = vmatpush.msra.mxu0 %v158
    %896 = vmatpush.msra.mxu0 %v154
    %897 = vmatpush.msra.mxu0 %v150
    %898 = vmatpush.msra.mxu0 %v146
    %899 = vmatpush.msra.mxu0 %v142
    %900 = vmatpush.msra.mxu0 %v138
    %901 = vmatpush.msra.mxu0 %v134
    %902 = vmatpush.msra.mxu0 %v130
    %903 = vmatpush.msra.mxu0 %v126
    %904 = vmatpush.msra.mxu0 %v122
    %905 = vmatpush.msra.mxu0 %v118
    %906 = vmatpush.msra.mxu0 %v114
    %907 = vmatpush.msra.mxu0 %v110
    %908 = vmatpush.msra.mxu0 %v106
    %909 = vmatpush.msra.mxu0 %v102
    %910 = vmatpush.msra.mxu0 %v98
    %911 = vmatmul.f32.gmra.mxu0 %v890
    %v912 = vpop.f32.mrf.mxu0
    %v913 = vadd.f32 0.0, %v912
    %914 = vdwg.mxu0
    %915 = vmatpush.msra.mxu0 0.0
    %916 = vmatpush.msra.mxu0 0.0
    %917 = vmatpush.msra.mxu0 0.0
    %918 = vmatpush.msra.mxu0 0.0
    %919 = vmatpush.msra.mxu0 0.0
    %920 = vmatpush.msra.mxu0 0.0
    %921 = vmatpush.msra.mxu0 0.0
    %922 = vmatpush.msra.mxu0 0.0
    %923 = vmatpush.msra.mxu0 0.0
    %924 = vmatpush.msra.mxu0 0.0
    %925 = vmatpush.msra.mxu0 0.0
    %926 = vmatpush.msra.mxu0 %v178
    %927 = vmatpush.msra.mxu0 %v174
    %928 = vmatpush.msra.mxu0 %v170
    %929 = vmatpush.msra.mxu0 %v166
    %930 = vmatpush.msra.mxu0 %v162
    %931 = vmatmul.f32.gmra.mxu0 %v893
    %v932 = vpop.f32.mrf.mxu0
    %v933 = vadd.f32 %v913, %v932
    %934 = vdwg.mxu0
    %935 = vmatpush.msra.mxu0 %v159
    %936 = vmatpush.msra.mxu0 %v155
    %937 = vmatpush.msra.mxu0 %v151
    %938 = vmatpush.msra.mxu0 %v147
    %939 = vmatpush.msra.mxu0 %v143
    %940 = vmatpush.msra.mxu0 %v139
    %941 = vmatpush.msra.mxu0 %v135
    %942 = vmatpush.msra.mxu0 %v131
    %943 = vmatpush.msra.mxu0 %v127
    %944 = vmatpush.msra.mxu0 %v123
    %945 = vmatpush.msra.mxu0 %v119
    %946 = vmatpush.msra.mxu0 %v115
    %947 = vmatpush.msra.mxu0 %v111
    %948 = vmatpush.msra.mxu0 %v107
    %949 = vmatpush.msra.mxu0 %v103
    %950 = vmatpush.msra.mxu0 %v99
    %951 = vmatmul.f32.gmra.mxu0 %v890
    %v952 = vpop.f32.mrf.mxu0
    %v953 = vadd.f32 0.0, %v952
    %954 = vdwg.mxu0
    %955 = vmatpush.msra.mxu0 0.0
    %956 = vmatpush.msra.mxu0 0.0
    %957 = vmatpush.msra.mxu0 0.0
    %958 = vmatpush.msra.mxu0 0.0
    %959 = vmatpush.msra.mxu0 0.0
    %960 = vmatpush.msra.mxu0 0.0
    %961 = vmatpush.msra.mxu0 0.0
    %962 = vmatpush.msra.mxu0 0.0
    %963 = vmatpush.msra.mxu0 0.0
    %964 = vmatpush.msra.mxu0 0.0
    %965 = vmatpush.msra.mxu0 0.0
    %966 = vmatpush.msra.mxu0 %v179
    %967 = vmatpush.msra.mxu0 %v175
    %968 = vmatpush.msra.mxu0 %v171
    %969 = vmatpush.msra.mxu0 %v167
    %970 = vmatpush.msra.mxu0 %v163
    %971 = vmatmul.f32.gmra.mxu0 %v893
    %v972 = vpop.f32.mrf.mxu0
    %v973 = vadd.f32 %v953, %v972
    %974 = vdwg.mxu0
    %975 = vmatpush.msra.mxu0 %v160
    %976 = vmatpush.msra.mxu0 %v156
    %977 = vmatpush.msra.mxu0 %v152
    %978 = vmatpush.msra.mxu0 %v148
    %979 = vmatpush.msra.mxu0 %v144
    %980 = vmatpush.msra.mxu0 %v140
    %981 = vmatpush.msra.mxu0 %v136
    %982 = vmatpush.msra.mxu0 %v132
    %983 = vmatpush.msra.mxu0 %v128
    %984 = vmatpush.msra.mxu0 %v124
    %985 = vmatpush.msra.mxu0 %v120
    %986 = vmatpush.msra.mxu0 %v116
    %987 = vmatpush.msra.mxu0 %v112
    %988 = vmatpush.msra.mxu0 %v108
    %989 = vmatpush.msra.mxu0 %v104
    %990 = vmatpush.msra.mxu0 %v100
    %991 = vmatmul.f32.gmra.mxu0 %v890
    %v992 = vpop.f32.mrf.mxu0
    %v993 = vadd.f32 0.0, %v992
    %994 = vdwg.mxu0
    %995 = vmatpush.msra.mxu0 0.0
    %996 = vmatpush.msra.mxu0 0.0
    %997 = vmatpush.msra.mxu0 0.0
    %998 = vmatpush.msra.mxu0 0.0
    %999 = vmatpush.msra.mxu0 0.0
    %1000 = vmatpush.msra.mxu0 0.0
    %1001 = vmatpush.msra.mxu0 0.0
    %1002 = vmatpush.msra.mxu0 0.0
    %1003 = vmatpush.msra.mxu0 0.0
    %1004 = vmatpush.msra.mxu0 0.0
    %1005 = vmatpush.msra.mxu0 0.0
    %1006 = vmatpush.msra.mxu0 %v180
    %1007 = vmatpush.msra.mxu0 %v176
    %1008 = vmatpush.msra.mxu0 %v172
    %1009 = vmatpush.msra.mxu0 %v168
    %1010 = vmatpush.msra.mxu0 %v164
    %1011 = vmatmul.f32.gmra.mxu0 %v893
    %v1012 = vpop.f32.mrf.mxu0
    %v1013 = vadd.f32 %v993, %v1012
    %1014 = vdwg.mxu0
    %1015 = vmatpush.msra.mxu0 %v161
    %1016 = vmatpush.msra.mxu0 %v157
    %1017 = vmatpush.msra.mxu0 %v153
    %1018 = vmatpush.msra.mxu0 %v149
    %1019 = vmatpush.msra.mxu0 %v145
    %1020 = vmatpush.msra.mxu0 %v141
    %1021 = vmatpush.msra.mxu0 %v137
    %1022 = vmatpush.msra.mxu0 %v133
    %1023 = vmatpush.msra.mxu0 %v129
    %1024 = vmatpush.msra.mxu0 %v125
    %1025 = vmatpush.msra.mxu0 %v121
    %1026 = vmatpush.msra.mxu0 %v117
    %1027 = vmatpush.msra.mxu0 %v113
    %1028 = vmatpush.msra.mxu0 %v109
    %1029 = vmatpush.msra.mxu0 %v105
    %1030 = vmatpush.msra.mxu0 %v101
    %1031 = vmatmul.f32.gmra.mxu0 %v890
    %v1032 = vpop.f32.mrf.mxu0
    %v1033 = vadd.f32 0.0, %v1032
    %1034 = vdwg.mxu0
    %1035 = vmatpush.msra.mxu0 0.0
    %1036 = vmatpush.msra.mxu0 0.0
    %1037 = vmatpush.msra.mxu0 0.0
    %1038 = vmatpush.msra.mxu0 0.0
    %1039 = vmatpush.msra.mxu0 0.0
    %1040 = vmatpush.msra.mxu0 0.0
    %1041 = vmatpush.msra.mxu0 0.0
    %1042 = vmatpush.msra.mxu0 0.0
    %1043 = vmatpush.msra.mxu0 0.0
    %1044 = vmatpush.msra.mxu0 0.0
    %1045 = vmatpush.msra.mxu0 0.0
    %1046 = vmatpush.msra.mxu0 %v181
    %1047 = vmatpush.msra.mxu0 %v177
    %1048 = vmatpush.msra.mxu0 %v173
    %1049 = vmatpush.msra.mxu0 %v169
    %1050 = vmatpush.msra.mxu0 %v165
    %1051 = vmatmul.f32.gmra.mxu0 %v893
    %v1052 = vpop.f32.mrf.mxu0
    %v1053 = vadd.f32 %v1033, %v1052
    %1054 = vdwg.mxu0
    %v1055 = vmax.f32 %v933, %v973
    %v1056 = vmax.f32 %v1013, %v1053
    %v1057 = vmax.f32 %v1055, %v1056
    %1058 = vrot.lane.b32.xlu0 %v878, 104
    %v1059 = vpop.permute.xlu0 %1058
    %1060 = vrot.lane.b32.xlu0 %v879, 104
    %v1061 = vpop.permute.xlu0 %1060
    %vm1062 = vcmask 850944
    %v1063 = vsel %vm1062, %v1059, %v1061
    %v1065 = vsel %vm184, %v1061, 0
    %1067 = vmatpush.msra.mxu0 %v158
    %1068 = vmatpush.msra.mxu0 %v154
    %1069 = vmatpush.msra.mxu0 %v150
    %1070 = vmatpush.msra.mxu0 %v146
    %1071 = vmatpush.msra.mxu0 %v142
    %1072 = vmatpush.msra.mxu0 %v138
    %1073 = vmatpush.msra.mxu0 %v134
    %1074 = vmatpush.msra.mxu0 %v130
    %1075 = vmatpush.msra.mxu0 %v126
    %1076 = vmatpush.msra.mxu0 %v122
    %1077 = vmatpush.msra.mxu0 %v118
    %1078 = vmatpush.msra.mxu0 %v114
    %1079 = vmatpush.msra.mxu0 %v110
    %1080 = vmatpush.msra.mxu0 %v106
    %1081 = vmatpush.msra.mxu0 %v102
    %1082 = vmatpush.msra.mxu0 %v98
    %1083 = vmatmul.f32.gmra.mxu0 %v1063
    %v1084 = vpop.f32.mrf.mxu0
    %v1085 = vadd.f32 0.0, %v1084
    %1086 = vdwg.mxu0
    %1087 = vmatpush.msra.mxu0 0.0
    %1088 = vmatpush.msra.mxu0 0.0
    %1089 = vmatpush.msra.mxu0 0.0
    %1090 = vmatpush.msra.mxu0 0.0
    %1091 = vmatpush.msra.mxu0 0.0
    %1092 = vmatpush.msra.mxu0 0.0
    %1093 = vmatpush.msra.mxu0 0.0
    %1094 = vmatpush.msra.mxu0 0.0
    %1095 = vmatpush.msra.mxu0 0.0
    %1096 = vmatpush.msra.mxu0 0.0
    %1097 = vmatpush.msra.mxu0 0.0
    %1098 = vmatpush.msra.mxu0 %v178
    %1099 = vmatpush.msra.mxu0 %v174
    %1100 = vmatpush.msra.mxu0 %v170
    %1101 = vmatpush.msra.mxu0 %v166
    %1102 = vmatpush.msra.mxu0 %v162
    %1103 = vmatmul.f32.gmra.mxu0 %v1065
    %v1104 = vpop.f32.mrf.mxu0
    %v1105 = vadd.f32 %v1085, %v1104
    %1106 = vdwg.mxu0
    %1107 = vmatpush.msra.mxu0 %v159
    %1108 = vmatpush.msra.mxu0 %v155
    %1109 = vmatpush.msra.mxu0 %v151
    %1110 = vmatpush.msra.mxu0 %v147
    %1111 = vmatpush.msra.mxu0 %v143
    %1112 = vmatpush.msra.mxu0 %v139
    %1113 = vmatpush.msra.mxu0 %v135
    %1114 = vmatpush.msra.mxu0 %v131
    %1115 = vmatpush.msra.mxu0 %v127
    %1116 = vmatpush.msra.mxu0 %v123
    %1117 = vmatpush.msra.mxu0 %v119
    %1118 = vmatpush.msra.mxu0 %v115
    %1119 = vmatpush.msra.mxu0 %v111
    %1120 = vmatpush.msra.mxu0 %v107
    %1121 = vmatpush.msra.mxu0 %v103
    %1122 = vmatpush.msra.mxu0 %v99
    %1123 = vmatmul.f32.gmra.mxu0 %v1063
    %v1124 = vpop.f32.mrf.mxu0
    %v1125 = vadd.f32 0.0, %v1124
    %1126 = vdwg.mxu0
    %1127 = vmatpush.msra.mxu0 0.0
    %1128 = vmatpush.msra.mxu0 0.0
    %1129 = vmatpush.msra.mxu0 0.0
    %1130 = vmatpush.msra.mxu0 0.0
    %1131 = vmatpush.msra.mxu0 0.0
    %1132 = vmatpush.msra.mxu0 0.0
    %1133 = vmatpush.msra.mxu0 0.0
    %1134 = vmatpush.msra.mxu0 0.0
    %1135 = vmatpush.msra.mxu0 0.0
    %1136 = vmatpush.msra.mxu0 0.0
    %1137 = vmatpush.msra.mxu0 0.0
    %1138 = vmatpush.msra.mxu0 %v179
    %1139 = vmatpush.msra.mxu0 %v175
    %1140 = vmatpush.msra.mxu0 %v171
    %1141 = vmatpush.msra.mxu0 %v167
    %1142 = vmatpush.msra.mxu0 %v163
    %1143 = vmatmul.f32.gmra.mxu0 %v1065
    %v1144 = vpop.f32.mrf.mxu0
    %v1145 = vadd.f32 %v1125, %v1144
    %1146 = vdwg.mxu0
    %1147 = vmatpush.msra.mxu0 %v160
    %1148 = vmatpush.msra.mxu0 %v156
    %1149 = vmatpush.msra.mxu0 %v152
    %1150 = vmatpush.msra.mxu0 %v148
    %1151 = vmatpush.msra.mxu0 %v144
    %1152 = vmatpush.msra.mxu0 %v140
    %1153 = vmatpush.msra.mxu0 %v136
    %1154 = vmatpush.msra.mxu0 %v132
    %1155 = vmatpush.msra.mxu0 %v128
    %1156 = vmatpush.msra.mxu0 %v124
    %1157 = vmatpush.msra.mxu0 %v120
    %1158 = vmatpush.msra.mxu0 %v116
    %1159 = vmatpush.msra.mxu0 %v112
    %1160 = vmatpush.msra.mxu0 %v108
    %1161 = vmatpush.msra.mxu0 %v104
    %1162 = vmatpush.msra.mxu0 %v100
    %1163 = vmatmul.f32.gmra.mxu0 %v1063
    %v1164 = vpop.f32.mrf.mxu0
    %v1165 = vadd.f32 0.0, %v1164
    %1166 = vdwg.mxu0
    %1167 = vmatpush.msra.mxu0 0.0
    %1168 = vmatpush.msra.mxu0 0.0
    %1169 = vmatpush.msra.mxu0 0.0
    %1170 = vmatpush.msra.mxu0 0.0
    %1171 = vmatpush.msra.mxu0 0.0
    %1172 = vmatpush.msra.mxu0 0.0
    %1173 = vmatpush.msra.mxu0 0.0
    %1174 = vmatpush.msra.mxu0 0.0
    %1175 = vmatpush.msra.mxu0 0.0
    %1176 = vmatpush.msra.mxu0 0.0
    %1177 = vmatpush.msra.mxu0 0.0
    %1178 = vmatpush.msra.mxu0 %v180
    %1179 = vmatpush.msra.mxu0 %v176
    %1180 = vmatpush.msra.mxu0 %v172
    %1181 = vmatpush.msra.mxu0 %v168
    %1182 = vmatpush.msra.mxu0 %v164
    %1183 = vmatmul.f32.gmra.mxu0 %v1065
    %v1184 = vpop.f32.mrf.mxu0
    %v1185 = vadd.f32 %v1165, %v1184
    %1186 = vdwg.mxu0
    %1187 = vmatpush.msra.mxu0 %v161
    %1188 = vmatpush.msra.mxu0 %v157
    %1189 = vmatpush.msra.mxu0 %v153
    %1190 = vmatpush.msra.mxu0 %v149
    %1191 = vmatpush.msra.mxu0 %v145
    %1192 = vmatpush.msra.mxu0 %v141
    %1193 = vmatpush.msra.mxu0 %v137
    %1194 = vmatpush.msra.mxu0 %v133
    %1195 = vmatpush.msra.mxu0 %v129
    %1196 = vmatpush.msra.mxu0 %v125
    %1197 = vmatpush.msra.mxu0 %v121
    %1198 = vmatpush.msra.mxu0 %v117
    %1199 = vmatpush.msra.mxu0 %v113
    %1200 = vmatpush.msra.mxu0 %v109
    %1201 = vmatpush.msra.mxu0 %v105
    %1202 = vmatpush.msra.mxu0 %v101
    %1203 = vmatmul.f32.gmra.mxu0 %v1063
    %v1204 = vpop.f32.mrf.mxu0
    %v1205 = vadd.f32 0.0, %v1204
    %1206 = vdwg.mxu0
    %1207 = vmatpush.msra.mxu0 0.0
    %1208 = vmatpush.msra.mxu0 0.0
    %1209 = vmatpush.msra.mxu0 0.0
    %1210 = vmatpush.msra.mxu0 0.0
    %1211 = vmatpush.msra.mxu0 0.0
    %1212 = vmatpush.msra.mxu0 0.0
    %1213 = vmatpush.msra.mxu0 0.0
    %1214 = vmatpush.msra.mxu0 0.0
    %1215 = vmatpush.msra.mxu0 0.0
    %1216 = vmatpush.msra.mxu0 0.0
    %1217 = vmatpush.msra.mxu0 0.0
    %1218 = vmatpush.msra.mxu0 %v181
    %1219 = vmatpush.msra.mxu0 %v177
    %1220 = vmatpush.msra.mxu0 %v173
    %1221 = vmatpush.msra.mxu0 %v169
    %1222 = vmatpush.msra.mxu0 %v165
    %1223 = vmatmul.f32.gmra.mxu0 %v1065
    %v1224 = vpop.f32.mrf.mxu0
    %v1225 = vadd.f32 %v1205, %v1224
    %1226 = vdwg.mxu0
    %v1227 = vmax.f32 %v1105, %v1145
    %v1228 = vmax.f32 %v1185, %v1225
    %v1229 = vmax.f32 %v1227, %v1228
    %1230 = vrot.lane.b32.xlu0 %v878, 48
    %v1231 = vpop.permute.xlu0 %1230
    %1232 = vrot.lane.b32.xlu0 %v879, 48
    %v1233 = vpop.permute.xlu0 %1232
    %vm1234 = vcmask 392192
    %v1235 = vsel %vm1234, %v1231, %v1233
    %v1237 = vsel %vm184, %v1233, 0
    %1239 = vmatpush.msra.mxu0 %v158
    %1240 = vmatpush.msra.mxu0 %v154
    %1241 = vmatpush.msra.mxu0 %v150
    %1242 = vmatpush.msra.mxu0 %v146
    %1243 = vmatpush.msra.mxu0 %v142
    %1244 = vmatpush.msra.mxu0 %v138
    %1245 = vmatpush.msra.mxu0 %v134
    %1246 = vmatpush.msra.mxu0 %v130
    %1247 = vmatpush.msra.mxu0 %v126
    %1248 = vmatpush.msra.mxu0 %v122
    %1249 = vmatpush.msra.mxu0 %v118
    %1250 = vmatpush.msra.mxu0 %v114
    %1251 = vmatpush.msra.mxu0 %v110
    %1252 = vmatpush.msra.mxu0 %v106
    %1253 = vmatpush.msra.mxu0 %v102
    %1254 = vmatpush.msra.mxu0 %v98
    %1255 = vmatmul.f32.gmra.mxu0 %v1235
    %v1256 = vpop.f32.mrf.mxu0
    %v1257 = vadd.f32 0.0, %v1256
    %1258 = vdwg.mxu0
    %1259 = vmatpush.msra.mxu0 0.0
    %1260 = vmatpush.msra.mxu0 0.0
    %1261 = vmatpush.msra.mxu0 0.0
    %1262 = vmatpush.msra.mxu0 0.0
    %1263 = vmatpush.msra.mxu0 0.0
    %1264 = vmatpush.msra.mxu0 0.0
    %1265 = vmatpush.msra.mxu0 0.0
    %1266 = vmatpush.msra.mxu0 0.0
    %1267 = vmatpush.msra.mxu0 0.0
    %1268 = vmatpush.msra.mxu0 0.0
    %1269 = vmatpush.msra.mxu0 0.0
    %1270 = vmatpush.msra.mxu0 %v178
    %1271 = vmatpush.msra.mxu0 %v174
    %1272 = vmatpush.msra.mxu0 %v170
    %1273 = vmatpush.msra.mxu0 %v166
    %1274 = vmatpush.msra.mxu0 %v162
    %1275 = vmatmul.f32.gmra.mxu0 %v1237
    %v1276 = vpop.f32.mrf.mxu0
    %v1277 = vadd.f32 %v1257, %v1276
    %1278 = vdwg.mxu0
    %1279 = vmatpush.msra.mxu0 %v159
    %1280 = vmatpush.msra.mxu0 %v155
    %1281 = vmatpush.msra.mxu0 %v151
    %1282 = vmatpush.msra.mxu0 %v147
    %1283 = vmatpush.msra.mxu0 %v143
    %1284 = vmatpush.msra.mxu0 %v139
    %1285 = vmatpush.msra.mxu0 %v135
    %1286 = vmatpush.msra.mxu0 %v131
    %1287 = vmatpush.msra.mxu0 %v127
    %1288 = vmatpush.msra.mxu0 %v123
    %1289 = vmatpush.msra.mxu0 %v119
    %1290 = vmatpush.msra.mxu0 %v115
    %1291 = vmatpush.msra.mxu0 %v111
    %1292 = vmatpush.msra.mxu0 %v107
    %1293 = vmatpush.msra.mxu0 %v103
    %1294 = vmatpush.msra.mxu0 %v99
    %1295 = vmatmul.f32.gmra.mxu0 %v1235
    %v1296 = vpop.f32.mrf.mxu0
    %v1297 = vadd.f32 0.0, %v1296
    %1298 = vdwg.mxu0
    %1299 = vmatpush.msra.mxu0 0.0
    %1300 = vmatpush.msra.mxu0 0.0
    %1301 = vmatpush.msra.mxu0 0.0
    %1302 = vmatpush.msra.mxu0 0.0
    %1303 = vmatpush.msra.mxu0 0.0
    %1304 = vmatpush.msra.mxu0 0.0
    %1305 = vmatpush.msra.mxu0 0.0
    %1306 = vmatpush.msra.mxu0 0.0
    %1307 = vmatpush.msra.mxu0 0.0
    %1308 = vmatpush.msra.mxu0 0.0
    %1309 = vmatpush.msra.mxu0 0.0
    %1310 = vmatpush.msra.mxu0 %v179
    %1311 = vmatpush.msra.mxu0 %v175
    %1312 = vmatpush.msra.mxu0 %v171
    %1313 = vmatpush.msra.mxu0 %v167
    %1314 = vmatpush.msra.mxu0 %v163
    %1315 = vmatmul.f32.gmra.mxu0 %v1237
    %v1316 = vpop.f32.mrf.mxu0
    %v1317 = vadd.f32 %v1297, %v1316
    %1318 = vdwg.mxu0
    %1319 = vmatpush.msra.mxu0 %v160
    %1320 = vmatpush.msra.mxu0 %v156
    %1321 = vmatpush.msra.mxu0 %v152
    %1322 = vmatpush.msra.mxu0 %v148
    %1323 = vmatpush.msra.mxu0 %v144
    %1324 = vmatpush.msra.mxu0 %v140
    %1325 = vmatpush.msra.mxu0 %v136
    %1326 = vmatpush.msra.mxu0 %v132
    %1327 = vmatpush.msra.mxu0 %v128
    %1328 = vmatpush.msra.mxu0 %v124
    %1329 = vmatpush.msra.mxu0 %v120
    %1330 = vmatpush.msra.mxu0 %v116
    %1331 = vmatpush.msra.mxu0 %v112
    %1332 = vmatpush.msra.mxu0 %v108
    %1333 = vmatpush.msra.mxu0 %v104
    %1334 = vmatpush.msra.mxu0 %v100
    %1335 = vmatmul.f32.gmra.mxu0 %v1235
    %v1336 = vpop.f32.mrf.mxu0
    %v1337 = vadd.f32 0.0, %v1336
    %1338 = vdwg.mxu0
    %1339 = vmatpush.msra.mxu0 0.0
    %1340 = vmatpush.msra.mxu0 0.0
    %1341 = vmatpush.msra.mxu0 0.0
    %1342 = vmatpush.msra.mxu0 0.0
    %1343 = vmatpush.msra.mxu0 0.0
    %1344 = vmatpush.msra.mxu0 0.0
    %1345 = vmatpush.msra.mxu0 0.0
    %1346 = vmatpush.msra.mxu0 0.0
    %1347 = vmatpush.msra.mxu0 0.0
    %1348 = vmatpush.msra.mxu0 0.0
    %1349 = vmatpush.msra.mxu0 0.0
    %1350 = vmatpush.msra.mxu0 %v180
    %1351 = vmatpush.msra.mxu0 %v176
    %1352 = vmatpush.msra.mxu0 %v172
    %1353 = vmatpush.msra.mxu0 %v168
    %1354 = vmatpush.msra.mxu0 %v164
    %1355 = vmatmul.f32.gmra.mxu0 %v1237
    %v1356 = vpop.f32.mrf.mxu0
    %v1357 = vadd.f32 %v1337, %v1356
    %1358 = vdwg.mxu0
    %1359 = vmatpush.msra.mxu0 %v161
    %1360 = vmatpush.msra.mxu0 %v157
    %1361 = vmatpush.msra.mxu0 %v153
    %1362 = vmatpush.msra.mxu0 %v149
    %1363 = vmatpush.msra.mxu0 %v145
    %1364 = vmatpush.msra.mxu0 %v141
    %1365 = vmatpush.msra.mxu0 %v137
    %1366 = vmatpush.msra.mxu0 %v133
    %1367 = vmatpush.msra.mxu0 %v129
    %1368 = vmatpush.msra.mxu0 %v125
    %1369 = vmatpush.msra.mxu0 %v121
    %1370 = vmatpush.msra.mxu0 %v117
    %1371 = vmatpush.msra.mxu0 %v113
    %1372 = vmatpush.msra.mxu0 %v109
    %1373 = vmatpush.msra.mxu0 %v105
    %1374 = vmatpush.msra.mxu0 %v101
    %1375 = vmatmul.f32.gmra.mxu0 %v1235
    %v1376 = vpop.f32.mrf.mxu0
    %v1377 = vadd.f32 0.0, %v1376
    %1378 = vdwg.mxu0
    %1379 = vmatpush.msra.mxu0 0.0
    %1380 = vmatpush.msra.mxu0 0.0
    %1381 = vmatpush.msra.mxu0 0.0
    %1382 = vmatpush.msra.mxu0 0.0
    %1383 = vmatpush.msra.mxu0 0.0
    %1384 = vmatpush.msra.mxu0 0.0
    %1385 = vmatpush.msra.mxu0 0.0
    %1386 = vmatpush.msra.mxu0 0.0
    %1387 = vmatpush.msra.mxu0 0.0
    %1388 = vmatpush.msra.mxu0 0.0
    %1389 = vmatpush.msra.mxu0 0.0
    %1390 = vmatpush.msra.mxu0 %v181
    %1391 = vmatpush.msra.mxu0 %v177
    %1392 = vmatpush.msra.mxu0 %v173
    %1393 = vmatpush.msra.mxu0 %v169
    %1394 = vmatpush.msra.mxu0 %v165
    %1395 = vmatmul.f32.gmra.mxu0 %v1237
    %v1396 = vpop.f32.mrf.mxu0
    %v1397 = vadd.f32 %v1377, %v1396
    %1398 = vdwg.mxu0
    %v1399 = vmax.f32 %v1277, %v1317
    %v1400 = vmax.f32 %v1357, %v1397
    %v1401 = vmax.f32 %v1399, %v1400
    %v1402 = vld [vmem:[%s0 + $0x18] sm:$0xff]
    %v1403 = vld [vmem:[%s0 + $0x20] sm:$0xff]
    %1406 = vrot.lane.b32.xlu0 %v1402, 120
    %v1407 = vpop.permute.xlu0 %1406
    %1408 = vrot.lane.b32.xlu0 %v1403, 120
    %v1409 = vpop.permute.xlu0 %1408
    %vm1410 = vcmask 982016
    %v1411 = vsel %vm1410, %v1407, %v1409
    %v1413 = vsel %vm184, %v1409, 0
    %1415 = vmatpush.msra.mxu0 %v158
    %1416 = vmatpush.msra.mxu0 %v154
    %1417 = vmatpush.msra.mxu0 %v150
    %1418 = vmatpush.msra.mxu0 %v146
    %1419 = vmatpush.msra.mxu0 %v142
    %1420 = vmatpush.msra.mxu0 %v138
    %1421 = vmatpush.msra.mxu0 %v134
    %1422 = vmatpush.msra.mxu0 %v130
    %1423 = vmatpush.msra.mxu0 %v126
    %1424 = vmatpush.msra.mxu0 %v122
    %1425 = vmatpush.msra.mxu0 %v118
    %1426 = vmatpush.msra.mxu0 %v114
    %1427 = vmatpush.msra.mxu0 %v110
    %1428 = vmatpush.msra.mxu0 %v106
    %1429 = vmatpush.msra.mxu0 %v102
    %1430 = vmatpush.msra.mxu0 %v98
    %1431 = vmatmul.f32.gmra.mxu0 %v1411
    %v1432 = vpop.f32.mrf.mxu0
    %v1433 = vadd.f32 0.0, %v1432
    %1434 = vdwg.mxu0
    %1435 = vmatpush.msra.mxu0 0.0
    %1436 = vmatpush.msra.mxu0 0.0
    %1437 = vmatpush.msra.mxu0 0.0
    %1438 = vmatpush.msra.mxu0 0.0
    %1439 = vmatpush.msra.mxu0 0.0
    %1440 = vmatpush.msra.mxu0 0.0
    %1441 = vmatpush.msra.mxu0 0.0
    %1442 = vmatpush.msra.mxu0 0.0
    %1443 = vmatpush.msra.mxu0 0.0
    %1444 = vmatpush.msra.mxu0 0.0
    %1445 = vmatpush.msra.mxu0 0.0
    %1446 = vmatpush.msra.mxu0 %v178
    %1447 = vmatpush.msra.mxu0 %v174
    %1448 = vmatpush.msra.mxu0 %v170
    %1449 = vmatpush.msra.mxu0 %v166
    %1450 = vmatpush.msra.mxu0 %v162
    %1451 = vmatmul.f32.gmra.mxu0 %v1413
    %v1452 = vpop.f32.mrf.mxu0
    %v1453 = vadd.f32 %v1433, %v1452
    %1454 = vdwg.mxu0
    %1455 = vmatpush.msra.mxu0 %v159
    %1456 = vmatpush.msra.mxu0 %v155
    %1457 = vmatpush.msra.mxu0 %v151
    %1458 = vmatpush.msra.mxu0 %v147
    %1459 = vmatpush.msra.mxu0 %v143
    %1460 = vmatpush.msra.mxu0 %v139
    %1461 = vmatpush.msra.mxu0 %v135
    %1462 = vmatpush.msra.mxu0 %v131
    %1463 = vmatpush.msra.mxu0 %v127
    %1464 = vmatpush.msra.mxu0 %v123
    %1465 = vmatpush.msra.mxu0 %v119
    %1466 = vmatpush.msra.mxu0 %v115
    %1467 = vmatpush.msra.mxu0 %v111
    %1468 = vmatpush.msra.mxu0 %v107
    %1469 = vmatpush.msra.mxu0 %v103
    %1470 = vmatpush.msra.mxu0 %v99
    %1471 = vmatmul.f32.gmra.mxu0 %v1411
    %v1472 = vpop.f32.mrf.mxu0
    %v1473 = vadd.f32 0.0, %v1472
    %1474 = vdwg.mxu0
    %1475 = vmatpush.msra.mxu0 0.0
    %1476 = vmatpush.msra.mxu0 0.0
    %1477 = vmatpush.msra.mxu0 0.0
    %1478 = vmatpush.msra.mxu0 0.0
    %1479 = vmatpush.msra.mxu0 0.0
    %1480 = vmatpush.msra.mxu0 0.0
    %1481 = vmatpush.msra.mxu0 0.0
    %1482 = vmatpush.msra.mxu0 0.0
    %1483 = vmatpush.msra.mxu0 0.0
    %1484 = vmatpush.msra.mxu0 0.0
    %1485 = vmatpush.msra.mxu0 0.0
    %1486 = vmatpush.msra.mxu0 %v179
    %1487 = vmatpush.msra.mxu0 %v175
    %1488 = vmatpush.msra.mxu0 %v171
    %1489 = vmatpush.msra.mxu0 %v167
    %1490 = vmatpush.msra.mxu0 %v163
    %1491 = vmatmul.f32.gmra.mxu0 %v1413
    %v1492 = vpop.f32.mrf.mxu0
    %v1493 = vadd.f32 %v1473, %v1492
    %1494 = vdwg.mxu0
    %1495 = vmatpush.msra.mxu0 %v160
    %1496 = vmatpush.msra.mxu0 %v156
    %1497 = vmatpush.msra.mxu0 %v152
    %1498 = vmatpush.msra.mxu0 %v148
    %1499 = vmatpush.msra.mxu0 %v144
    %1500 = vmatpush.msra.mxu0 %v140
    %1501 = vmatpush.msra.mxu0 %v136
    %1502 = vmatpush.msra.mxu0 %v132
    %1503 = vmatpush.msra.mxu0 %v128
    %1504 = vmatpush.msra.mxu0 %v124
    %1505 = vmatpush.msra.mxu0 %v120
    %1506 = vmatpush.msra.mxu0 %v116
    %1507 = vmatpush.msra.mxu0 %v112
    %1508 = vmatpush.msra.mxu0 %v108
    %1509 = vmatpush.msra.mxu0 %v104
    %1510 = vmatpush.msra.mxu0 %v100
    %1511 = vmatmul.f32.gmra.mxu0 %v1411
    %v1512 = vpop.f32.mrf.mxu0
    %v1513 = vadd.f32 0.0, %v1512
    %1514 = vdwg.mxu0
    %1515 = vmatpush.msra.mxu0 0.0
    %1516 = vmatpush.msra.mxu0 0.0
    %1517 = vmatpush.msra.mxu0 0.0
    %1518 = vmatpush.msra.mxu0 0.0
    %1519 = vmatpush.msra.mxu0 0.0
    %1520 = vmatpush.msra.mxu0 0.0
    %1521 = vmatpush.msra.mxu0 0.0
    %1522 = vmatpush.msra.mxu0 0.0
    %1523 = vmatpush.msra.mxu0 0.0
    %1524 = vmatpush.msra.mxu0 0.0
    %1525 = vmatpush.msra.mxu0 0.0
    %1526 = vmatpush.msra.mxu0 %v180
    %1527 = vmatpush.msra.mxu0 %v176
    %1528 = vmatpush.msra.mxu0 %v172
    %1529 = vmatpush.msra.mxu0 %v168
    %1530 = vmatpush.msra.mxu0 %v164
    %1531 = vmatmul.f32.gmra.mxu0 %v1413
    %v1532 = vpop.f32.mrf.mxu0
    %v1533 = vadd.f32 %v1513, %v1532
    %1534 = vdwg.mxu0
    %1535 = vmatpush.msra.mxu0 %v161
    %1536 = vmatpush.msra.mxu0 %v157
    %1537 = vmatpush.msra.mxu0 %v153
    %1538 = vmatpush.msra.mxu0 %v149
    %1539 = vmatpush.msra.mxu0 %v145
    %1540 = vmatpush.msra.mxu0 %v141
    %1541 = vmatpush.msra.mxu0 %v137
    %1542 = vmatpush.msra.mxu0 %v133
    %1543 = vmatpush.msra.mxu0 %v129
    %1544 = vmatpush.msra.mxu0 %v125
    %1545 = vmatpush.msra.mxu0 %v121
    %1546 = vmatpush.msra.mxu0 %v117
    %1547 = vmatpush.msra.mxu0 %v113
    %1548 = vmatpush.msra.mxu0 %v109
    %1549 = vmatpush.msra.mxu0 %v105
    %1550 = vmatpush.msra.mxu0 %v101
    %1551 = vmatmul.f32.gmra.mxu0 %v1411
    %v1552 = vpop.f32.mrf.mxu0
    %v1553 = vadd.f32 0.0, %v1552
    %1554 = vdwg.mxu0
    %1555 = vmatpush.msra.mxu0 0.0
    %1556 = vmatpush.msra.mxu0 0.0
    %1557 = vmatpush.msra.mxu0 0.0
    %1558 = vmatpush.msra.mxu0 0.0
    %1559 = vmatpush.msra.mxu0 0.0
    %1560 = vmatpush.msra.mxu0 0.0
    %1561 = vmatpush.msra.mxu0 0.0
    %1562 = vmatpush.msra.mxu0 0.0
    %1563 = vmatpush.msra.mxu0 0.0
    %1564 = vmatpush.msra.mxu0 0.0
    %1565 = vmatpush.msra.mxu0 0.0
    %1566 = vmatpush.msra.mxu0 %v181
    %1567 = vmatpush.msra.mxu0 %v177
    %1568 = vmatpush.msra.mxu0 %v173
    %1569 = vmatpush.msra.mxu0 %v169
    %1570 = vmatpush.msra.mxu0 %v165
    %1571 = vmatmul.f32.gmra.mxu0 %v1413
    %v1572 = vpop.f32.mrf.mxu0
    %v1573 = vadd.f32 %v1553, %v1572
    %1574 = vdwg.mxu0
    %v1575 = vmax.f32 %v1453, %v1493
    %v1576 = vmax.f32 %v1533, %v1573
    %v1577 = vmax.f32 %v1575, %v1576
    %1578 = vrot.lane.b32.xlu0 %v1402, 64
    %v1579 = vpop.permute.xlu0 %1578
    %1580 = vrot.lane.b32.xlu0 %v1403, 64
    %v1581 = vpop.permute.xlu0 %1580
    %vm1582 = vcmask 523264
    %v1583 = vsel %vm1582, %v1579, %v1581
    %v1585 = vsel %vm184, %v1581, 0
    %1587 = vmatpush.msra.mxu0 %v158
    %1588 = vmatpush.msra.mxu0 %v154
    %1589 = vmatpush.msra.mxu0 %v150
    %1590 = vmatpush.msra.mxu0 %v146
    %1591 = vmatpush.msra.mxu0 %v142
    %1592 = vmatpush.msra.mxu0 %v138
    %1593 = vmatpush.msra.mxu0 %v134
    %1594 = vmatpush.msra.mxu0 %v130
    %1595 = vmatpush.msra.mxu0 %v126
    %1596 = vmatpush.msra.mxu0 %v122
    %1597 = vmatpush.msra.mxu0 %v118
    %1598 = vmatpush.msra.mxu0 %v114
    %1599 = vmatpush.msra.mxu0 %v110
    %1600 = vmatpush.msra.mxu0 %v106
    %1601 = vmatpush.msra.mxu0 %v102
    %1602 = vmatpush.msra.mxu0 %v98
    %1603 = vmatmul.f32.gmra.mxu0 %v1583
    %v1604 = vpop.f32.mrf.mxu0
    %v1605 = vadd.f32 0.0, %v1604
    %1606 = vdwg.mxu0
    %1607 = vmatpush.msra.mxu0 0.0
    %1608 = vmatpush.msra.mxu0 0.0
    %1609 = vmatpush.msra.mxu0 0.0
    %1610 = vmatpush.msra.mxu0 0.0
    %1611 = vmatpush.msra.mxu0 0.0
    %1612 = vmatpush.msra.mxu0 0.0
    %1613 = vmatpush.msra.mxu0 0.0
    %1614 = vmatpush.msra.mxu0 0.0
    %1615 = vmatpush.msra.mxu0 0.0
    %1616 = vmatpush.msra.mxu0 0.0
    %1617 = vmatpush.msra.mxu0 0.0
    %1618 = vmatpush.msra.mxu0 %v178
    %1619 = vmatpush.msra.mxu0 %v174
    %1620 = vmatpush.msra.mxu0 %v170
    %1621 = vmatpush.msra.mxu0 %v166
    %1622 = vmatpush.msra.mxu0 %v162
    %1623 = vmatmul.f32.gmra.mxu0 %v1585
    %v1624 = vpop.f32.mrf.mxu0
    %v1625 = vadd.f32 %v1605, %v1624
    %1626 = vdwg.mxu0
    %1627 = vmatpush.msra.mxu0 %v159
    %1628 = vmatpush.msra.mxu0 %v155
    %1629 = vmatpush.msra.mxu0 %v151
    %1630 = vmatpush.msra.mxu0 %v147
    %1631 = vmatpush.msra.mxu0 %v143
    %1632 = vmatpush.msra.mxu0 %v139
    %1633 = vmatpush.msra.mxu0 %v135
    %1634 = vmatpush.msra.mxu0 %v131
    %1635 = vmatpush.msra.mxu0 %v127
    %1636 = vmatpush.msra.mxu0 %v123
    %1637 = vmatpush.msra.mxu0 %v119
    %1638 = vmatpush.msra.mxu0 %v115
    %1639 = vmatpush.msra.mxu0 %v111
    %1640 = vmatpush.msra.mxu0 %v107
    %1641 = vmatpush.msra.mxu0 %v103
    %1642 = vmatpush.msra.mxu0 %v99
    %1643 = vmatmul.f32.gmra.mxu0 %v1583
    %v1644 = vpop.f32.mrf.mxu0
    %v1645 = vadd.f32 0.0, %v1644
    %1646 = vdwg.mxu0
    %1647 = vmatpush.msra.mxu0 0.0
    %1648 = vmatpush.msra.mxu0 0.0
    %1649 = vmatpush.msra.mxu0 0.0
    %1650 = vmatpush.msra.mxu0 0.0
    %1651 = vmatpush.msra.mxu0 0.0
    %1652 = vmatpush.msra.mxu0 0.0
    %1653 = vmatpush.msra.mxu0 0.0
    %1654 = vmatpush.msra.mxu0 0.0
    %1655 = vmatpush.msra.mxu0 0.0
    %1656 = vmatpush.msra.mxu0 0.0
    %1657 = vmatpush.msra.mxu0 0.0
    %1658 = vmatpush.msra.mxu0 %v179
    %1659 = vmatpush.msra.mxu0 %v175
    %1660 = vmatpush.msra.mxu0 %v171
    %1661 = vmatpush.msra.mxu0 %v167
    %1662 = vmatpush.msra.mxu0 %v163
    %1663 = vmatmul.f32.gmra.mxu0 %v1585
    %v1664 = vpop.f32.mrf.mxu0
    %v1665 = vadd.f32 %v1645, %v1664
    %1666 = vdwg.mxu0
    %1667 = vmatpush.msra.mxu0 %v160
    %1668 = vmatpush.msra.mxu0 %v156
    %1669 = vmatpush.msra.mxu0 %v152
    %1670 = vmatpush.msra.mxu0 %v148
    %1671 = vmatpush.msra.mxu0 %v144
    %1672 = vmatpush.msra.mxu0 %v140
    %1673 = vmatpush.msra.mxu0 %v136
    %1674 = vmatpush.msra.mxu0 %v132
    %1675 = vmatpush.msra.mxu0 %v128
    %1676 = vmatpush.msra.mxu0 %v124
    %1677 = vmatpush.msra.mxu0 %v120
    %1678 = vmatpush.msra.mxu0 %v116
    %1679 = vmatpush.msra.mxu0 %v112
    %1680 = vmatpush.msra.mxu0 %v108
    %1681 = vmatpush.msra.mxu0 %v104
    %1682 = vmatpush.msra.mxu0 %v100
    %1683 = vmatmul.f32.gmra.mxu0 %v1583
    %v1684 = vpop.f32.mrf.mxu0
    %v1685 = vadd.f32 0.0, %v1684
    %1686 = vdwg.mxu0
    %1687 = vmatpush.msra.mxu0 0.0
    %1688 = vmatpush.msra.mxu0 0.0
    %1689 = vmatpush.msra.mxu0 0.0
    %1690 = vmatpush.msra.mxu0 0.0
    %1691 = vmatpush.msra.mxu0 0.0
    %1692 = vmatpush.msra.mxu0 0.0
    %1693 = vmatpush.msra.mxu0 0.0
    %1694 = vmatpush.msra.mxu0 0.0
    %1695 = vmatpush.msra.mxu0 0.0
    %1696 = vmatpush.msra.mxu0 0.0
    %1697 = vmatpush.msra.mxu0 0.0
    %1698 = vmatpush.msra.mxu0 %v180
    %1699 = vmatpush.msra.mxu0 %v176
    %1700 = vmatpush.msra.mxu0 %v172
    %1701 = vmatpush.msra.mxu0 %v168
    %1702 = vmatpush.msra.mxu0 %v164
    %1703 = vmatmul.f32.gmra.mxu0 %v1585
    %v1704 = vpop.f32.mrf.mxu0
    %v1705 = vadd.f32 %v1685, %v1704
    %1706 = vdwg.mxu0
    %1707 = vmatpush.msra.mxu0 %v161
    %1708 = vmatpush.msra.mxu0 %v157
    %1709 = vmatpush.msra.mxu0 %v153
    %1710 = vmatpush.msra.mxu0 %v149
    %1711 = vmatpush.msra.mxu0 %v145
    %1712 = vmatpush.msra.mxu0 %v141
    %1713 = vmatpush.msra.mxu0 %v137
    %1714 = vmatpush.msra.mxu0 %v133
    %1715 = vmatpush.msra.mxu0 %v129
    %1716 = vmatpush.msra.mxu0 %v125
    %1717 = vmatpush.msra.mxu0 %v121
    %1718 = vmatpush.msra.mxu0 %v117
    %1719 = vmatpush.msra.mxu0 %v113
    %1720 = vmatpush.msra.mxu0 %v109
    %1721 = vmatpush.msra.mxu0 %v105
    %1722 = vmatpush.msra.mxu0 %v101
    %1723 = vmatmul.f32.gmra.mxu0 %v1583
    %v1724 = vpop.f32.mrf.mxu0
    %v1725 = vadd.f32 0.0, %v1724
    %1726 = vdwg.mxu0
    %1727 = vmatpush.msra.mxu0 0.0
    %1728 = vmatpush.msra.mxu0 0.0
    %1729 = vmatpush.msra.mxu0 0.0
    %1730 = vmatpush.msra.mxu0 0.0
    %1731 = vmatpush.msra.mxu0 0.0
    %1732 = vmatpush.msra.mxu0 0.0
    %1733 = vmatpush.msra.mxu0 0.0
    %1734 = vmatpush.msra.mxu0 0.0
    %1735 = vmatpush.msra.mxu0 0.0
    %1736 = vmatpush.msra.mxu0 0.0
    %1737 = vmatpush.msra.mxu0 0.0
    %1738 = vmatpush.msra.mxu0 %v181
    %1739 = vmatpush.msra.mxu0 %v177
    %1740 = vmatpush.msra.mxu0 %v173
    %1741 = vmatpush.msra.mxu0 %v169
    %1742 = vmatpush.msra.mxu0 %v165
    %1743 = vmatmul.f32.gmra.mxu0 %v1585
    %v1744 = vpop.f32.mrf.mxu0
    %v1745 = vadd.f32 %v1725, %v1744
    %1746 = vdwg.mxu0
    %v1747 = vmax.f32 %v1625, %v1665
    %v1748 = vmax.f32 %v1705, %v1745
    %v1749 = vmax.f32 %v1747, %v1748
    %v1750 = vld [vmem:[%s0 + $0x18] sm:$0xff]
    %v1751 = vld [vmem:[%s0 + $0x20] sm:$0xff]
    %v1752 = vld [vmem:[%s0 + $0x28] sm:$0xff]
    %1756 = vrot.lane.b32.xlu0 %v1750, 8
    %v1757 = vpop.permute.xlu0 %1756
    %1758 = vrot.lane.b32.xlu0 %v1751, 8
    %v1759 = vpop.permute.xlu0 %1758
    %1760 = vrot.lane.b32.xlu0 %v1752, 8
    %v1761 = vpop.permute.xlu0 %1760
    %vm1762 = vcmask 64512
    %v1763 = vsel %vm1762, %v1757, %v1759
    %v1764 = vsel %vm1762, %v1759, %v1761
    %v1766 = vsel %vm184, %v1764, 0
    %1768 = vmatpush.msra.mxu0 %v158
    %1769 = vmatpush.msra.mxu0 %v154
    %1770 = vmatpush.msra.mxu0 %v150
    %1771 = vmatpush.msra.mxu0 %v146
    %1772 = vmatpush.msra.mxu0 %v142
    %1773 = vmatpush.msra.mxu0 %v138
    %1774 = vmatpush.msra.mxu0 %v134
    %1775 = vmatpush.msra.mxu0 %v130
    %1776 = vmatpush.msra.mxu0 %v126
    %1777 = vmatpush.msra.mxu0 %v122
    %1778 = vmatpush.msra.mxu0 %v118
    %1779 = vmatpush.msra.mxu0 %v114
    %1780 = vmatpush.msra.mxu0 %v110
    %1781 = vmatpush.msra.mxu0 %v106
    %1782 = vmatpush.msra.mxu0 %v102
    %1783 = vmatpush.msra.mxu0 %v98
    %1784 = vmatmul.f32.gmra.mxu0 %v1763
    %v1785 = vpop.f32.mrf.mxu0
    %v1786 = vadd.f32 0.0, %v1785
    %1787 = vdwg.mxu0
    %1788 = vmatpush.msra.mxu0 0.0
    %1789 = vmatpush.msra.mxu0 0.0
    %1790 = vmatpush.msra.mxu0 0.0
    %1791 = vmatpush.msra.mxu0 0.0
    %1792 = vmatpush.msra.mxu0 0.0
    %1793 = vmatpush.msra.mxu0 0.0
    %1794 = vmatpush.msra.mxu0 0.0
    %1795 = vmatpush.msra.mxu0 0.0
    %1796 = vmatpush.msra.mxu0 0.0
    %1797 = vmatpush.msra.mxu0 0.0
    %1798 = vmatpush.msra.mxu0 0.0
    %1799 = vmatpush.msra.mxu0 %v178
    %1800 = vmatpush.msra.mxu0 %v174
    %1801 = vmatpush.msra.mxu0 %v170
    %1802 = vmatpush.msra.mxu0 %v166
    %1803 = vmatpush.msra.mxu0 %v162
    %1804 = vmatmul.f32.gmra.mxu0 %v1766
    %v1805 = vpop.f32.mrf.mxu0
    %v1806 = vadd.f32 %v1786, %v1805
    %1807 = vdwg.mxu0
    %1808 = vmatpush.msra.mxu0 %v159
    %1809 = vmatpush.msra.mxu0 %v155
    %1810 = vmatpush.msra.mxu0 %v151
    %1811 = vmatpush.msra.mxu0 %v147
    %1812 = vmatpush.msra.mxu0 %v143
    %1813 = vmatpush.msra.mxu0 %v139
    %1814 = vmatpush.msra.mxu0 %v135
    %1815 = vmatpush.msra.mxu0 %v131
    %1816 = vmatpush.msra.mxu0 %v127
    %1817 = vmatpush.msra.mxu0 %v123
    %1818 = vmatpush.msra.mxu0 %v119
    %1819 = vmatpush.msra.mxu0 %v115
    %1820 = vmatpush.msra.mxu0 %v111
    %1821 = vmatpush.msra.mxu0 %v107
    %1822 = vmatpush.msra.mxu0 %v103
    %1823 = vmatpush.msra.mxu0 %v99
    %1824 = vmatmul.f32.gmra.mxu0 %v1763
    %v1825 = vpop.f32.mrf.mxu0
    %v1826 = vadd.f32 0.0, %v1825
    %1827 = vdwg.mxu0
    %1828 = vmatpush.msra.mxu0 0.0
    %1829 = vmatpush.msra.mxu0 0.0
    %1830 = vmatpush.msra.mxu0 0.0
    %1831 = vmatpush.msra.mxu0 0.0
    %1832 = vmatpush.msra.mxu0 0.0
    %1833 = vmatpush.msra.mxu0 0.0
    %1834 = vmatpush.msra.mxu0 0.0
    %1835 = vmatpush.msra.mxu0 0.0
    %1836 = vmatpush.msra.mxu0 0.0
    %1837 = vmatpush.msra.mxu0 0.0
    %1838 = vmatpush.msra.mxu0 0.0
    %1839 = vmatpush.msra.mxu0 %v179
    %1840 = vmatpush.msra.mxu0 %v175
    %1841 = vmatpush.msra.mxu0 %v171
    %1842 = vmatpush.msra.mxu0 %v167
    %1843 = vmatpush.msra.mxu0 %v163
    %1844 = vmatmul.f32.gmra.mxu0 %v1766
    %v1845 = vpop.f32.mrf.mxu0
    %v1846 = vadd.f32 %v1826, %v1845
    %1847 = vdwg.mxu0
    %1848 = vmatpush.msra.mxu0 %v160
    %1849 = vmatpush.msra.mxu0 %v156
    %1850 = vmatpush.msra.mxu0 %v152
    %1851 = vmatpush.msra.mxu0 %v148
    %1852 = vmatpush.msra.mxu0 %v144
    %1853 = vmatpush.msra.mxu0 %v140
    %1854 = vmatpush.msra.mxu0 %v136
    %1855 = vmatpush.msra.mxu0 %v132
    %1856 = vmatpush.msra.mxu0 %v128
    %1857 = vmatpush.msra.mxu0 %v124
    %1858 = vmatpush.msra.mxu0 %v120
    %1859 = vmatpush.msra.mxu0 %v116
    %1860 = vmatpush.msra.mxu0 %v112
    %1861 = vmatpush.msra.mxu0 %v108
    %1862 = vmatpush.msra.mxu0 %v104
    %1863 = vmatpush.msra.mxu0 %v100
    %1864 = vmatmul.f32.gmra.mxu0 %v1763
    %v1865 = vpop.f32.mrf.mxu0
    %v1866 = vadd.f32 0.0, %v1865
    %1867 = vdwg.mxu0
    %1868 = vmatpush.msra.mxu0 0.0
    %1869 = vmatpush.msra.mxu0 0.0
    %1870 = vmatpush.msra.mxu0 0.0
    %1871 = vmatpush.msra.mxu0 0.0
    %1872 = vmatpush.msra.mxu0 0.0
    %1873 = vmatpush.msra.mxu0 0.0
    %1874 = vmatpush.msra.mxu0 0.0
    %1875 = vmatpush.msra.mxu0 0.0
    %1876 = vmatpush.msra.mxu0 0.0
    %1877 = vmatpush.msra.mxu0 0.0
    %1878 = vmatpush.msra.mxu0 0.0
    %1879 = vmatpush.msra.mxu0 %v180
    %1880 = vmatpush.msra.mxu0 %v176
    %1881 = vmatpush.msra.mxu0 %v172
    %1882 = vmatpush.msra.mxu0 %v168
    %1883 = vmatpush.msra.mxu0 %v164
    %1884 = vmatmul.f32.gmra.mxu0 %v1766
    %v1885 = vpop.f32.mrf.mxu0
    %v1886 = vadd.f32 %v1866, %v1885
    %1887 = vdwg.mxu0
    %1888 = vmatpush.msra.mxu0 %v161
    %1889 = vmatpush.msra.mxu0 %v157
    %1890 = vmatpush.msra.mxu0 %v153
    %1891 = vmatpush.msra.mxu0 %v149
    %1892 = vmatpush.msra.mxu0 %v145
    %1893 = vmatpush.msra.mxu0 %v141
    %1894 = vmatpush.msra.mxu0 %v137
    %1895 = vmatpush.msra.mxu0 %v133
    %1896 = vmatpush.msra.mxu0 %v129
    %1897 = vmatpush.msra.mxu0 %v125
    %1898 = vmatpush.msra.mxu0 %v121
    %1899 = vmatpush.msra.mxu0 %v117
    %1900 = vmatpush.msra.mxu0 %v113
    %1901 = vmatpush.msra.mxu0 %v109
    %1902 = vmatpush.msra.mxu0 %v105
    %1903 = vmatpush.msra.mxu0 %v101
    %1904 = vmatmul.f32.gmra.mxu0 %v1763
    %v1905 = vpop.f32.mrf.mxu0
    %v1906 = vadd.f32 0.0, %v1905
    %1907 = vdwg.mxu0
    %1908 = vmatpush.msra.mxu0 0.0
    %1909 = vmatpush.msra.mxu0 0.0
    %1910 = vmatpush.msra.mxu0 0.0
    %1911 = vmatpush.msra.mxu0 0.0
    %1912 = vmatpush.msra.mxu0 0.0
    %1913 = vmatpush.msra.mxu0 0.0
    %1914 = vmatpush.msra.mxu0 0.0
    %1915 = vmatpush.msra.mxu0 0.0
    %1916 = vmatpush.msra.mxu0 0.0
    %1917 = vmatpush.msra.mxu0 0.0
    %1918 = vmatpush.msra.mxu0 0.0
    %1919 = vmatpush.msra.mxu0 %v181
    %1920 = vmatpush.msra.mxu0 %v177
    %1921 = vmatpush.msra.mxu0 %v173
    %1922 = vmatpush.msra.mxu0 %v169
    %1923 = vmatpush.msra.mxu0 %v165
    %1924 = vmatmul.f32.gmra.mxu0 %v1766
    %v1925 = vpop.f32.mrf.mxu0
    %v1926 = vadd.f32 %v1906, %v1925
    %1927 = vdwg.mxu0
    %v1928 = vmax.f32 %v1806, %v1846
    %v1929 = vmax.f32 %v1886, %v1926
    %v1930 = vmax.f32 %v1928, %v1929
    %1931 = vrot.lane.b32.xlu0 %v1751, 80
    %v1932 = vpop.permute.xlu0 %1931
    %1933 = vrot.lane.b32.xlu0 %v1752, 80
    %v1934 = vpop.permute.xlu0 %1933
    %vm1935 = vcmask 654336
    %v1936 = vsel %vm1935, %v1932, %v1934
    %v1938 = vsel %vm184, %v1934, 0
    %1940 = vmatpush.msra.mxu0 %v158
    %1941 = vmatpush.msra.mxu0 %v154
    %1942 = vmatpush.msra.mxu0 %v150
    %1943 = vmatpush.msra.mxu0 %v146
    %1944 = vmatpush.msra.mxu0 %v142
    %1945 = vmatpush.msra.mxu0 %v138
    %1946 = vmatpush.msra.mxu0 %v134
    %1947 = vmatpush.msra.mxu0 %v130
    %1948 = vmatpush.msra.mxu0 %v126
    %1949 = vmatpush.msra.mxu0 %v122
    %1950 = vmatpush.msra.mxu0 %v118
    %1951 = vmatpush.msra.mxu0 %v114
    %1952 = vmatpush.msra.mxu0 %v110
    %1953 = vmatpush.msra.mxu0 %v106
    %1954 = vmatpush.msra.mxu0 %v102
    %1955 = vmatpush.msra.mxu0 %v98
    %1956 = vmatmul.f32.gmra.mxu0 %v1936
    %v1957 = vpop.f32.mrf.mxu0
    %v1958 = vadd.f32 0.0, %v1957
    %1959 = vdwg.mxu0
    %1960 = vmatpush.msra.mxu0 0.0
    %1961 = vmatpush.msra.mxu0 0.0
    %1962 = vmatpush.msra.mxu0 0.0
    %1963 = vmatpush.msra.mxu0 0.0
    %1964 = vmatpush.msra.mxu0 0.0
    %1965 = vmatpush.msra.mxu0 0.0
    %1966 = vmatpush.msra.mxu0 0.0
    %1967 = vmatpush.msra.mxu0 0.0
    %1968 = vmatpush.msra.mxu0 0.0
    %1969 = vmatpush.msra.mxu0 0.0
    %1970 = vmatpush.msra.mxu0 0.0
    %1971 = vmatpush.msra.mxu0 %v178
    %1972 = vmatpush.msra.mxu0 %v174
    %1973 = vmatpush.msra.mxu0 %v170
    %1974 = vmatpush.msra.mxu0 %v166
    %1975 = vmatpush.msra.mxu0 %v162
    %1976 = vmatmul.f32.gmra.mxu0 %v1938
    %v1977 = vpop.f32.mrf.mxu0
    %v1978 = vadd.f32 %v1958, %v1977
    %1979 = vdwg.mxu0
    %1980 = vmatpush.msra.mxu0 %v159
    %1981 = vmatpush.msra.mxu0 %v155
    %1982 = vmatpush.msra.mxu0 %v151
    %1983 = vmatpush.msra.mxu0 %v147
    %1984 = vmatpush.msra.mxu0 %v143
    %1985 = vmatpush.msra.mxu0 %v139
    %1986 = vmatpush.msra.mxu0 %v135
    %1987 = vmatpush.msra.mxu0 %v131
    %1988 = vmatpush.msra.mxu0 %v127
    %1989 = vmatpush.msra.mxu0 %v123
    %1990 = vmatpush.msra.mxu0 %v119
    %1991 = vmatpush.msra.mxu0 %v115
    %1992 = vmatpush.msra.mxu0 %v111
    %1993 = vmatpush.msra.mxu0 %v107
    %1994 = vmatpush.msra.mxu0 %v103
    %1995 = vmatpush.msra.mxu0 %v99
    %1996 = vmatmul.f32.gmra.mxu0 %v1936
    %v1997 = vpop.f32.mrf.mxu0
    %v1998 = vadd.f32 0.0, %v1997
    %1999 = vdwg.mxu0
    %2000 = vmatpush.msra.mxu0 0.0
    %2001 = vmatpush.msra.mxu0 0.0
    %2002 = vmatpush.msra.mxu0 0.0
    %2003 = vmatpush.msra.mxu0 0.0
    %2004 = vmatpush.msra.mxu0 0.0
    %2005 = vmatpush.msra.mxu0 0.0
    %2006 = vmatpush.msra.mxu0 0.0
    %2007 = vmatpush.msra.mxu0 0.0
    %2008 = vmatpush.msra.mxu0 0.0
    %2009 = vmatpush.msra.mxu0 0.0
    %2010 = vmatpush.msra.mxu0 0.0
    %2011 = vmatpush.msra.mxu0 %v179
    %2012 = vmatpush.msra.mxu0 %v175
    %2013 = vmatpush.msra.mxu0 %v171
    %2014 = vmatpush.msra.mxu0 %v167
    %2015 = vmatpush.msra.mxu0 %v163
    %2016 = vmatmul.f32.gmra.mxu0 %v1938
    %v2017 = vpop.f32.mrf.mxu0
    %v2018 = vadd.f32 %v1998, %v2017
    %2019 = vdwg.mxu0
    %2020 = vmatpush.msra.mxu0 %v160
    %2021 = vmatpush.msra.mxu0 %v156
    %2022 = vmatpush.msra.mxu0 %v152
    %2023 = vmatpush.msra.mxu0 %v148
    %2024 = vmatpush.msra.mxu0 %v144
    %2025 = vmatpush.msra.mxu0 %v140
    %2026 = vmatpush.msra.mxu0 %v136
    %2027 = vmatpush.msra.mxu0 %v132
    %2028 = vmatpush.msra.mxu0 %v128
    %2029 = vmatpush.msra.mxu0 %v124
    %2030 = vmatpush.msra.mxu0 %v120
    %2031 = vmatpush.msra.mxu0 %v116
    %2032 = vmatpush.msra.mxu0 %v112
    %2033 = vmatpush.msra.mxu0 %v108
    %2034 = vmatpush.msra.mxu0 %v104
    %2035 = vmatpush.msra.mxu0 %v100
    %2036 = vmatmul.f32.gmra.mxu0 %v1936
    %v2037 = vpop.f32.mrf.mxu0
    %v2038 = vadd.f32 0.0, %v2037
    %2039 = vdwg.mxu0
    %2040 = vmatpush.msra.mxu0 0.0
    %2041 = vmatpush.msra.mxu0 0.0
    %2042 = vmatpush.msra.mxu0 0.0
    %2043 = vmatpush.msra.mxu0 0.0
    %2044 = vmatpush.msra.mxu0 0.0
    %2045 = vmatpush.msra.mxu0 0.0
    %2046 = vmatpush.msra.mxu0 0.0
    %2047 = vmatpush.msra.mxu0 0.0
    %2048 = vmatpush.msra.mxu0 0.0
    %2049 = vmatpush.msra.mxu0 0.0
    %2050 = vmatpush.msra.mxu0 0.0
    %2051 = vmatpush.msra.mxu0 %v180
    %2052 = vmatpush.msra.mxu0 %v176
    %2053 = vmatpush.msra.mxu0 %v172
    %2054 = vmatpush.msra.mxu0 %v168
    %2055 = vmatpush.msra.mxu0 %v164
    %2056 = vmatmul.f32.gmra.mxu0 %v1938
    %v2057 = vpop.f32.mrf.mxu0
    %v2058 = vadd.f32 %v2038, %v2057
    %2059 = vdwg.mxu0
    %2060 = vmatpush.msra.mxu0 %v161
    %2061 = vmatpush.msra.mxu0 %v157
    %2062 = vmatpush.msra.mxu0 %v153
    %2063 = vmatpush.msra.mxu0 %v149
    %2064 = vmatpush.msra.mxu0 %v145
    %2065 = vmatpush.msra.mxu0 %v141
    %2066 = vmatpush.msra.mxu0 %v137
    %2067 = vmatpush.msra.mxu0 %v133
    %2068 = vmatpush.msra.mxu0 %v129
    %2069 = vmatpush.msra.mxu0 %v125
    %2070 = vmatpush.msra.mxu0 %v121
    %2071 = vmatpush.msra.mxu0 %v117
    %2072 = vmatpush.msra.mxu0 %v113
    %2073 = vmatpush.msra.mxu0 %v109
    %2074 = vmatpush.msra.mxu0 %v105
    %2075 = vmatpush.msra.mxu0 %v101
    %2076 = vmatmul.f32.gmra.mxu0 %v1936
    %v2077 = vpop.f32.mrf.mxu0
    %v2078 = vadd.f32 0.0, %v2077
    %2079 = vdwg.mxu0
    %2080 = vmatpush.msra.mxu0 0.0
    %2081 = vmatpush.msra.mxu0 0.0
    %2082 = vmatpush.msra.mxu0 0.0
    %2083 = vmatpush.msra.mxu0 0.0
    %2084 = vmatpush.msra.mxu0 0.0
    %2085 = vmatpush.msra.mxu0 0.0
    %2086 = vmatpush.msra.mxu0 0.0
    %2087 = vmatpush.msra.mxu0 0.0
    %2088 = vmatpush.msra.mxu0 0.0
    %2089 = vmatpush.msra.mxu0 0.0
    %2090 = vmatpush.msra.mxu0 0.0
    %2091 = vmatpush.msra.mxu0 %v181
    %2092 = vmatpush.msra.mxu0 %v177
    %2093 = vmatpush.msra.mxu0 %v173
    %2094 = vmatpush.msra.mxu0 %v169
    %2095 = vmatpush.msra.mxu0 %v165
    %2096 = vmatmul.f32.gmra.mxu0 %v1938
    %v2097 = vpop.f32.mrf.mxu0
    %v2098 = vadd.f32 %v2078, %v2097
    %2099 = vdwg.mxu0
    %v2100 = vmax.f32 %v1978, %v2018
    %v2101 = vmax.f32 %v2058, %v2098
    %v2102 = vmax.f32 %v2100, %v2101
    %v2103 = vld [vmem:[%s0 + $0x20] sm:$0xff]
    %v2104 = vld [vmem:[%s0 + $0x28] sm:$0xff]
    %v2105 = vld [vmem:[%s0 + $0x30] sm:$0xff]
    %2109 = vrot.lane.b32.xlu0 %v2103, 24
    %v2110 = vpop.permute.xlu0 %2109
    %2111 = vrot.lane.b32.xlu0 %v2104, 24
    %v2112 = vpop.permute.xlu0 %2111
    %2113 = vrot.lane.b32.xlu0 %v2105, 24
    %v2114 = vpop.permute.xlu0 %2113
    %vm2115 = vcmask 195584
    %v2116 = vsel %vm2115, %v2110, %v2112
    %v2117 = vsel %vm2115, %v2112, %v2114
    %v2119 = vsel %vm184, %v2117, 0
    %2121 = vmatpush.msra.mxu0 %v158
    %2122 = vmatpush.msra.mxu0 %v154
    %2123 = vmatpush.msra.mxu0 %v150
    %2124 = vmatpush.msra.mxu0 %v146
    %2125 = vmatpush.msra.mxu0 %v142
    %2126 = vmatpush.msra.mxu0 %v138
    %2127 = vmatpush.msra.mxu0 %v134
    %2128 = vmatpush.msra.mxu0 %v130
    %2129 = vmatpush.msra.mxu0 %v126
    %2130 = vmatpush.msra.mxu0 %v122
    %2131 = vmatpush.msra.mxu0 %v118
    %2132 = vmatpush.msra.mxu0 %v114
    %2133 = vmatpush.msra.mxu0 %v110
    %2134 = vmatpush.msra.mxu0 %v106
    %2135 = vmatpush.msra.mxu0 %v102
    %2136 = vmatpush.msra.mxu0 %v98
    %2137 = vmatmul.f32.gmra.mxu0 %v2116
    %v2138 = vpop.f32.mrf.mxu0
    %v2139 = vadd.f32 0.0, %v2138
    %2140 = vdwg.mxu0
    %2141 = vmatpush.msra.mxu0 0.0
    %2142 = vmatpush.msra.mxu0 0.0
    %2143 = vmatpush.msra.mxu0 0.0
    %2144 = vmatpush.msra.mxu0 0.0
    %2145 = vmatpush.msra.mxu0 0.0
    %2146 = vmatpush.msra.mxu0 0.0
    %2147 = vmatpush.msra.mxu0 0.0
    %2148 = vmatpush.msra.mxu0 0.0
    %2149 = vmatpush.msra.mxu0 0.0
    %2150 = vmatpush.msra.mxu0 0.0
    %2151 = vmatpush.msra.mxu0 0.0
    %2152 = vmatpush.msra.mxu0 %v178
    %2153 = vmatpush.msra.mxu0 %v174
    %2154 = vmatpush.msra.mxu0 %v170
    %2155 = vmatpush.msra.mxu0 %v166
    %2156 = vmatpush.msra.mxu0 %v162
    %2157 = vmatmul.f32.gmra.mxu0 %v2119
    %v2158 = vpop.f32.mrf.mxu0
    %v2159 = vadd.f32 %v2139, %v2158
    %2160 = vdwg.mxu0
    %2161 = vmatpush.msra.mxu0 %v159
    %2162 = vmatpush.msra.mxu0 %v155
    %2163 = vmatpush.msra.mxu0 %v151
    %2164 = vmatpush.msra.mxu0 %v147
    %2165 = vmatpush.msra.mxu0 %v143
    %2166 = vmatpush.msra.mxu0 %v139
    %2167 = vmatpush.msra.mxu0 %v135
    %2168 = vmatpush.msra.mxu0 %v131
    %2169 = vmatpush.msra.mxu0 %v127
    %2170 = vmatpush.msra.mxu0 %v123
    %2171 = vmatpush.msra.mxu0 %v119
    %2172 = vmatpush.msra.mxu0 %v115
    %2173 = vmatpush.msra.mxu0 %v111
    %2174 = vmatpush.msra.mxu0 %v107
    %2175 = vmatpush.msra.mxu0 %v103
    %2176 = vmatpush.msra.mxu0 %v99
    %2177 = vmatmul.f32.gmra.mxu0 %v2116
    %v2178 = vpop.f32.mrf.mxu0
    %v2179 = vadd.f32 0.0, %v2178
    %2180 = vdwg.mxu0
    %2181 = vmatpush.msra.mxu0 0.0
    %2182 = vmatpush.msra.mxu0 0.0
    %2183 = vmatpush.msra.mxu0 0.0
    %2184 = vmatpush.msra.mxu0 0.0
    %2185 = vmatpush.msra.mxu0 0.0
    %2186 = vmatpush.msra.mxu0 0.0
    %2187 = vmatpush.msra.mxu0 0.0
    %2188 = vmatpush.msra.mxu0 0.0
    %2189 = vmatpush.msra.mxu0 0.0
    %2190 = vmatpush.msra.mxu0 0.0
    %2191 = vmatpush.msra.mxu0 0.0
    %2192 = vmatpush.msra.mxu0 %v179
    %2193 = vmatpush.msra.mxu0 %v175
    %2194 = vmatpush.msra.mxu0 %v171
    %2195 = vmatpush.msra.mxu0 %v167
    %2196 = vmatpush.msra.mxu0 %v163
    %2197 = vmatmul.f32.gmra.mxu0 %v2119
    %v2198 = vpop.f32.mrf.mxu0
    %v2199 = vadd.f32 %v2179, %v2198
    %2200 = vdwg.mxu0
    %2201 = vmatpush.msra.mxu0 %v160
    %2202 = vmatpush.msra.mxu0 %v156
    %2203 = vmatpush.msra.mxu0 %v152
    %2204 = vmatpush.msra.mxu0 %v148
    %2205 = vmatpush.msra.mxu0 %v144
    %2206 = vmatpush.msra.mxu0 %v140
    %2207 = vmatpush.msra.mxu0 %v136
    %2208 = vmatpush.msra.mxu0 %v132
    %2209 = vmatpush.msra.mxu0 %v128
    %2210 = vmatpush.msra.mxu0 %v124
    %2211 = vmatpush.msra.mxu0 %v120
    %2212 = vmatpush.msra.mxu0 %v116
    %2213 = vmatpush.msra.mxu0 %v112
    %2214 = vmatpush.msra.mxu0 %v108
    %2215 = vmatpush.msra.mxu0 %v104
    %2216 = vmatpush.msra.mxu0 %v100
    %2217 = vmatmul.f32.gmra.mxu0 %v2116
    %v2218 = vpop.f32.mrf.mxu0
    %v2219 = vadd.f32 0.0, %v2218
    %2220 = vdwg.mxu0
    %2221 = vmatpush.msra.mxu0 0.0
    %2222 = vmatpush.msra.mxu0 0.0
    %2223 = vmatpush.msra.mxu0 0.0
    %2224 = vmatpush.msra.mxu0 0.0
    %2225 = vmatpush.msra.mxu0 0.0
    %2226 = vmatpush.msra.mxu0 0.0
    %2227 = vmatpush.msra.mxu0 0.0
    %2228 = vmatpush.msra.mxu0 0.0
    %2229 = vmatpush.msra.mxu0 0.0
    %2230 = vmatpush.msra.mxu0 0.0
    %2231 = vmatpush.msra.mxu0 0.0
    %2232 = vmatpush.msra.mxu0 %v180
    %2233 = vmatpush.msra.mxu0 %v176
    %2234 = vmatpush.msra.mxu0 %v172
    %2235 = vmatpush.msra.mxu0 %v168
    %2236 = vmatpush.msra.mxu0 %v164
    %2237 = vmatmul.f32.gmra.mxu0 %v2119
    %v2238 = vpop.f32.mrf.mxu0
    %v2239 = vadd.f32 %v2219, %v2238
    %2240 = vdwg.mxu0
    %2241 = vmatpush.msra.mxu0 %v161
    %2242 = vmatpush.msra.mxu0 %v157
    %2243 = vmatpush.msra.mxu0 %v153
    %2244 = vmatpush.msra.mxu0 %v149
    %2245 = vmatpush.msra.mxu0 %v145
    %2246 = vmatpush.msra.mxu0 %v141
    %2247 = vmatpush.msra.mxu0 %v137
    %2248 = vmatpush.msra.mxu0 %v133
    %2249 = vmatpush.msra.mxu0 %v129
    %2250 = vmatpush.msra.mxu0 %v125
    %2251 = vmatpush.msra.mxu0 %v121
    %2252 = vmatpush.msra.mxu0 %v117
    %2253 = vmatpush.msra.mxu0 %v113
    %2254 = vmatpush.msra.mxu0 %v109
    %2255 = vmatpush.msra.mxu0 %v105
    %2256 = vmatpush.msra.mxu0 %v101
    %2257 = vmatmul.f32.gmra.mxu0 %v2116
    %v2258 = vpop.f32.mrf.mxu0
    %v2259 = vadd.f32 0.0, %v2258
    %2260 = vdwg.mxu0
    %2261 = vmatpush.msra.mxu0 0.0
    %2262 = vmatpush.msra.mxu0 0.0
    %2263 = vmatpush.msra.mxu0 0.0
    %2264 = vmatpush.msra.mxu0 0.0
    %2265 = vmatpush.msra.mxu0 0.0
    %2266 = vmatpush.msra.mxu0 0.0
    %2267 = vmatpush.msra.mxu0 0.0
    %2268 = vmatpush.msra.mxu0 0.0
    %2269 = vmatpush.msra.mxu0 0.0
    %2270 = vmatpush.msra.mxu0 0.0
    %2271 = vmatpush.msra.mxu0 0.0
    %2272 = vmatpush.msra.mxu0 %v181
    %2273 = vmatpush.msra.mxu0 %v177
    %2274 = vmatpush.msra.mxu0 %v173
    %2275 = vmatpush.msra.mxu0 %v169
    %2276 = vmatpush.msra.mxu0 %v165
    %2277 = vmatmul.f32.gmra.mxu0 %v2119
    %v2278 = vpop.f32.mrf.mxu0
    %v2279 = vadd.f32 %v2259, %v2278
    %2280 = vdwg.mxu0
    %v2281 = vmax.f32 %v2159, %v2199
    %v2282 = vmax.f32 %v2239, %v2279
    %v2283 = vmax.f32 %v2281, %v2282
    %v2284 = vld [vmem:[%s2] sm:$0x1]
    %v2286 = vperm.slane %v2284, 0
    %v2288 = vadd.f32 %v350, %v2286
    %v2289 = vadd.f32 %v523, %v2286
    %v2290 = vadd.f32 %v704, %v2286
    %v2291 = vadd.f32 %v876, %v2286
    %v2292 = vadd.f32 %v1057, %v2286
    %v2293 = vadd.f32 %v1229, %v2286
    %v2294 = vadd.f32 %v1401, %v2286
    %v2295 = vadd.f32 %v1577, %v2286
    %v2296 = vadd.f32 %v1749, %v2286
    %v2297 = vadd.f32 %v1930, %v2286
    %v2298 = vadd.f32 %v2102, %v2286
    %v2299 = vadd.f32 %v2283, %v2286
    %v2300 = vmax.f32 %v2288, 0.0
    %v2301 = vmax.f32 %v2289, 0.0
    %v2302 = vmax.f32 %v2290, 0.0
    %v2303 = vmax.f32 %v2291, 0.0
    %v2304 = vmax.f32 %v2292, 0.0
    %v2305 = vmax.f32 %v2293, 0.0
    %v2306 = vmax.f32 %v2294, 0.0
    %v2307 = vmax.f32 %v2295, 0.0
    %v2308 = vmax.f32 %v2296, 0.0
    %v2309 = vmax.f32 %v2297, 0.0
    %v2310 = vmax.f32 %v2298, 0.0
    %v2311 = vmax.f32 %v2299, 0.0
    %v2312 = vld [vmem:[#allocation4] sm:$0xff]
    %v2313 = vld [vmem:[#allocation4 + $0x8] sm:$0xff]
    %v2314 = vld [vmem:[#allocation4 + $0x10] sm:$0xff]
    %v2315 = vld [vmem:[#allocation4 + $0x18] sm:$0xff]
    %v2316 = vld [vmem:[#allocation4 + $0x20] sm:$0xff]
    %v2317 = vld [vmem:[#allocation4 + $0x28] sm:$0xff]
    %v2318 = vld [vmem:[#allocation4 + $0x30] sm:$0xff]
    %v2319 = vld [vmem:[#allocation4 + $0x38] sm:$0xff]
    %v2320 = vld [vmem:[#allocation4 + $0x40] sm:$0xff]
    %v2321 = vld [vmem:[#allocation4 + $0x48] sm:$0xff]
    %v2322 = vld [vmem:[#allocation4 + $0x50] sm:$0xff]
    %v2323 = vld [vmem:[#allocation4 + $0x58] sm:$0xff]
    %v2324 = vld [vmem:[#allocation4 + $0x60] sm:$0xff]
    %v2325 = vld [vmem:[#allocation4 + $0x68] sm:$0xff]
    %v2326 = vld [vmem:[#allocation4 + $0x70] sm:$0xff]
    %v2327 = vld [vmem:[#allocation4 + $0x78] sm:$0xff]
    %v2328 = vld [vmem:[#allocation4 + $0x80] sm:$0xff]
    %v2329 = vld [vmem:[#allocation4 + $0x88] sm:$0xff]
    %v2330 = vld [vmem:[#allocation4 + $0x90] sm:$0xff]
    %v2331 = vld [vmem:[#allocation4 + $0x98] sm:$0xff]
    %v2332 = vld [vmem:[#allocation4 + $0xa0] sm:$0xff]
    %v2333 = vld [vmem:[#allocation4 + $0xa8] sm:$0xff]
    %v2334 = vld [vmem:[#allocation4 + $0xb0] sm:$0xff]
    %v2335 = vld [vmem:[#allocation4 + $0xb8] sm:$0xff]
    %v2336 = vld [vmem:[#allocation4 + $0xc0] sm:$0xff]
    %v2337 = vld [vmem:[#allocation4 + $0xc8] sm:$0xff]
    %v2338 = vld [vmem:[#allocation4 + $0xd0] sm:$0xff]
    %v2339 = vld [vmem:[#allocation4 + $0xd8] sm:$0xff]
    %v2340 = vld [vmem:[#allocation4 + $0xe0] sm:$0xff]
    %v2341 = vld [vmem:[#allocation4 + $0xe8] sm:$0xff]
    %s2342 = scalar_lea.vmem [#allocation4], 240
    %v2343 = vld [vmem:[%s2342] sm:$0xff]
    %v2344 = vld [vmem:[%s2342 + $0x8] sm:$0xff]
    %v2345 = vld [vmem:[%s2342 + $0x10] sm:$0xff]
    %v2346 = vld [vmem:[%s2342 + $0x18] sm:$0xff]
    %v2347 = vld [vmem:[%s2342 + $0x20] sm:$0xff]
    %v2348 = vld [vmem:[%s2342 + $0x28] sm:$0xff]
    %v2349 = vld [vmem:[%s2342 + $0x30] sm:$0xff]
    %v2350 = vld [vmem:[%s2342 + $0x38] sm:$0xff]
    %v2351 = vld [vmem:[%s2342 + $0x40] sm:$0xff]
    %v2352 = vld [vmem:[%s2342 + $0x48] sm:$0xff]
    %v2353 = vld [vmem:[%s2342 + $0x50] sm:$0xff]
    %v2354 = vld [vmem:[%s2342 + $0x58] sm:$0xff]
    %v2355 = vld [vmem:[%s2342 + $0x60] sm:$0xff]
    %v2356 = vld [vmem:[%s2342 + $0x68] sm:$0xff]
    %v2357 = vld [vmem:[%s2342 + $0x70] sm:$0xff]
    %v2358 = vld [vmem:[%s2342 + $0x78] sm:$0xff]
    %v2359 = vld [vmem:[%s2342 + $0x80] sm:$0xff]
    %v2360 = vld [vmem:[%s2342 + $0x88] sm:$0xff]
    %v2361 = vld [vmem:[%s2342 + $0x90] sm:$0xff]
    %v2362 = vld [vmem:[%s2342 + $0x98] sm:$0xff]
    %v2363 = vld [vmem:[%s2342 + $0xa0] sm:$0xff]
    %v2364 = vld [vmem:[%s2342 + $0xa8] sm:$0xff]
    %v2365 = vld [vmem:[%s2342 + $0xb0] sm:$0xff]
    %v2366 = vld [vmem:[%s2342 + $0xb8] sm:$0xff]
    %v2367 = vld [vmem:[%s2342 + $0xc0] sm:$0xff]
    %v2368 = vld [vmem:[%s2342 + $0xc8] sm:$0xff]
    %v2369 = vld [vmem:[%s2342 + $0xd0] sm:$0xff]
    %v2370 = vld [vmem:[%s2342 + $0xd8] sm:$0xff]
    %v2371 = vld [vmem:[%s2342 + $0xe0] sm:$0xff]
    %v2372 = vld [vmem:[%s2342 + $0xe8] sm:$0xff]
    %v2374 = vsel %vm1410, %v2301, 0
    %v2377 = vsel %vm1410, %v2302, 0
    %v2380 = vsel %vm1410, %v2303, 0
    %v2383 = vsel %vm1410, %v2304, 0
    %v2386 = vsel %vm1410, %v2305, 0
    %v2389 = vsel %vm1410, %v2306, 0
    %v2392 = vsel %vm1410, %v2307, 0
    %v2395 = vsel %vm1410, %v2308, 0
    %2397 = vmatpush.msra.mxu0 0.0
    %2398 = vmatpush.msra.mxu0 %v2371
    %2399 = vmatpush.msra.mxu0 %v2369
    %2400 = vmatpush.msra.mxu0 %v2367
    %2401 = vmatpush.msra.mxu0 %v2365
    %2402 = vmatpush.msra.mxu0 %v2363
    %2403 = vmatpush.msra.mxu0 %v2361
    %2404 = vmatpush.msra.mxu0 %v2359
    %2405 = vmatpush.msra.mxu0 %v2357
    %2406 = vmatpush.msra.mxu0 %v2355
    %2407 = vmatpush.msra.mxu0 %v2353
    %2408 = vmatpush.msra.mxu0 %v2351
    %2409 = vmatpush.msra.mxu0 %v2349
    %2410 = vmatpush.msra.mxu0 %v2347
    %2411 = vmatpush.msra.mxu0 %v2345
    %2412 = vmatpush.msra.mxu0 %v2343
    %2413 = vmatmul.f32.gmra.mxu0 %v2374
    %v2414 = vpop.f32.mrf.mxu0
    %v2415 = vadd.f32 0.0, %v2414
    %2416 = vmatmul.f32.gmra.mxu0 %v2377
    %v2417 = vpop.f32.mrf.mxu0
    %v2418 = vadd.f32 0.0, %v2417
    %2419 = vmatmul.f32.gmra.mxu0 %v2380
    %v2420 = vpop.f32.mrf.mxu0
    %v2421 = vadd.f32 0.0, %v2420
    %2422 = vmatmul.f32.gmra.mxu0 %v2383
    %v2423 = vpop.f32.mrf.mxu0
    %v2424 = vadd.f32 0.0, %v2423
    %2425 = vmatmul.f32.gmra.mxu0 %v2386
    %v2426 = vpop.f32.mrf.mxu0
    %v2427 = vadd.f32 0.0, %v2426
    %2428 = vmatmul.f32.gmra.mxu0 %v2389
    %v2429 = vpop.f32.mrf.mxu0
    %v2430 = vadd.f32 0.0, %v2429
    %2431 = vmatmul.f32.gmra.mxu0 %v2392
    %v2432 = vpop.f32.mrf.mxu0
    %v2433 = vadd.f32 0.0, %v2432
    %2434 = vmatmul.f32.gmra.mxu0 %v2395
    %v2435 = vpop.f32.mrf.mxu0
    %v2436 = vadd.f32 0.0, %v2435
    %2437 = vdwg.mxu0
    %2438 = vmatpush.msra.mxu0 0.0
    %2439 = vmatpush.msra.mxu0 %v2372
    %2440 = vmatpush.msra.mxu0 %v2370
    %2441 = vmatpush.msra.mxu0 %v2368
    %2442 = vmatpush.msra.mxu0 %v2366
    %2443 = vmatpush.msra.mxu0 %v2364
    %2444 = vmatpush.msra.mxu0 %v2362
    %2445 = vmatpush.msra.mxu0 %v2360
    %2446 = vmatpush.msra.mxu0 %v2358
    %2447 = vmatpush.msra.mxu0 %v2356
    %2448 = vmatpush.msra.mxu0 %v2354
    %2449 = vmatpush.msra.mxu0 %v2352
    %2450 = vmatpush.msra.mxu0 %v2350
    %2451 = vmatpush.msra.mxu0 %v2348
    %2452 = vmatpush.msra.mxu0 %v2346
    %2453 = vmatpush.msra.mxu0 %v2344
    %2454 = vmatmul.f32.gmra.mxu0 %v2374
    %v2455 = vpop.f32.mrf.mxu0
    %v2456 = vadd.f32 0.0, %v2455
    %2457 = vmatmul.f32.gmra.mxu0 %v2377
    %v2458 = vpop.f32.mrf.mxu0
    %v2459 = vadd.f32 0.0, %v2458
    %2460 = vmatmul.f32.gmra.mxu0 %v2380
    %v2461 = vpop.f32.mrf.mxu0
    %v2462 = vadd.f32 0.0, %v2461
    %2463 = vmatmul.f32.gmra.mxu0 %v2383
    %v2464 = vpop.f32.mrf.mxu0
    %v2465 = vadd.f32 0.0, %v2464
    %2466 = vmatmul.f32.gmra.mxu0 %v2386
    %v2467 = vpop.f32.mrf.mxu0
    %v2468 = vadd.f32 0.0, %v2467
    %2469 = vmatmul.f32.gmra.mxu0 %v2389
    %v2470 = vpop.f32.mrf.mxu0
    %v2471 = vadd.f32 0.0, %v2470
    %2472 = vmatmul.f32.gmra.mxu0 %v2392
    %v2473 = vpop.f32.mrf.mxu0
    %v2474 = vadd.f32 0.0, %v2473
    %2475 = vmatmul.f32.gmra.mxu0 %v2395
    %v2476 = vpop.f32.mrf.mxu0
    %v2477 = vadd.f32 0.0, %v2476
    %2478 = vdwg.mxu0
    %v2480 = vsel %vm1410, %v2300, 0
    %2482 = vmatpush.msra.mxu0 0.0
    %2483 = vmatpush.msra.mxu0 %v2340
    %2484 = vmatpush.msra.mxu0 %v2338
    %2485 = vmatpush.msra.mxu0 %v2336
    %2486 = vmatpush.msra.mxu0 %v2334
    %2487 = vmatpush.msra.mxu0 %v2332
    %2488 = vmatpush.msra.mxu0 %v2330
    %2489 = vmatpush.msra.mxu0 %v2328
    %2490 = vmatpush.msra.mxu0 %v2326
    %2491 = vmatpush.msra.mxu0 %v2324
    %2492 = vmatpush.msra.mxu0 %v2322
    %2493 = vmatpush.msra.mxu0 %v2320
    %2494 = vmatpush.msra.mxu0 %v2318
    %2495 = vmatpush.msra.mxu0 %v2316
    %2496 = vmatpush.msra.mxu0 %v2314
    %2497 = vmatpush.msra.mxu0 %v2312
    %2498 = vmatmul.f32.gmra.mxu0 %v2480
    %v2499 = vpop.f32.mrf.mxu0
    %v2500 = vadd.f32 %v2415, %v2499
    %2501 = vmatmul.f32.gmra.mxu0 %v2374
    %v2502 = vpop.f32.mrf.mxu0
    %v2503 = vadd.f32 %v2418, %v2502
    %2504 = vmatmul.f32.gmra.mxu0 %v2377
    %v2505 = vpop.f32.mrf.mxu0
    %v2506 = vadd.f32 %v2421, %v2505
    %2507 = vmatmul.f32.gmra.mxu0 %v2380
    %v2508 = vpop.f32.mrf.mxu0
    %v2509 = vadd.f32 %v2424, %v2508
    %2510 = vmatmul.f32.gmra.mxu0 %v2383
    %v2511 = vpop.f32.mrf.mxu0
    %v2512 = vadd.f32 %v2427, %v2511
    %2513 = vmatmul.f32.gmra.mxu0 %v2386
    %v2514 = vpop.f32.mrf.mxu0
    %v2515 = vadd.f32 %v2430, %v2514
    %2516 = vmatmul.f32.gmra.mxu0 %v2389
    %v2517 = vpop.f32.mrf.mxu0
    %v2518 = vadd.f32 %v2433, %v2517
    %2519 = vmatmul.f32.gmra.mxu0 %v2392
    %v2520 = vpop.f32.mrf.mxu0
    %v2521 = vadd.f32 %v2436, %v2520
    %2522 = vdwg.mxu0
    %2523 = vmatpush.msra.mxu0 0.0
    %2524 = vmatpush.msra.mxu0 %v2341
    %2525 = vmatpush.msra.mxu0 %v2339
    %2526 = vmatpush.msra.mxu0 %v2337
    %2527 = vmatpush.msra.mxu0 %v2335
    %2528 = vmatpush.msra.mxu0 %v2333
    %2529 = vmatpush.msra.mxu0 %v2331
    %2530 = vmatpush.msra.mxu0 %v2329
    %2531 = vmatpush.msra.mxu0 %v2327
    %2532 = vmatpush.msra.mxu0 %v2325
    %2533 = vmatpush.msra.mxu0 %v2323
    %2534 = vmatpush.msra.mxu0 %v2321
    %2535 = vmatpush.msra.mxu0 %v2319
    %2536 = vmatpush.msra.mxu0 %v2317
    %2537 = vmatpush.msra.mxu0 %v2315
    %2538 = vmatpush.msra.mxu0 %v2313
    %2539 = vmatmul.f32.gmra.mxu0 %v2480
    %v2540 = vpop.f32.mrf.mxu0
    %v2541 = vadd.f32 %v2456, %v2540
    %2542 = vmatmul.f32.gmra.mxu0 %v2374
    %v2543 = vpop.f32.mrf.mxu0
    %v2544 = vadd.f32 %v2459, %v2543
    %2545 = vmatmul.f32.gmra.mxu0 %v2377
    %v2546 = vpop.f32.mrf.mxu0
    %v2547 = vadd.f32 %v2462, %v2546
    %2548 = vmatmul.f32.gmra.mxu0 %v2380
    %v2549 = vpop.f32.mrf.mxu0
    %v2550 = vadd.f32 %v2465, %v2549
    %2551 = vmatmul.f32.gmra.mxu0 %v2383
    %v2552 = vpop.f32.mrf.mxu0
    %v2553 = vadd.f32 %v2468, %v2552
    %2554 = vmatmul.f32.gmra.mxu0 %v2386
    %v2555 = vpop.f32.mrf.mxu0
    %v2556 = vadd.f32 %v2471, %v2555
    %2557 = vmatmul.f32.gmra.mxu0 %v2389
    %v2558 = vpop.f32.mrf.mxu0
    %v2559 = vadd.f32 %v2474, %v2558
    %2560 = vmatmul.f32.gmra.mxu0 %v2392
    %v2561 = vpop.f32.mrf.mxu0
    %v2562 = vadd.f32 %v2477, %v2561
    %2563 = vdwg.mxu0
    %s2564 = scalar_lea.vmem [#allocation4], 480
    %v2565 = vld [vmem:[%s2564] sm:$0xff]
    %v2566 = vld [vmem:[%s2564 + $0x8] sm:$0xff]
    %v2567 = vld [vmem:[%s2564 + $0x10] sm:$0xff]
    %v2568 = vld [vmem:[%s2564 + $0x18] sm:$0xff]
    %v2569 = vld [vmem:[%s2564 + $0x20] sm:$0xff]
    %v2570 = vld [vmem:[%s2564 + $0x28] sm:$0xff]
    %v2571 = vld [vmem:[%s2564 + $0x30] sm:$0xff]
    %v2572 = vld [vmem:[%s2564 + $0x38] sm:$0xff]
    %v2573 = vld [vmem:[%s2564 + $0x40] sm:$0xff]
    %v2574 = vld [vmem:[%s2564 + $0x48] sm:$0xff]
    %v2575 = vld [vmem:[%s2564 + $0x50] sm:$0xff]
    %v2576 = vld [vmem:[%s2564 + $0x58] sm:$0xff]
    %v2577 = vld [vmem:[%s2564 + $0x60] sm:$0xff]
    %v2578 = vld [vmem:[%s2564 + $0x68] sm:$0xff]
    %v2579 = vld [vmem:[%s2564 + $0x70] sm:$0xff]
    %v2580 = vld [vmem:[%s2564 + $0x78] sm:$0xff]
    %v2581 = vld [vmem:[%s2564 + $0x80] sm:$0xff]
    %v2582 = vld [vmem:[%s2564 + $0x88] sm:$0xff]
    %v2583 = vld [vmem:[%s2564 + $0x90] sm:$0xff]
    %v2584 = vld [vmem:[%s2564 + $0x98] sm:$0xff]
    %v2585 = vld [vmem:[%s2564 + $0xa0] sm:$0xff]
    %v2586 = vld [vmem:[%s2564 + $0xa8] sm:$0xff]
    %v2587 = vld [vmem:[%s2564 + $0xb0] sm:$0xff]
    %v2588 = vld [vmem:[%s2564 + $0xb8] sm:$0xff]
    %v2589 = vld [vmem:[%s2564 + $0xc0] sm:$0xff]
    %v2590 = vld [vmem:[%s2564 + $0xc8] sm:$0xff]
    %v2591 = vld [vmem:[%s2564 + $0xd0] sm:$0xff]
    %v2592 = vld [vmem:[%s2564 + $0xd8] sm:$0xff]
    %v2593 = vld [vmem:[%s2564 + $0xe0] sm:$0xff]
    %v2594 = vld [vmem:[%s2564 + $0xe8] sm:$0xff]
    %v2596 = vsel %vm1410, %v2309, 0
    %2598 = vmatpush.msra.mxu0 0.0
    %2599 = vmatpush.msra.mxu0 %v2593
    %2600 = vmatpush.msra.mxu0 %v2591
    %2601 = vmatpush.msra.mxu0 %v2589
    %2602 = vmatpush.msra.mxu0 %v2587
    %2603 = vmatpush.msra.mxu0 %v2585
    %2604 = vmatpush.msra.mxu0 %v2583
    %2605 = vmatpush.msra.mxu0 %v2581
    %2606 = vmatpush.msra.mxu0 %v2579
    %2607 = vmatpush.msra.mxu0 %v2577
    %2608 = vmatpush.msra.mxu0 %v2575
    %2609 = vmatpush.msra.mxu0 %v2573
    %2610 = vmatpush.msra.mxu0 %v2571
    %2611 = vmatpush.msra.mxu0 %v2569
    %2612 = vmatpush.msra.mxu0 %v2567
    %2613 = vmatpush.msra.mxu0 %v2565
    %2614 = vmatmul.f32.gmra.mxu0 %v2377
    %v2615 = vpop.f32.mrf.mxu0
    %v2616 = vadd.f32 0.0, %v2615
    %2617 = vmatmul.f32.gmra.mxu0 %v2380
    %v2618 = vpop.f32.mrf.mxu0
    %v2619 = vadd.f32 0.0, %v2618
    %2620 = vmatmul.f32.gmra.mxu0 %v2383
    %v2621 = vpop.f32.mrf.mxu0
    %v2622 = vadd.f32 0.0, %v2621
    %2623 = vmatmul.f32.gmra.mxu0 %v2386
    %v2624 = vpop.f32.mrf.mxu0
    %v2625 = vadd.f32 0.0, %v2624
    %2626 = vmatmul.f32.gmra.mxu0 %v2389
    %v2627 = vpop.f32.mrf.mxu0
    %v2628 = vadd.f32 0.0, %v2627
    %2629 = vmatmul.f32.gmra.mxu0 %v2392
    %v2630 = vpop.f32.mrf.mxu0
    %v2631 = vadd.f32 0.0, %v2630
    %2632 = vmatmul.f32.gmra.mxu0 %v2395
    %v2633 = vpop.f32.mrf.mxu0
    %v2634 = vadd.f32 0.0, %v2633
    %2635 = vmatmul.f32.gmra.mxu0 %v2596
    %v2636 = vpop.f32.mrf.mxu0
    %v2637 = vadd.f32 0.0, %v2636
    %2638 = vdwg.mxu0
    %2639 = vmatpush.msra.mxu0 0.0
    %2640 = vmatpush.msra.mxu0 %v2594
    %2641 = vmatpush.msra.mxu0 %v2592
    %2642 = vmatpush.msra.mxu0 %v2590
    %2643 = vmatpush.msra.mxu0 %v2588
    %2644 = vmatpush.msra.mxu0 %v2586
    %2645 = vmatpush.msra.mxu0 %v2584
    %2646 = vmatpush.msra.mxu0 %v2582
    %2647 = vmatpush.msra.mxu0 %v2580
    %2648 = vmatpush.msra.mxu0 %v2578
    %2649 = vmatpush.msra.mxu0 %v2576
    %2650 = vmatpush.msra.mxu0 %v2574
    %2651 = vmatpush.msra.mxu0 %v2572
    %2652 = vmatpush.msra.mxu0 %v2570
    %2653 = vmatpush.msra.mxu0 %v2568
    %2654 = vmatpush.msra.mxu0 %v2566
    %2655 = vmatmul.f32.gmra.mxu0 %v2377
    %v2656 = vpop.f32.mrf.mxu0
    %v2657 = vadd.f32 0.0, %v2656
    %2658 = vmatmul.f32.gmra.mxu0 %v2380
    %v2659 = vpop.f32.mrf.mxu0
    %v2660 = vadd.f32 0.0, %v2659
    %2661 = vmatmul.f32.gmra.mxu0 %v2383
    %v2662 = vpop.f32.mrf.mxu0
    %v2663 = vadd.f32 0.0, %v2662
    %2664 = vmatmul.f32.gmra.mxu0 %v2386
    %v2665 = vpop.f32.mrf.mxu0
    %v2666 = vadd.f32 0.0, %v2665
    %2667 = vmatmul.f32.gmra.mxu0 %v2389
    %v2668 = vpop.f32.mrf.mxu0
    %v2669 = vadd.f32 0.0, %v2668
    %2670 = vmatmul.f32.gmra.mxu0 %v2392
    %v2671 = vpop.f32.mrf.mxu0
    %v2672 = vadd.f32 0.0, %v2671
    %2673 = vmatmul.f32.gmra.mxu0 %v2395
    %v2674 = vpop.f32.mrf.mxu0
    %v2675 = vadd.f32 0.0, %v2674
    %2676 = vmatmul.f32.gmra.mxu0 %v2596
    %v2677 = vpop.f32.mrf.mxu0
    %v2678 = vadd.f32 0.0, %v2677
    %2679 = vdwg.mxu0
    %v2680 = vadd.f32 %v2500, %v2616
    %v2681 = vadd.f32 %v2541, %v2657
    %v2682 = vadd.f32 %v2503, %v2619
    %v2683 = vadd.f32 %v2544, %v2660
    %v2684 = vadd.f32 %v2506, %v2622
    %v2685 = vadd.f32 %v2547, %v2663
    %v2686 = vadd.f32 %v2509, %v2625
    %v2687 = vadd.f32 %v2550, %v2666
    %v2688 = vadd.f32 %v2512, %v2628
    %v2689 = vadd.f32 %v2553, %v2669
    %v2690 = vadd.f32 %v2515, %v2631
    %v2691 = vadd.f32 %v2556, %v2672
    %v2692 = vadd.f32 %v2518, %v2634
    %v2693 = vadd.f32 %v2559, %v2675
    %v2694 = vadd.f32 %v2521, %v2637
    %v2695 = vadd.f32 %v2562, %v2678
    %s2696 = scalar_lea.vmem [#allocation4], 720
    %v2697 = vld [vmem:[%s2696] sm:$0xff]
    %v2698 = vld [vmem:[%s2696 + $0x8] sm:$0xff]
    %v2699 = vld [vmem:[%s2696 + $0x10] sm:$0xff]
    %v2700 = vld [vmem:[%s2696 + $0x18] sm:$0xff]
    %v2701 = vld [vmem:[%s2696 + $0x20] sm:$0xff]
    %v2702 = vld [vmem:[%s2696 + $0x28] sm:$0xff]
    %v2703 = vld [vmem:[%s2696 + $0x30] sm:$0xff]
    %v2704 = vld [vmem:[%s2696 + $0x38] sm:$0xff]
    %v2705 = vld [vmem:[%s2696 + $0x40] sm:$0xff]
    %v2706 = vld [vmem:[%s2696 + $0x48] sm:$0xff]
    %v2707 = vld [vmem:[%s2696 + $0x50] sm:$0xff]
    %v2708 = vld [vmem:[%s2696 + $0x58] sm:$0xff]
    %v2709 = vld [vmem:[%s2696 + $0x60] sm:$0xff]
    %v2710 = vld [vmem:[%s2696 + $0x68] sm:$0xff]
    %v2711 = vld [vmem:[%s2696 + $0x70] sm:$0xff]
    %v2712 = vld [vmem:[%s2696 + $0x78] sm:$0xff]
    %v2713 = vld [vmem:[%s2696 + $0x80] sm:$0xff]
    %v2714 = vld [vmem:[%s2696 + $0x88] sm:$0xff]
    %v2715 = vld [vmem:[%s2696 + $0x90] sm:$0xff]
    %v2716 = vld [vmem:[%s2696 + $0x98] sm:$0xff]
    %v2717 = vld [vmem:[%s2696 + $0xa0] sm:$0xff]
    %v2718 = vld [vmem:[%s2696 + $0xa8] sm:$0xff]
    %v2719 = vld [vmem:[%s2696 + $0xb0] sm:$0xff]
    %v2720 = vld [vmem:[%s2696 + $0xb8] sm:$0xff]
    %v2721 = vld [vmem:[%s2696 + $0xc0] sm:$0xff]
    %v2722 = vld [vmem:[%s2696 + $0xc8] sm:$0xff]
    %v2723 = vld [vmem:[%s2696 + $0xd0] sm:$0xff]
    %v2724 = vld [vmem:[%s2696 + $0xd8] sm:$0xff]
    %v2725 = vld [vmem:[%s2696 + $0xe0] sm:$0xff]
    %v2726 = vld [vmem:[%s2696 + $0xe8] sm:$0xff]
    %v2728 = vsel %vm1410, %v2310, 0
    %2730 = vmatpush.msra.mxu0 0.0
    %2731 = vmatpush.msra.mxu0 %v2725
    %2732 = vmatpush.msra.mxu0 %v2723
    %2733 = vmatpush.msra.mxu0 %v2721
    %2734 = vmatpush.msra.mxu0 %v2719
    %2735 = vmatpush.msra.mxu0 %v2717
    %2736 = vmatpush.msra.mxu0 %v2715
    %2737 = vmatpush.msra.mxu0 %v2713
    %2738 = vmatpush.msra.mxu0 %v2711
    %2739 = vmatpush.msra.mxu0 %v2709
    %2740 = vmatpush.msra.mxu0 %v2707
    %2741 = vmatpush.msra.mxu0 %v2705
    %2742 = vmatpush.msra.mxu0 %v2703
    %2743 = vmatpush.msra.mxu0 %v2701
    %2744 = vmatpush.msra.mxu0 %v2699
    %2745 = vmatpush.msra.mxu0 %v2697
    %2746 = vmatmul.f32.gmra.mxu0 %v2380
    %v2747 = vpop.f32.mrf.mxu0
    %v2748 = vadd.f32 0.0, %v2747
    %2749 = vmatmul.f32.gmra.mxu0 %v2383
    %v2750 = vpop.f32.mrf.mxu0
    %v2751 = vadd.f32 0.0, %v2750
    %2752 = vmatmul.f32.gmra.mxu0 %v2386
    %v2753 = vpop.f32.mrf.mxu0
    %v2754 = vadd.f32 0.0, %v2753
    %2755 = vmatmul.f32.gmra.mxu0 %v2389
    %v2756 = vpop.f32.mrf.mxu0
    %v2757 = vadd.f32 0.0, %v2756
    %2758 = vmatmul.f32.gmra.mxu0 %v2392
    %v2759 = vpop.f32.mrf.mxu0
    %v2760 = vadd.f32 0.0, %v2759
    %2761 = vmatmul.f32.gmra.mxu0 %v2395
    %v2762 = vpop.f32.mrf.mxu0
    %v2763 = vadd.f32 0.0, %v2762
    %2764 = vmatmul.f32.gmra.mxu0 %v2596
    %v2765 = vpop.f32.mrf.mxu0
    %v2766 = vadd.f32 0.0, %v2765
    %2767 = vmatmul.f32.gmra.mxu0 %v2728
    %v2768 = vpop.f32.mrf.mxu0
    %v2769 = vadd.f32 0.0, %v2768
    %2770 = vdwg.mxu0
    %2771 = vmatpush.msra.mxu0 0.0
    %2772 = vmatpush.msra.mxu0 %v2726
    %2773 = vmatpush.msra.mxu0 %v2724
    %2774 = vmatpush.msra.mxu0 %v2722
    %2775 = vmatpush.msra.mxu0 %v2720
    %2776 = vmatpush.msra.mxu0 %v2718
    %2777 = vmatpush.msra.mxu0 %v2716
    %2778 = vmatpush.msra.mxu0 %v2714
    %2779 = vmatpush.msra.mxu0 %v2712
    %2780 = vmatpush.msra.mxu0 %v2710
    %2781 = vmatpush.msra.mxu0 %v2708
    %2782 = vmatpush.msra.mxu0 %v2706
    %2783 = vmatpush.msra.mxu0 %v2704
    %2784 = vmatpush.msra.mxu0 %v2702
    %2785 = vmatpush.msra.mxu0 %v2700
    %2786 = vmatpush.msra.mxu0 %v2698
    %2787 = vmatmul.f32.gmra.mxu0 %v2380
    %v2788 = vpop.f32.mrf.mxu0
    %v2789 = vadd.f32 0.0, %v2788
    %2790 = vmatmul.f32.gmra.mxu0 %v2383
    %v2791 = vpop.f32.mrf.mxu0
    %v2792 = vadd.f32 0.0, %v2791
    %2793 = vmatmul.f32.gmra.mxu0 %v2386
    %v2794 = vpop.f32.mrf.mxu0
    %v2795 = vadd.f32 0.0, %v2794
    %2796 = vmatmul.f32.gmra.mxu0 %v2389
    %v2797 = vpop.f32.mrf.mxu0
    %v2798 = vadd.f32 0.0, %v2797
    %2799 = vmatmul.f32.gmra.mxu0 %v2392
    %v2800 = vpop.f32.mrf.mxu0
    %v2801 = vadd.f32 0.0, %v2800
    %2802 = vmatmul.f32.gmra.mxu0 %v2395
    %v2803 = vpop.f32.mrf.mxu0
    %v2804 = vadd.f32 0.0, %v2803
    %2805 = vmatmul.f32.gmra.mxu0 %v2596
    %v2806 = vpop.f32.mrf.mxu0
    %v2807 = vadd.f32 0.0, %v2806
    %2808 = vmatmul.f32.gmra.mxu0 %v2728
    %v2809 = vpop.f32.mrf.mxu0
    %v2810 = vadd.f32 0.0, %v2809
    %2811 = vdwg.mxu0
    %v2812 = vadd.f32 %v2680, %v2748
    %v2813 = vadd.f32 %v2681, %v2789
    %v2814 = vadd.f32 %v2682, %v2751
    %v2815 = vadd.f32 %v2683, %v2792
    %v2816 = vadd.f32 %v2684, %v2754
    %v2817 = vadd.f32 %v2685, %v2795
    %v2818 = vadd.f32 %v2686, %v2757
    %v2819 = vadd.f32 %v2687, %v2798
    %v2820 = vadd.f32 %v2688, %v2760
    %v2821 = vadd.f32 %v2689, %v2801
    %v2822 = vadd.f32 %v2690, %v2763
    %v2823 = vadd.f32 %v2691, %v2804
    %v2824 = vadd.f32 %v2692, %v2766
    %v2825 = vadd.f32 %v2693, %v2807
    %v2826 = vadd.f32 %v2694, %v2769
    %v2827 = vadd.f32 %v2695, %v2810
    %s2828 = scalar_lea.vmem [#allocation4], 960
    %v2829 = vld [vmem:[%s2828] sm:$0xff]
    %v2830 = vld [vmem:[%s2828 + $0x8] sm:$0xff]
    %v2831 = vld [vmem:[%s2828 + $0x10] sm:$0xff]
    %v2832 = vld [vmem:[%s2828 + $0x18] sm:$0xff]
    %v2833 = vld [vmem:[%s2828 + $0x20] sm:$0xff]
    %v2834 = vld [vmem:[%s2828 + $0x28] sm:$0xff]
    %v2835 = vld [vmem:[%s2828 + $0x30] sm:$0xff]
    %v2836 = vld [vmem:[%s2828 + $0x38] sm:$0xff]
    %v2837 = vld [vmem:[%s2828 + $0x40] sm:$0xff]
    %v2838 = vld [vmem:[%s2828 + $0x48] sm:$0xff]
    %v2839 = vld [vmem:[%s2828 + $0x50] sm:$0xff]
    %v2840 = vld [vmem:[%s2828 + $0x58] sm:$0xff]
    %v2841 = vld [vmem:[%s2828 + $0x60] sm:$0xff]
    %v2842 = vld [vmem:[%s2828 + $0x68] sm:$0xff]
    %v2843 = vld [vmem:[%s2828 + $0x70] sm:$0xff]
    %v2844 = vld [vmem:[%s2828 + $0x78] sm:$0xff]
    %v2845 = vld [vmem:[%s2828 + $0x80] sm:$0xff]
    %v2846 = vld [vmem:[%s2828 + $0x88] sm:$0xff]
    %v2847 = vld [vmem:[%s2828 + $0x90] sm:$0xff]
    %v2848 = vld [vmem:[%s2828 + $0x98] sm:$0xff]
    %v2849 = vld [vmem:[%s2828 + $0xa0] sm:$0xff]
    %v2850 = vld [vmem:[%s2828 + $0xa8] sm:$0xff]
    %v2851 = vld [vmem:[%s2828 + $0xb0] sm:$0xff]
    %v2852 = vld [vmem:[%s2828 + $0xb8] sm:$0xff]
    %v2853 = vld [vmem:[%s2828 + $0xc0] sm:$0xff]
    %v2854 = vld [vmem:[%s2828 + $0xc8] sm:$0xff]
    %v2855 = vld [vmem:[%s2828 + $0xd0] sm:$0xff]
    %v2856 = vld [vmem:[%s2828 + $0xd8] sm:$0xff]
    %v2857 = vld [vmem:[%s2828 + $0xe0] sm:$0xff]
    %v2858 = vld [vmem:[%s2828 + $0xe8] sm:$0xff]
    %v2860 = vsel %vm1410, %v2311, 0
    %2862 = vmatpush.msra.mxu0 0.0
    %2863 = vmatpush.msra.mxu0 %v2857
    %2864 = vmatpush.msra.mxu0 %v2855
    %2865 = vmatpush.msra.mxu0 %v2853
    %2866 = vmatpush.msra.mxu0 %v2851
    %2867 = vmatpush.msra.mxu0 %v2849
    %2868 = vmatpush.msra.mxu0 %v2847
    %2869 = vmatpush.msra.mxu0 %v2845
    %2870 = vmatpush.msra.mxu0 %v2843
    %2871 = vmatpush.msra.mxu0 %v2841
    %2872 = vmatpush.msra.mxu0 %v2839
    %2873 = vmatpush.msra.mxu0 %v2837
    %2874 = vmatpush.msra.mxu0 %v2835
    %2875 = vmatpush.msra.mxu0 %v2833
    %2876 = vmatpush.msra.mxu0 %v2831
    %2877 = vmatpush.msra.mxu0 %v2829
    %2878 = vmatmul.f32.gmra.mxu0 %v2383
    %v2879 = vpop.f32.mrf.mxu0
    %v2880 = vadd.f32 0.0, %v2879
    %2881 = vmatmul.f32.gmra.mxu0 %v2386
    %v2882 = vpop.f32.mrf.mxu0
    %v2883 = vadd.f32 0.0, %v2882
    %2884 = vmatmul.f32.gmra.mxu0 %v2389
    %v2885 = vpop.f32.mrf.mxu0
    %v2886 = vadd.f32 0.0, %v2885
    %2887 = vmatmul.f32.gmra.mxu0 %v2392
    %v2888 = vpop.f32.mrf.mxu0
    %v2889 = vadd.f32 0.0, %v2888
    %2890 = vmatmul.f32.gmra.mxu0 %v2395
    %v2891 = vpop.f32.mrf.mxu0
    %v2892 = vadd.f32 0.0, %v2891
    %2893 = vmatmul.f32.gmra.mxu0 %v2596
    %v2894 = vpop.f32.mrf.mxu0
    %v2895 = vadd.f32 0.0, %v2894
    %2896 = vmatmul.f32.gmra.mxu0 %v2728
    %v2897 = vpop.f32.mrf.mxu0
    %v2898 = vadd.f32 0.0, %v2897
    %2899 = vmatmul.f32.gmra.mxu0 %v2860
    %v2900 = vpop.f32.mrf.mxu0
    %v2901 = vadd.f32 0.0, %v2900
    %2902 = vdwg.mxu0
    %2903 = vmatpush.msra.mxu0 0.0
    %2904 = vmatpush.msra.mxu0 %v2858
    %2905 = vmatpush.msra.mxu0 %v2856
    %2906 = vmatpush.msra.mxu0 %v2854
    %2907 = vmatpush.msra.mxu0 %v2852
    %2908 = vmatpush.msra.mxu0 %v2850
    %2909 = vmatpush.msra.mxu0 %v2848
    %2910 = vmatpush.msra.mxu0 %v2846
    %2911 = vmatpush.msra.mxu0 %v2844
    %2912 = vmatpush.msra.mxu0 %v2842
    %2913 = vmatpush.msra.mxu0 %v2840
    %2914 = vmatpush.msra.mxu0 %v2838
    %2915 = vmatpush.msra.mxu0 %v2836
    %2916 = vmatpush.msra.mxu0 %v2834
    %2917 = vmatpush.msra.mxu0 %v2832
    %2918 = vmatpush.msra.mxu0 %v2830
    %2919 = vmatmul.f32.gmra.mxu0 %v2383
    %v2920 = vpop.f32.mrf.mxu0
    %v2921 = vadd.f32 0.0, %v2920
    %2922 = vmatmul.f32.gmra.mxu0 %v2386
    %v2923 = vpop.f32.mrf.mxu0
    %v2924 = vadd.f32 0.0, %v2923
    %2925 = vmatmul.f32.gmra.mxu0 %v2389
    %v2926 = vpop.f32.mrf.mxu0
    %v2927 = vadd.f32 0.0, %v2926
    %2928 = vmatmul.f32.gmra.mxu0 %v2392
    %v2929 = vpop.f32.mrf.mxu0
    %v2930 = vadd.f32 0.0, %v2929
    %2931 = vmatmul.f32.gmra.mxu0 %v2395
    %v2932 = vpop.f32.mrf.mxu0
    %v2933 = vadd.f32 0.0, %v2932
    %2934 = vmatmul.f32.gmra.mxu0 %v2596
    %v2935 = vpop.f32.mrf.mxu0
    %v2936 = vadd.f32 0.0, %v2935
    %2937 = vmatmul.f32.gmra.mxu0 %v2728
    %v2938 = vpop.f32.mrf.mxu0
    %v2939 = vadd.f32 0.0, %v2938
    %2940 = vmatmul.f32.gmra.mxu0 %v2860
    %v2941 = vpop.f32.mrf.mxu0
    %v2942 = vadd.f32 0.0, %v2941
    %2943 = vdwg.mxu0
    %v2944 = vadd.f32 %v2812, %v2880
    %v2945 = vadd.f32 %v2813, %v2921
    %v2946 = vadd.f32 %v2814, %v2883
    %v2947 = vadd.f32 %v2815, %v2924
    %v2948 = vadd.f32 %v2816, %v2886
    %v2949 = vadd.f32 %v2817, %v2927
    %v2950 = vadd.f32 %v2818, %v2889
    %v2951 = vadd.f32 %v2819, %v2930
    %v2952 = vadd.f32 %v2820, %v2892
    %v2953 = vadd.f32 %v2821, %v2933
    %v2954 = vadd.f32 %v2822, %v2895
    %v2955 = vadd.f32 %v2823, %v2936
    %v2956 = vadd.f32 %v2824, %v2898
    %v2957 = vadd.f32 %v2825, %v2939
    %v2958 = vadd.f32 %v2826, %v2901
    %v2959 = vadd.f32 %v2827, %v2942
    %v2960 = vmax.f32 %v2944, %v2946
    %v2961 = vmax.f32 %v2945, %v2947
    %v2962 = vmax.f32 %v2948, %v2950
    %v2963 = vmax.f32 %v2949, %v2951
    %v2964 = vmax.f32 %v2952, %v2954
    %v2965 = vmax.f32 %v2953, %v2955
    %v2966 = vmax.f32 %v2956, %v2958
    %v2967 = vmax.f32 %v2957, %v2959
    %v2968 = vld [vmem:[#allocation6] sm:$0xff]
    %v2969 = vld [vmem:[#allocation6 + $0x8] sm:$0xff]
    %v2970 = vld [vmem:[#allocation6 + $0x10] sm:$0xff]
    %v2971 = vld [vmem:[#allocation6 + $0x18] sm:$0xff]
    %v2972 = vld [vmem:[#allocation6 + $0x20] sm:$0xff]
    %v2973 = vld [vmem:[#allocation6 + $0x28] sm:$0xff]
    %v2974 = vld [vmem:[#allocation6 + $0x30] sm:$0xff]
    %v2975 = vld [vmem:[#allocation6 + $0x38] sm:$0xff]
    %v2976 = vld [vmem:[#allocation6 + $0x40] sm:$0xff]
    %v2977 = vld [vmem:[#allocation6 + $0x48] sm:$0xff]
    %v2978 = vld [vmem:[#allocation6 + $0x50] sm:$0xff]
    %v2979 = vld [vmem:[#allocation6 + $0x58] sm:$0xff]
    %v2980 = vld [vmem:[#allocation6 + $0x60] sm:$0xff]
    %v2981 = vld [vmem:[#allocation6 + $0x68] sm:$0xff]
    %v2982 = vld [vmem:[#allocation6 + $0x70] sm:$0xff]
    %v2983 = vld [vmem:[#allocation6 + $0x78] sm:$0xff]
    %v2984 = vld [vmem:[#allocation6 + $0x80] sm:$0xff]
    %v2985 = vld [vmem:[#allocation6 + $0x88] sm:$0xff]
    %v2986 = vld [vmem:[#allocation6 + $0x90] sm:$0xff]
    %v2987 = vld [vmem:[#allocation6 + $0x98] sm:$0xff]
    %v2988 = vld [vmem:[#allocation6 + $0xa0] sm:$0xff]
    %v2989 = vld [vmem:[#allocation6 + $0xa8] sm:$0xff]
    %v2990 = vld [vmem:[#allocation6 + $0xb0] sm:$0xff]
    %v2991 = vld [vmem:[#allocation6 + $0xb8] sm:$0xff]
    %v2992 = vld [vmem:[#allocation6 + $0xc0] sm:$0xff]
    %v2993 = vld [vmem:[#allocation6 + $0xc8] sm:$0xff]
    %v2994 = vld [vmem:[#allocation6 + $0xd0] sm:$0xff]
    %v2995 = vld [vmem:[#allocation6 + $0xd8] sm:$0xff]
    %v2996 = vld [vmem:[#allocation6 + $0xe0] sm:$0xff]
    %v2997 = vld [vmem:[#allocation6 + $0xe8] sm:$0xff]
    %v2998 = vld [vmem:[#allocation6 + $0xf0] sm:$0xff]
    %v2999 = vld [vmem:[#allocation6 + $0xf8] sm:$0xff]
    %v3000 = vld [vmem:[#allocation6 + $0x100] sm:$0xff]
    %v3001 = vld [vmem:[#allocation6 + $0x108] sm:$0xff]
    %v3002 = vld [vmem:[#allocation6 + $0x110] sm:$0xff]
    %v3003 = vld [vmem:[#allocation6 + $0x118] sm:$0xff]
    %v3004 = vld [vmem:[#allocation6 + $0x120] sm:$0xff]
    %v3005 = vld [vmem:[#allocation6 + $0x128] sm:$0xff]
    %v3006 = vld [vmem:[#allocation6 + $0x130] sm:$0xff]
    %v3007 = vld [vmem:[#allocation6 + $0x138] sm:$0xff]
    %v3009 = vsel %vm889, %v2961, 0
    %v3012 = vsel %vm889, %v2963, 0
    %v3015 = vsel %vm889, %v2965, 0
    %v3018 = vsel %vm889, %v2967, 0
    %3020 = vmatpush.msra.mxu0 %v2998
    %3021 = vmatpush.msra.mxu0 %v2996
    %3022 = vmatpush.msra.mxu0 %v2994
    %3023 = vmatpush.msra.mxu0 %v2992
    %3024 = vmatpush.msra.mxu0 %v2990
    %3025 = vmatpush.msra.mxu0 %v2988
    %3026 = vmatpush.msra.mxu0 %v2986
    %3027 = vmatpush.msra.mxu0 %v2984
    %3028 = vmatpush.msra.mxu0 %v2982
    %3029 = vmatpush.msra.mxu0 %v2980
    %3030 = vmatpush.msra.mxu0 %v2978
    %3031 = vmatpush.msra.mxu0 %v2976
    %3032 = vmatpush.msra.mxu0 %v2974
    %3033 = vmatpush.msra.mxu0 %v2972
    %3034 = vmatpush.msra.mxu0 %v2970
    %3035 = vmatpush.msra.mxu0 %v2968
    %3036 = vmatmul.f32.gmra.mxu0 %v2960
    %v3037 = vpop.f32.mrf.mxu0
    %v3038 = vadd.f32 0.0, %v3037
    %3039 = vmatmul.f32.gmra.mxu0 %v2962
    %v3040 = vpop.f32.mrf.mxu0
    %v3041 = vadd.f32 0.0, %v3040
    %3042 = vmatmul.f32.gmra.mxu0 %v2964
    %v3043 = vpop.f32.mrf.mxu0
    %v3044 = vadd.f32 0.0, %v3043
    %3045 = vmatmul.f32.gmra.mxu0 %v2966
    %v3046 = vpop.f32.mrf.mxu0
    %v3047 = vadd.f32 0.0, %v3046
    %3048 = vdwg.mxu0
    %3049 = vmatpush.msra.mxu0 0.0
    %3050 = vmatpush.msra.mxu0 0.0
    %3051 = vmatpush.msra.mxu0 0.0
    %3052 = vmatpush.msra.mxu0 0.0
    %3053 = vmatpush.msra.mxu0 0.0
    %3054 = vmatpush.msra.mxu0 0.0
    %3055 = vmatpush.msra.mxu0 0.0
    %3056 = vmatpush.msra.mxu0 0.0
    %3057 = vmatpush.msra.mxu0 0.0
    %3058 = vmatpush.msra.mxu0 0.0
    %3059 = vmatpush.msra.mxu0 0.0
    %3060 = vmatpush.msra.mxu0 0.0
    %3061 = vmatpush.msra.mxu0 %v3006
    %3062 = vmatpush.msra.mxu0 %v3004
    %3063 = vmatpush.msra.mxu0 %v3002
    %3064 = vmatpush.msra.mxu0 %v3000
    %3065 = vmatmul.f32.gmra.mxu0 %v3009
    %v3066 = vpop.f32.mrf.mxu0
    %v3067 = vadd.f32 %v3038, %v3066
    %3068 = vmatmul.f32.gmra.mxu0 %v3012
    %v3069 = vpop.f32.mrf.mxu0
    %v3070 = vadd.f32 %v3041, %v3069
    %3071 = vmatmul.f32.gmra.mxu0 %v3015
    %v3072 = vpop.f32.mrf.mxu0
    %v3073 = vadd.f32 %v3044, %v3072
    %3074 = vmatmul.f32.gmra.mxu0 %v3018
    %v3075 = vpop.f32.mrf.mxu0
    %v3076 = vadd.f32 %v3047, %v3075
    %3077 = vdwg.mxu0
    %3078 = vmatpush.msra.mxu0 %v2999
    %3079 = vmatpush.msra.mxu0 %v2997
    %3080 = vmatpush.msra.mxu0 %v2995
    %3081 = vmatpush.msra.mxu0 %v2993
    %3082 = vmatpush.msra.mxu0 %v2991
    %3083 = vmatpush.msra.mxu0 %v2989
    %3084 = vmatpush.msra.mxu0 %v2987
    %3085 = vmatpush.msra.mxu0 %v2985
    %3086 = vmatpush.msra.mxu0 %v2983
    %3087 = vmatpush.msra.mxu0 %v2981
    %3088 = vmatpush.msra.mxu0 %v2979
    %3089 = vmatpush.msra.mxu0 %v2977
    %3090 = vmatpush.msra.mxu0 %v2975
    %3091 = vmatpush.msra.mxu0 %v2973
    %3092 = vmatpush.msra.mxu0 %v2971
    %3093 = vmatpush.msra.mxu0 %v2969
    %3094 = vmatmul.f32.gmra.mxu0 %v2960
    %v3095 = vpop.f32.mrf.mxu0
    %v3096 = vadd.f32 0.0, %v3095
    %3097 = vmatmul.f32.gmra.mxu0 %v2962
    %v3098 = vpop.f32.mrf.mxu0
    %v3099 = vadd.f32 0.0, %v3098
    %3100 = vmatmul.f32.gmra.mxu0 %v2964
    %v3101 = vpop.f32.mrf.mxu0
    %v3102 = vadd.f32 0.0, %v3101
    %3103 = vmatmul.f32.gmra.mxu0 %v2966
    %v3104 = vpop.f32.mrf.mxu0
    %v3105 = vadd.f32 0.0, %v3104
    %3106 = vdwg.mxu0
    %3107 = vmatpush.msra.mxu0 0.0
    %3108 = vmatpush.msra.mxu0 0.0
    %3109 = vmatpush.msra.mxu0 0.0
    %3110 = vmatpush.msra.mxu0 0.0
    %3111 = vmatpush.msra.mxu0 0.0
    %3112 = vmatpush.msra.mxu0 0.0
    %3113 = vmatpush.msra.mxu0 0.0
    %3114 = vmatpush.msra.mxu0 0.0
    %3115 = vmatpush.msra.mxu0 0.0
    %3116 = vmatpush.msra.mxu0 0.0
    %3117 = vmatpush.msra.mxu0 0.0
    %3118 = vmatpush.msra.mxu0 0.0
    %3119 = vmatpush.msra.mxu0 %v3007
    %3120 = vmatpush.msra.mxu0 %v3005
    %3121 = vmatpush.msra.mxu0 %v3003
    %3122 = vmatpush.msra.mxu0 %v3001
    %3123 = vmatmul.f32.gmra.mxu0 %v3009
    %v3124 = vpop.f32.mrf.mxu0
    %v3125 = vadd.f32 %v3096, %v3124
    %3126 = vmatmul.f32.gmra.mxu0 %v3012
    %v3127 = vpop.f32.mrf.mxu0
    %v3128 = vadd.f32 %v3099, %v3127
    %3129 = vmatmul.f32.gmra.mxu0 %v3015
    %v3130 = vpop.f32.mrf.mxu0
    %v3131 = vadd.f32 %v3102, %v3130
    %3132 = vmatmul.f32.gmra.mxu0 %v3018
    %v3133 = vpop.f32.mrf.mxu0
    %v3134 = vadd.f32 %v3105, %v3133
    %3135 = vdwg.mxu0
    %v3136 = vmax.f32 %v3067, %v3125
    %v3137 = vmax.f32 %v3070, %v3128
    %v3138 = vmax.f32 %v3073, %v3131
    %v3139 = vmax.f32 %v3076, %v3134
    %v3140 = vld [vmem:[%s5] sm:$0x1]
    %v3142 = vperm.slane %v3140, 0
    %v3144 = vadd.f32 %v3136, %v3142
    %v3145 = vadd.f32 %v3137, %v3142
    %v3146 = vadd.f32 %v3138, %v3142
    %v3147 = vadd.f32 %v3139, %v3142
    %v3148 = vmax.f32 %v3144, 0.0
    %v3149 = vmax.f32 %v3145, 0.0
    %v3150 = vmax.f32 %v3146, 0.0
    %v3151 = vmax.f32 %v3147, 0.0
    %v3152 = vld [vmem:[#allocation7] sm:$0xff]
    %v3153 = vld [vmem:[#allocation7 + $0x8] sm:$0xff]
    %v3154 = vld [vmem:[#allocation7 + $0x10] sm:$0xff]
    %v3155 = vld [vmem:[#allocation7 + $0x18] sm:$0xff]
    %v3156 = vld [vmem:[#allocation7 + $0x20] sm:$0xff]
    %v3157 = vld [vmem:[#allocation7 + $0x28] sm:$0xff]
    %v3158 = vld [vmem:[#allocation7 + $0x30] sm:$0xff]
    %v3159 = vld [vmem:[#allocation7 + $0x38] sm:$0xff]
    %v3160 = vld [vmem:[#allocation7 + $0x40] sm:$0xff]
    %v3161 = vld [vmem:[#allocation7 + $0x48] sm:$0xff]
    %s3162 = scalar_lea.vmem [#allocation7], 80
    %v3163 = vld [vmem:[%s3162] sm:$0xff]
    %v3164 = vld [vmem:[%s3162 + $0x8] sm:$0xff]
    %v3165 = vld [vmem:[%s3162 + $0x10] sm:$0xff]
    %v3166 = vld [vmem:[%s3162 + $0x18] sm:$0xff]
    %v3167 = vld [vmem:[%s3162 + $0x20] sm:$0xff]
    %v3168 = vld [vmem:[%s3162 + $0x28] sm:$0xff]
    %v3169 = vld [vmem:[%s3162 + $0x30] sm:$0xff]
    %v3170 = vld [vmem:[%s3162 + $0x38] sm:$0xff]
    %v3171 = vld [vmem:[%s3162 + $0x40] sm:$0xff]
    %v3172 = vld [vmem:[%s3162 + $0x48] sm:$0xff]
    %v3174 = vsel %vm1935, %v3149, 0
    %3176 = vmatpush.msra.mxu0 0.0
    %3177 = vmatpush.msra.mxu0 0.0
    %3178 = vmatpush.msra.mxu0 0.0
    %3179 = vmatpush.msra.mxu0 0.0
    %3180 = vmatpush.msra.mxu0 0.0
    %3181 = vmatpush.msra.mxu0 0.0
    %3182 = vmatpush.msra.mxu0 %v3172
    %3183 = vmatpush.msra.mxu0 %v3171
    %3184 = vmatpush.msra.mxu0 %v3170
    %3185 = vmatpush.msra.mxu0 %v3169
    %3186 = vmatpush.msra.mxu0 %v3168
    %3187 = vmatpush.msra.mxu0 %v3167
    %3188 = vmatpush.msra.mxu0 %v3166
    %3189 = vmatpush.msra.mxu0 %v3165
    %3190 = vmatpush.msra.mxu0 %v3164
    %3191 = vmatpush.msra.mxu0 %v3163
    %3192 = vmatmul.f32.gmra.mxu0 %v3174
    %v3193 = vpop.f32.mrf.mxu0
    %v3194 = vadd.f32 0.0, %v3193
    %3195 = vdwg.mxu0
    %v3197 = vsel %vm1935, %v3148, 0
    %3199 = vmatpush.msra.mxu0 0.0
    %3200 = vmatpush.msra.mxu0 0.0
    %3201 = vmatpush.msra.mxu0 0.0
    %3202 = vmatpush.msra.mxu0 0.0
    %3203 = vmatpush.msra.mxu0 0.0
    %3204 = vmatpush.msra.mxu0 0.0
    %3205 = vmatpush.msra.mxu0 %v3161
    %3206 = vmatpush.msra.mxu0 %v3160
    %3207 = vmatpush.msra.mxu0 %v3159
    %3208 = vmatpush.msra.mxu0 %v3158
    %3209 = vmatpush.msra.mxu0 %v3157
    %3210 = vmatpush.msra.mxu0 %v3156
    %3211 = vmatpush.msra.mxu0 %v3155
    %3212 = vmatpush.msra.mxu0 %v3154
    %3213 = vmatpush.msra.mxu0 %v3153
    %3214 = vmatpush.msra.mxu0 %v3152
    %3215 = vmatmul.f32.gmra.mxu0 %v3197
    %v3216 = vpop.f32.mrf.mxu0
    %v3217 = vadd.f32 %v3194, %v3216
    %3218 = vdwg.mxu0
    %s3219 = scalar_lea.vmem [#allocation7], 160
    %v3220 = vld [vmem:[%s3219] sm:$0xff]
    %v3221 = vld [vmem:[%s3219 + $0x8] sm:$0xff]
    %v3222 = vld [vmem:[%s3219 + $0x10] sm:$0xff]
    %v3223 = vld [vmem:[%s3219 + $0x18] sm:$0xff]
    %v3224 = vld [vmem:[%s3219 + $0x20] sm:$0xff]
    %v3225 = vld [vmem:[%s3219 + $0x28] sm:$0xff]
    %v3226 = vld [vmem:[%s3219 + $0x30] sm:$0xff]
    %v3227 = vld [vmem:[%s3219 + $0x38] sm:$0xff]
    %v3228 = vld [vmem:[%s3219 + $0x40] sm:$0xff]
    %v3229 = vld [vmem:[%s3219 + $0x48] sm:$0xff]
    %v3231 = vsel %vm1935, %v3150, 0
    %3233 = vmatpush.msra.mxu0 0.0
    %3234 = vmatpush.msra.mxu0 0.0
    %3235 = vmatpush.msra.mxu0 0.0
    %3236 = vmatpush.msra.mxu0 0.0
    %3237 = vmatpush.msra.mxu0 0.0
    %3238 = vmatpush.msra.mxu0 0.0
    %3239 = vmatpush.msra.mxu0 %v3229
    %3240 = vmatpush.msra.mxu0 %v3228
    %3241 = vmatpush.msra.mxu0 %v3227
    %3242 = vmatpush.msra.mxu0 %v3226
    %3243 = vmatpush.msra.mxu0 %v3225
    %3244 = vmatpush.msra.mxu0 %v3224
    %3245 = vmatpush.msra.mxu0 %v3223
    %3246 = vmatpush.msra.mxu0 %v3222
    %3247 = vmatpush.msra.mxu0 %v3221
    %3248 = vmatpush.msra.mxu0 %v3220
    %3249 = vmatmul.f32.gmra.mxu0 %v3231
    %v3250 = vpop.f32.mrf.mxu0
    %v3251 = vadd.f32 0.0, %v3250
    %3252 = vdwg.mxu0
    %v3253 = vadd.f32 %v3217, %v3251
    %s3254 = scalar_lea.vmem [#allocation7], 240
    %v3255 = vld [vmem:[%s3254] sm:$0xff]
    %v3256 = vld [vmem:[%s3254 + $0x8] sm:$0xff]
    %v3257 = vld [vmem:[%s3254 + $0x10] sm:$0xff]
    %v3258 = vld [vmem:[%s3254 + $0x18] sm:$0xff]
    %v3259 = vld [vmem:[%s3254 + $0x20] sm:$0xff]
    %v3260 = vld [vmem:[%s3254 + $0x28] sm:$0xff]
    %v3261 = vld [vmem:[%s3254 + $0x30] sm:$0xff]
    %v3262 = vld [vmem:[%s3254 + $0x38] sm:$0xff]
    %v3263 = vld [vmem:[%s3254 + $0x40] sm:$0xff]
    %v3264 = vld [vmem:[%s3254 + $0x48] sm:$0xff]
    %v3266 = vsel %vm1935, %v3151, 0
    %3268 = vmatpush.msra.mxu0 0.0
    %3269 = vmatpush.msra.mxu0 0.0
    %3270 = vmatpush.msra.mxu0 0.0
    %3271 = vmatpush.msra.mxu0 0.0
    %3272 = vmatpush.msra.mxu0 0.0
    %3273 = vmatpush.msra.mxu0 0.0
    %3274 = vmatpush.msra.mxu0 %v3264
    %3275 = vmatpush.msra.mxu0 %v3263
    %3276 = vmatpush.msra.mxu0 %v3262
    %3277 = vmatpush.msra.mxu0 %v3261
    %3278 = vmatpush.msra.mxu0 %v3260
    %3279 = vmatpush.msra.mxu0 %v3259
    %3280 = vmatpush.msra.mxu0 %v3258
    %3281 = vmatpush.msra.mxu0 %v3257
    %3282 = vmatpush.msra.mxu0 %v3256
    %3283 = vmatpush.msra.mxu0 %v3255
    %3284 = vmatmul.f32.gmra.mxu0 %v3266
    %v3285 = vpop.f32.mrf.mxu0
    %v3286 = vadd.f32 0.0, %v3285
    %3287 = vdwg.mxu0
    %v3288 = vadd.f32 %v3253, %v3286
    %v3289 = vld [vmem:[%s7] sm:$0x1]
    %v3291 = vperm.slane %v3289, 0
    %v3293 = vadd.f32 %v3288, %v3291
    %v3294 = vmax.f32 %v3293, 0.0
    %v3295 = vld [vmem:[%s8] sm:$0xff]
    %v3296 = vld [vmem:[%s8 + $0x8] sm:$0xff]
    %v3297 = vld [vmem:[%s8 + $0x10] sm:$0xff]
    %v3298 = vld [vmem:[%s8 + $0x18] sm:$0xff]
    %v3299 = vld [vmem:[%s8 + $0x20] sm:$0xff]
    %v3300 = vld [vmem:[%s8 + $0x28] sm:$0xff]
    %v3301 = vld [vmem:[%s8 + $0x30] sm:$0x3]
    %v3302 = vld [vmem:[%s9] sm:$0x1]
    %v3304 = vperm.slane %v3302, 0
    %vm3306 = vcmask 408576
    %v3308 = vsel %vm3306, %v3294, 0
    %vm3310 = vcmask 1041408
    %v3312 = vsel %vm3310, %v3301, 0
    %3314 = vmatpush.msra.mxu0 0.0
    %3315 = vmatpush.msra.mxu0 0.0
    %3316 = vmatpush.msra.mxu0 0.0
    %3317 = vmatpush.msra.mxu0 0.0
    %3318 = vmatpush.msra.mxu0 0.0
    %3319 = vmatpush.msra.mxu0 0.0
    %3320 = vmatpush.msra.mxu0 0.0
    %3321 = vmatpush.msra.mxu0 0.0
    %3322 = vmatpush.msra.mxu0 0.0
    %3323 = vmatpush.msra.mxu0 %v3312
    %3324 = vmatpush.msra.mxu0 %v3300
    %3325 = vmatpush.msra.mxu0 %v3299
    %3326 = vmatpush.msra.mxu0 %v3298
    %3327 = vmatpush.msra.mxu0 %v3297
    %3328 = vmatpush.msra.mxu0 %v3296
    %3329 = vmatpush.msra.mxu0 %v3295
    %3330 = vmatmul.f32.gmra.mxu0 %v3308
    %v3331 = vpop.f32.mrf.mxu0
    %v3332 = vadd.f32 %v3304, %v3331
    %3333 = vdwg.mxu0
    %3334 = vmax.xlane.f32.xlu0 %v3332
    %v3335 = vpop.xlane.xlu0 %3334
    %v3336 = vsub.f32 %v3332, %v3335
    %v3337 = vmul.f32 %v3336, 1.442695
    %v3338 = vpow.pop %v3337
    %3339 = vadd.xlane.f32.xlu0 %v3338
    %v3340 = vpop.xlane.xlu0 %3339
    %v3341 = vlog2.pop %v3340
    %v3342 = vmul.f32 %v3341, 0.6931472
    %v3343 = vsub.f32 %v3336, %v3342
    %3344 = vst [vmem:[%s10] sm:$0xff] %v3343
    // Predicated region
    $region58: #{forward.1} parent=1 // pred_check
      _
    $region59: #{forward.1} parent=1 // pred_check_branch
      %3346 = sbr.rel (0) target = $region61
    $region60: #{forward.1} parent=1 // pred_region
      _
    $region61: #{forward.1} parent=1 // pred_fallthru
      _
    // Predicated region
    $region62: #{forward.1} parent=1 // pred_check
      _
    $region63: #{forward.1} parent=1 // pred_check_branch
      %3348 = sbr.rel (0) target = $region65
    $region64: #{forward.1} parent=1 // pred_region
      _
    $region65: #{forward.1} parent=1 // pred_fallthru
      _
    %3349 = vsyncpa [#allocation3], 1
    %3350 = vsyncpa [#allocation5], 1
    %3351 = vsyncpa [#allocation8], 1

</llo_original>
